<compile_context>
chip_gen: v6e
topology: v6e:2x2x1
jax: 0.10.0
libtpu: 0.0.40
codegen_flags: <defaults>
</compile_context>

<pallas_src>
import functools

import jax
import jax.numpy as jnp
from jax.experimental import pallas as pl
from jax.experimental.pallas import tpu as pltpu


def _round_up(x, m):
    return (x + m - 1) // m * m


def hybrid_fm_kernel(uid_ref, iid_ref, ufeat_t_ref,
                     uemb_t_ref, iemb_t_ref,
                     wmlp_t_ref, bmlp_t_ref,
                     wlin_t_ref, vfm_t_ref, blin_ref,
                     out_ref, *, matmul_dtype):
    """One batch tile in batch-in-lanes layout.

    uid/iid        : (1, tb)  int32 ids
    ufeat_t        : (F, tb)  f32 user features (transposed)
    uemb_t/iemb_t  : (E, U)/(E, I) resident embedding tables (transposed)
    wmlp_t (E, F), bmlp_t (E, 1), wlin_t (E, 3), vfm_t (E, 3), blin (1, 1) SMEM
    out            : (1, tb)  f32 (lane-dense)
    """
    f32 = jnp.float32

    # ---- embedding row gather as one-hot matmuls on the (otherwise idle) MXU ----
    # table_t[E, rows] @ onehot[rows, tb] == gathered_embeddings^T [E, tb].
    # HIGHEST precision keeps the f32 one-hot product exact (matches jnp.take).
    def gather_t(tbl_t_ref, ids_row):
        rows = tbl_t_ref.shape[1]
        tb = ids_row.shape[-1]
        iota = jax.lax.broadcasted_iota(jnp.int32, (rows, tb), 0)
        onehot = (iota == ids_row).astype(f32)
        return jnp.dot(tbl_t_ref[...], onehot,
                       preferred_element_type=f32,
                       precision=jax.lax.Precision.HIGHEST)

    u = gather_t(uemb_t_ref, uid_ref[...])       # [E, tb]
    it = gather_t(iemb_t_ref, iid_ref[...])      # [E, tb]

    # ---- user_feature_mlp: ReLU(W x + b); Dropout == identity at inference ----
    # bf16 operands on the MXU, f32 accumulation; bias/ReLU stay in f32.
    h = jnp.dot(wmlp_t_ref[...].astype(matmul_dtype),
                ufeat_t_ref[...].astype(matmul_dtype),
                preferred_element_type=f32)      # [E, tb]
    f = jnp.maximum(h + bmlp_t_ref[...], 0.0)    # [E, tb]

    # Segment weights (columns: user / item / feat) broadcast along the lane (batch) axis.
    wl = wlin_t_ref[...]                         # [E, 3]
    v = vfm_t_ref[...]                           # [E, 3]
    wu, wi, wf = wl[:, 0:1], wl[:, 1:2], wl[:, 2:3]
    vu, vi, vf = v[:, 0:1], v[:, 1:2], v[:, 2:3]
    b_lin = blin_ref[0, 0]

    # linear = x.w + b ; fm = 0.5*((x.v)^2 - (x^2).v)   with x = [u | it | f]
    lin = jnp.sum(u * wu + it * wi + f * wf, axis=0, keepdims=True) + b_lin    # [1, tb]
    s1 = jnp.sum(u * vu + it * vi + f * vf, axis=0, keepdims=True)
    s2 = jnp.sum(u * u * vu + it * it * vi + f * f * vf, axis=0, keepdims=True)

    out_ref[...] = (lin + 0.5 * (s1 * s1 - s2)).astype(out_ref.dtype)          # lane-dense


def hybrid_fm_forward(user_ids, item_ids, user_features, params, *,
                      batch_tile=512, matmul_dtype=jnp.bfloat16):
    """user_ids/item_ids: [B] int; user_features: [B, F] f32. Returns [B] f32."""
    assert batch_tile % 128 == 0 and batch_tile >= 128
    B = user_ids.shape[0]
    F = user_features.shape[1]
    num_users, E = params["user_emb"].shape
    num_items = params["item_emb"].shape[0]

    # Both embedding tables are kept VMEM-resident (see TODO at top for huge tables).
    assert (num_users + num_items) * E * 4 <= 8 * 1024 * 1024, \
        "embedding tables assumed VMEM-resident"

    # Lane-dense (batch-in-lanes) layouts. Weight/table transposes are tiny one-time ops
    # (store params pre-transposed in a real deployment to make them free).
    uemb_t = params["user_emb"].T                      # [E, U]
    iemb_t = params["item_emb"].T                      # [E, I]
    wmlp_t = params["w_mlp"].T                         # [E, F]
    bmlp_t = params["b_mlp"].T                         # [E, 1]
    wlin_t = params["w_lin"].reshape(3, E).T           # [E, 3]  cols = [user|item|feat]
    vfm_t = params["v_fm"].reshape(3, E).T             # [E, 3]
    blin = params["b_lin"].reshape(1, 1)               # SMEM scalar

    uids = user_ids.reshape(1, B).astype(jnp.int32)    # [1, B]
    iids = item_ids.reshape(1, B).astype(jnp.int32)    # [1, B]
    ufeat_t = user_features.T                          # [F, B]

    # Batch tile: multiple of 128 lanes, as large as batch_tile allows, but keep >= 2
    # grid steps when B permits (pipeline overlap + megacore sharding on v7x).
    # No padding copies: grid = cdiv(B, tb); ragged-last-block lanes are discarded.
    tb = min(batch_tile, _round_up(B, 128))
    if B > 128 and pl.cdiv(B, tb) < 2:
        tb = _round_up(pl.cdiv(B, 2), 128)
    grid = (pl.cdiv(B, tb),)

    resident = lambda shape: pl.BlockSpec(shape, lambda i: (0, 0))
    stream = lambda rows: pl.BlockSpec((rows, tb), lambda i: (0, i))

    out = pl.pallas_call(
        functools.partial(hybrid_fm_kernel, matmul_dtype=matmul_dtype),
        out_shape=jax.ShapeDtypeStruct((1, B), user_features.dtype),
        grid_spec=pltpu.PrefetchScalarGridSpec(
            num_scalar_prefetch=0,
            grid=grid,
            in_specs=[
                stream(1),                              # user ids         (1, tb)
                stream(1),                              # item ids         (1, tb)
                stream(F),                              # user features^T  (F, tb)
                resident((E, num_users)),               # user emb table^T (resident)
                resident((E, num_items)),               # item emb table^T (resident)
                resident((E, F)),                       # w_mlp^T
                resident((E, 1)),                       # b_mlp^T
                resident((E, 3)),                       # w_lin segments
                resident((E, 3)),                       # v_fm segments
                pl.BlockSpec(memory_space=pltpu.MemorySpace.SMEM),   # b_lin scalar
            ],
            out_specs=pl.BlockSpec((1, tb), lambda i: (0, i)),       # lane-dense output
        ),
        compiler_params=pltpu.CompilerParams(
            dimension_semantics=("parallel",)),
    )(uids, iids, ufeat_t,
      uemb_t, iemb_t, wmlp_t, bmlp_t, wlin_t, vfm_t, blin)

    return out[0, :]   # matches torch output.squeeze()


def init_params(key, num_users, num_items, user_feature_dim, embedding_dim=32,
                dtype=jnp.float32):
    """Matches torch defaults: Embedding ~ N(0,1); Linear ~ U(-1/sqrt(fan_in), +1/sqrt(fan_in)).
    Linear weights are stored transposed ([in, out]) so the forward computes x @ W + b."""
    E, F = embedding_dim, user_feature_dim
    ks = jax.random.split(key, 7)
    b_mlp = 1.0 / (F ** 0.5)
    b_cat = 1.0 / ((3 * E) ** 0.5)
    uni = lambda k, shape, b: jax.random.uniform(k, shape, dtype, minval=-b, maxval=b)
    return {
        "user_emb": jax.random.normal(ks[0], (num_users, E), dtype),
        "item_emb": jax.random.normal(ks[1], (num_items, E), dtype),
        "w_mlp": uni(ks[2], (F, E), b_mlp),
        "b_mlp": uni(ks[3], (1, E), b_mlp),
        "w_lin": uni(ks[4], (3 * E, 1), b_cat),
        "b_lin": uni(ks[5], (1, 1), b_cat),
        "v_fm":  uni(ks[6], (3 * E, 1), b_cat),
    }


def reference_forward(user_ids, item_ids, user_features, params, *,
                      matmul_dtype=jnp.bfloat16):
    """Plain-JAX reference mirroring the torch forward (same bf16-MXU MLP policy)."""
    u = jnp.take(params["user_emb"], user_ids, axis=0)
    it = jnp.take(params["item_emb"], item_ids, axis=0)
    h = jnp.dot(user_features.astype(matmul_dtype),
                params["w_mlp"].astype(matmul_dtype),
                preferred_element_type=jnp.float32)
    f = jnp.maximum(h + params["b_mlp"], 0.0)
    x = jnp.concatenate([u, it, f], axis=1)                       # [B, 3E]
    w = params["w_lin"][:, 0]
    v = params["v_fm"][:, 0]
    linear_part = jnp.sum(x * w, axis=1) + params["b_lin"][0, 0]
    s1 = jnp.sum(x * v, axis=1)
    s2 = jnp.sum((x * x) * v, axis=1)
    return linear_part + 0.5 * (s1 * s1 - s2)


if __name__ == "__main__":
    key = jax.random.PRNGKey(0)
    k_uid, k_iid, k_feat, k_par = jax.random.split(key, 4)

    num_users, num_items = 64, 128
    user_feature_dim, embedding_dim = 16, 32
    B = 1024                      # 2 even grid steps at batch_tile=512 (v7x megacore)

    user_ids = jax.random.randint(k_uid, (B,), 0, num_users)
    item_ids = jax.random.randint(k_iid, (B,), 0, num_items)
    user_features = jax.random.normal(k_feat, (B, user_feature_dim), dtype=jnp.float32)
    params = init_params(k_par, num_users, num_items, user_feature_dim, embedding_dim)

    out = hybrid_fm_forward(user_ids, item_ids, user_features, params, batch_tile=512)
    jax.block_until_ready(out)

    ref = reference_forward(user_ids, item_ids, user_features, params)
    assert out.shape == (B,), out.shape
    max_err = float(jnp.max(jnp.abs(out - ref)))
    # Tolerance covers the bf16-operand MXU policy used for the MLP matmul.
    assert jnp.allclose(out, ref, atol=5e-3, rtol=5e-3), max_err

    print("KERNEL_OK")
</pallas_src>

<mosaic_0001>
module attributes {stable_mosaic.version = 11 : i64} {
  func.func @hybrid_fm_kernel(%arg0: i32, %arg1: memref<1x512xi32, #tpu.memory_space<vmem>>, %arg2: memref<1x512xi32, #tpu.memory_space<vmem>>, %arg3: memref<16x512xf32, #tpu.memory_space<vmem>>, %arg4: memref<32x64xf32, #tpu.memory_space<vmem>>, %arg5: memref<32x128xf32, #tpu.memory_space<vmem>>, %arg6: memref<32x16xf32, #tpu.memory_space<vmem>>, %arg7: memref<32x1xf32, #tpu.memory_space<vmem>>, %arg8: memref<32x3xf32, #tpu.memory_space<vmem>>, %arg9: memref<32x3xf32, #tpu.memory_space<vmem>>, %arg10: memref<1x1xf32, #tpu.memory_space<smem>>, %arg11: memref<1x512xf32, #tpu.memory_space<vmem>>) attributes {dimension_semantics = [#tpu.dimension_semantics<parallel>], iteration_bounds = array<i64: 2>, scalar_prefetch = 0 : i64, scratch_operands = 0 : i64, tpu.core_type = #tpu.core_type<tc>, window_params = [{transform_indices = @transform_0, window_bounds = array<i64: 1, 512>}, {transform_indices = @transform_1, window_bounds = array<i64: 1, 512>}, {transform_indices = @transform_2, window_bounds = array<i64: 16, 512>}, {pipeline_mode = #tpu.pipeline_mode<synchronous>, transform_indices = @transform_3, window_bounds = array<i64: 32, 64>}, {pipeline_mode = #tpu.pipeline_mode<synchronous>, transform_indices = @transform_4, window_bounds = array<i64: 32, 128>}, {pipeline_mode = #tpu.pipeline_mode<synchronous>, transform_indices = @transform_5, window_bounds = array<i64: 32, 16>}, {pipeline_mode = #tpu.pipeline_mode<synchronous>, transform_indices = @transform_6, window_bounds = array<i64: 32, 1>}, {pipeline_mode = #tpu.pipeline_mode<synchronous>, transform_indices = @transform_7, window_bounds = array<i64: 32, 3>}, {pipeline_mode = #tpu.pipeline_mode<synchronous>, transform_indices = @transform_8, window_bounds = array<i64: 32, 3>}, {transform_indices = @transform_9, window_bounds = array<i64: 1, 1>}, {transform_indices = @transform_10, window_bounds = array<i64: 1, 512>}]} {
    %c0 = arith.constant 0 : index
    %c0_0 = arith.constant 0 : index
    %0 = vector.load %arg1[%c0, %c0_0] : memref<1x512xi32, #tpu.memory_space<vmem>>, vector<1x512xi32>
    %1 = tpu.iota {dimensions = array<i32: 0>} : vector<64x512xi32>
    %2 = vector.broadcast %0 : vector<1x512xi32> to vector<64x512xi32>
    %3 = arith.cmpi eq, %1, %2 : vector<64x512xi32>
    %4 = arith.extui %3 : vector<64x512xi1> to vector<64x512xi32>
    %5 = arith.sitofp %4 : vector<64x512xi32> to vector<64x512xf32>
    %c0_1 = arith.constant 0 : index
    %c0_2 = arith.constant 0 : index
    %6 = vector.load %arg4[%c0_1, %c0_2] : memref<32x64xf32, #tpu.memory_space<vmem>>, vector<32x64xf32>
    %cst = arith.constant dense<0.000000e+00> : vector<32x512xf32>
    %7 = tpu.matmul %6, %5, %cst {dimension_numbers = #tpu.dot_dimension_numbers<[1], [0], [0], [1], [0, 0, 1, 1], [], []>, precision = #tpu.contract_precision<fp32>} : vector<32x64xf32>, vector<64x512xf32>, vector<32x512xf32> -> vector<32x512xf32>
    %c0_3 = arith.constant 0 : index
    %c0_4 = arith.constant 0 : index
    %8 = vector.load %arg2[%c0_3, %c0_4] : memref<1x512xi32, #tpu.memory_space<vmem>>, vector<1x512xi32>
    %9 = tpu.iota {dimensions = array<i32: 0>} : vector<128x512xi32>
    %10 = vector.broadcast %8 : vector<1x512xi32> to vector<128x512xi32>
    %11 = arith.cmpi eq, %9, %10 : vector<128x512xi32>
    %12 = arith.extui %11 : vector<128x512xi1> to vector<128x512xi32>
    %13 = arith.sitofp %12 : vector<128x512xi32> to vector<128x512xf32>
    %c0_5 = arith.constant 0 : index
    %c0_6 = arith.constant 0 : index
    %14 = vector.load %arg5[%c0_5, %c0_6] : memref<32x128xf32, #tpu.memory_space<vmem>>, vector<32x128xf32>
    %cst_7 = arith.constant dense<0.000000e+00> : vector<32x512xf32>
    %15 = tpu.matmul %14, %13, %cst_7 {dimension_numbers = #tpu.dot_dimension_numbers<[1], [0], [0], [1], [0, 0, 1, 1], [], []>, precision = #tpu.contract_precision<fp32>} : vector<32x128xf32>, vector<128x512xf32>, vector<32x512xf32> -> vector<32x512xf32>
    %c0_8 = arith.constant 0 : index
    %c0_9 = arith.constant 0 : index
    %16 = vector.load %arg6[%c0_8, %c0_9] : memref<32x16xf32, #tpu.memory_space<vmem>>, vector<32x16xf32>
    %17 = arith.truncf %16 : vector<32x16xf32> to vector<32x16xbf16>
    %c0_10 = arith.constant 0 : index
    %c0_11 = arith.constant 0 : index
    %18 = vector.load %arg3[%c0_10, %c0_11] : memref<16x512xf32, #tpu.memory_space<vmem>>, vector<16x512xf32>
    %19 = arith.truncf %18 : vector<16x512xf32> to vector<16x512xbf16>
    %cst_12 = arith.constant dense<0.000000e+00> : vector<32x512xf32>
    %20 = tpu.matmul %17, %19, %cst_12 {dimension_numbers = #tpu.dot_dimension_numbers<[1], [0], [0], [1], [0, 0, 1, 1], [], []>} : vector<32x16xbf16>, vector<16x512xbf16>, vector<32x512xf32> -> vector<32x512xf32>
    %c0_13 = arith.constant 0 : index
    %c0_14 = arith.constant 0 : index
    %21 = vector.load %arg7[%c0_13, %c0_14] : memref<32x1xf32, #tpu.memory_space<vmem>>, vector<32x1xf32>
    %22 = vector.broadcast %21 : vector<32x1xf32> to vector<32x512xf32>
    %23 = arith.addf %20, %22 : vector<32x512xf32>
    %cst_15 = arith.constant 0.000000e+00 : f32
    %24 = vector.broadcast %cst_15 : f32 to vector<32x512xf32>
    %25 = arith.maximumf %23, %24 : vector<32x512xf32>
    %c0_16 = arith.constant 0 : index
    %c0_17 = arith.constant 0 : index
    %26 = vector.load %arg8[%c0_16, %c0_17] : memref<32x3xf32, #tpu.memory_space<vmem>>, vector<32x3xf32>
    %c0_18 = arith.constant 0 : index
    %c0_19 = arith.constant 0 : index
    %27 = vector.load %arg9[%c0_18, %c0_19] : memref<32x3xf32, #tpu.memory_space<vmem>>, vector<32x3xf32>
    %28 = vector.extract_strided_slice %26 {offsets = [0, 0], sizes = [32, 1], strides = [1, 1]} : vector<32x3xf32> to vector<32x1xf32>
    %29 = vector.extract_strided_slice %26 {offsets = [0, 1], sizes = [32, 1], strides = [1, 1]} : vector<32x3xf32> to vector<32x1xf32>
    %30 = vector.extract_strided_slice %26 {offsets = [0, 2], sizes = [32, 1], strides = [1, 1]} : vector<32x3xf32> to vector<32x1xf32>
    %31 = vector.extract_strided_slice %27 {offsets = [0, 0], sizes = [32, 1], strides = [1, 1]} : vector<32x3xf32> to vector<32x1xf32>
    %32 = vector.extract_strided_slice %27 {offsets = [0, 1], sizes = [32, 1], strides = [1, 1]} : vector<32x3xf32> to vector<32x1xf32>
    %33 = vector.extract_strided_slice %27 {offsets = [0, 2], sizes = [32, 1], strides = [1, 1]} : vector<32x3xf32> to vector<32x1xf32>
    %c0_20 = arith.constant 0 : index
    %c0_21 = arith.constant 0 : index
    %34 = memref.load %arg10[%c0_20, %c0_21] : memref<1x1xf32, #tpu.memory_space<smem>>
    %35 = vector.broadcast %28 : vector<32x1xf32> to vector<32x512xf32>
    %36 = arith.mulf %7, %35 : vector<32x512xf32>
    %37 = vector.broadcast %29 : vector<32x1xf32> to vector<32x512xf32>
    %38 = arith.mulf %15, %37 : vector<32x512xf32>
    %39 = arith.addf %36, %38 : vector<32x512xf32>
    %40 = vector.broadcast %30 : vector<32x1xf32> to vector<32x512xf32>
    %41 = arith.mulf %25, %40 : vector<32x512xf32>
    %42 = arith.addf %39, %41 : vector<32x512xf32>
    %cst_22 = arith.constant dense<0.000000e+00> : vector<512xf32>
    %43 = vector.multi_reduction <add>, %42, %cst_22 [0] : vector<32x512xf32> to vector<512xf32>
    %44 = vector.shape_cast %43 : vector<512xf32> to vector<1x512xf32>
    %45 = vector.broadcast %34 : f32 to vector<1x512xf32>
    %46 = arith.addf %44, %45 : vector<1x512xf32>
    %47 = vector.broadcast %31 : vector<32x1xf32> to vector<32x512xf32>
    %48 = arith.mulf %7, %47 : vector<32x512xf32>
    %49 = vector.broadcast %32 : vector<32x1xf32> to vector<32x512xf32>
    %50 = arith.mulf %15, %49 : vector<32x512xf32>
    %51 = arith.addf %48, %50 : vector<32x512xf32>
    %52 = vector.broadcast %33 : vector<32x1xf32> to vector<32x512xf32>
    %53 = arith.mulf %25, %52 : vector<32x512xf32>
    %54 = arith.addf %51, %53 : vector<32x512xf32>
    %cst_23 = arith.constant dense<0.000000e+00> : vector<512xf32>
    %55 = vector.multi_reduction <add>, %54, %cst_23 [0] : vector<32x512xf32> to vector<512xf32>
    %56 = vector.shape_cast %55 : vector<512xf32> to vector<1x512xf32>
    %57 = arith.mulf %7, %7 : vector<32x512xf32>
    %58 = vector.broadcast %31 : vector<32x1xf32> to vector<32x512xf32>
    %59 = arith.mulf %57, %58 : vector<32x512xf32>
    %60 = arith.mulf %15, %15 : vector<32x512xf32>
    %61 = vector.broadcast %32 : vector<32x1xf32> to vector<32x512xf32>
    %62 = arith.mulf %60, %61 : vector<32x512xf32>
    %63 = arith.addf %59, %62 : vector<32x512xf32>
    %64 = arith.mulf %25, %25 : vector<32x512xf32>
    %65 = vector.broadcast %33 : vector<32x1xf32> to vector<32x512xf32>
    %66 = arith.mulf %64, %65 : vector<32x512xf32>
    %67 = arith.addf %63, %66 : vector<32x512xf32>
    %cst_24 = arith.constant dense<0.000000e+00> : vector<512xf32>
    %68 = vector.multi_reduction <add>, %67, %cst_24 [0] : vector<32x512xf32> to vector<512xf32>
    %69 = vector.shape_cast %68 : vector<512xf32> to vector<1x512xf32>
    %70 = arith.mulf %56, %56 : vector<1x512xf32>
    %71 = arith.subf %70, %69 : vector<1x512xf32>
    %cst_25 = arith.constant 5.000000e-01 : f32
    %72 = vector.broadcast %cst_25 : f32 to vector<1x512xf32>
    %73 = arith.mulf %72, %71 : vector<1x512xf32>
    %74 = arith.addf %46, %73 : vector<1x512xf32>
    %c0_26 = arith.constant 0 : index
    %c0_27 = arith.constant 0 : index
    %75 = vector.load %arg11[%c0_26, %c0_27] : memref<1x512xf32, #tpu.memory_space<vmem>>, vector<1x512xf32>
    tpu.vector_store %arg11[%c0_26, %c0_27], %74 {strides = array<i32>} : memref<1x512xf32, #tpu.memory_space<vmem>>, vector<1x512xf32>,
    return
  }
  func.func @transform_0(%arg0: i32) -> (i32, i32) {
    %c0_i32 = arith.constant 0 : i32
    %c0_i32_0 = arith.constant 0 : i32
    return %c0_i32, %arg0 : i32, i32
  }
  func.func @transform_1(%arg0: i32) -> (i32, i32) {
    %c0_i32 = arith.constant 0 : i32
    %c0_i32_0 = arith.constant 0 : i32
    return %c0_i32, %arg0 : i32, i32
  }
  func.func @transform_2(%arg0: i32) -> (i32, i32) {
    %c0_i32 = arith.constant 0 : i32
    %c0_i32_0 = arith.constant 0 : i32
    return %c0_i32, %arg0 : i32, i32
  }
  func.func @transform_3(%arg0: i32) -> (i32, i32) {
    %c0_i32 = arith.constant 0 : i32
    %c0_i32_0 = arith.constant 0 : i32
    %c0_i32_1 = arith.constant 0 : i32
    return %c0_i32, %c0_i32_0 : i32, i32
  }
  func.func @transform_4(%arg0: i32) -> (i32, i32) {
    %c0_i32 = arith.constant 0 : i32
    %c0_i32_0 = arith.constant 0 : i32
    %c0_i32_1 = arith.constant 0 : i32
    return %c0_i32, %c0_i32_0 : i32, i32
  }
  func.func @transform_5(%arg0: i32) -> (i32, i32) {
    %c0_i32 = arith.constant 0 : i32
    %c0_i32_0 = arith.constant 0 : i32
    %c0_i32_1 = arith.constant 0 : i32
    return %c0_i32, %c0_i32_0 : i32, i32
  }
  func.func @transform_6(%arg0: i32) -> (i32, i32) {
    %c0_i32 = arith.constant 0 : i32
    %c0_i32_0 = arith.constant 0 : i32
    %c0_i32_1 = arith.constant 0 : i32
    return %c0_i32, %c0_i32_0 : i32, i32
  }
  func.func @transform_7(%arg0: i32) -> (i32, i32) {
    %c0_i32 = arith.constant 0 : i32
    %c0_i32_0 = arith.constant 0 : i32
    %c0_i32_1 = arith.constant 0 : i32
    return %c0_i32, %c0_i32_0 : i32, i32
  }
  func.func @transform_8(%arg0: i32) -> (i32, i32) {
    %c0_i32 = arith.constant 0 : i32
    %c0_i32_0 = arith.constant 0 : i32
    %c0_i32_1 = arith.constant 0 : i32
    return %c0_i32, %c0_i32_0 : i32, i32
  }
  func.func @transform_9(%arg0: i32) -> (i32, i32) {
    %c0_i32 = arith.constant 0 : i32
    %c0_i32_0 = arith.constant 0 : i32
    %c0_i32_1 = arith.constant 0 : i32
    return %c0_i32, %c0_i32_0 : i32, i32
  }
  func.func @transform_10(%arg0: i32) -> (i32, i32) {
    %c0_i32 = arith.constant 0 : i32
    %c0_i32_0 = arith.constant 0 : i32
    return %c0_i32, %arg0 : i32, i32
  }
}

</mosaic_0001>

<llo_original>
// kernel: tpu_custom_call.1
$region0: #{tpu_custom_call.1}
  #allocation0 [shape = 'u32[]', space=smem, size = 0x4, offset = 0x4, fixed_abs, tag = 'smem constant byte address 0x4 - core index']
  #allocation1 [shape = 'u32[144,128]{1,0:T(1,128)}', space=vmem, size = 0x12000, scoped, tag = 'internal scratch']
  #allocation2 [shape = 'f32[1,1]{1,0:T(1,128)S(6)}', space=smem, size = 0x200, scoped, tag = 'scoped memory for tpu_custom_call.1']
  %s0 = inlined_call_operand.hbm [shape: s32[1,1024], index: 0, kind: input, shape index: {}]
  %s1 = inlined_call_operand.hbm [shape: s32[1,1024], index: 1, kind: input, shape index: {}]
  %s2 = inlined_call_operand.vmem [shape: f32[16,1024], index: 2, kind: input, shape index: {}]
  %s3 = inlined_call_operand.vmem [shape: f32[32,64], index: 3, kind: input, shape index: {}]
  %s4 = inlined_call_operand.hbm [shape: f32[32,128], index: 4, kind: input, shape index: {}]
  %s5 = inlined_call_operand.vmem [shape: f32[32,16], index: 5, kind: input, shape index: {}]
  %s6 = inlined_call_operand.vmem [shape: f32[32,1], index: 6, kind: input, shape index: {}]
  %s7 = inlined_call_operand.vmem [shape: f32[32,3], index: 7, kind: input, shape index: {}]
  %s8 = inlined_call_operand.vmem [shape: f32[32,3], index: 8, kind: input, shape index: {}]
  %s9 = inlined_call_operand.<no memory space> [shape: f32[1,1], index: 9, kind: input, shape index: {}]
  %s10 = inlined_call_operand.hbm [shape: f32[1,1024], index: 10, kind: output, shape index: {}]
  %s11 = sld [smem:[#allocation0]]
  $region108: #{tpu_custom_call.1} parent=0
    _
  %s13 = ssub.s32 1, %s11
  %s14 = scalar_select 0, %s13, %s11
  %15 = sst [smem:[#allocation2]] %s9
  $region1: #{tpu_custom_call.1} parent=0
    #allocation3 [shape = 'u8[4096]{0}', space=vmem, size = 0x1000, scoped, tag = 'input window, operand 0']
    #allocation4 [shape = 's32[2]{0}', space=sflag, size = 0x8, scoped, tag = 'scoped memory for tpu_custom_call.1']
    #allocation5 [shape = 's32[2]{0}', space=sflag, size = 0x8, scoped, tag = 'scoped memory for tpu_custom_call.1']
    #allocation6 [shape = 'u8[4096]{0}', space=vmem, size = 0x1000, scoped, tag = 'input window, operand 1']
    #allocation7 [shape = 's32[2]{0}', space=sflag, size = 0x8, scoped, tag = 'scoped memory for tpu_custom_call.1']
    #allocation8 [shape = 'u8[65536]{0}', space=vmem, size = 0x10000, scoped, tag = 'input window, operand 2']
    #allocation9 [shape = 'u8[16384]{0}', space=vmem, size = 0x4000, scoped, tag = 'input window, operand 4, single buffered']
    #allocation10 [shape = 'u8[4096]{0}', space=vmem, size = 0x1000, scoped, tag = 'output window, operand 0']
    %16 = vsyncpa [#allocation4], 0
    %s17 = scalar_lea.sflag [#allocation4], 1
    %18 = vsyncpa %s17, 0
    %19 = vsyncpa [#allocation7], 0
    %s20 = scalar_lea.sflag [#allocation7], 1
    %21 = vsyncpa %s20, 0
    %22 = vsyncpa [#allocation5], 0
    %s23 = scalar_lea.sflag [#allocation5], 1
    %24 = vsyncpa %s23, 0
    loop: start=0, step=1, limit=4
    $region2: #{tpu_custom_call.1} parent=1 // loop_pre_header
      _
    $region3: #{tpu_custom_call.1} parent=1 // loop_header
      %s26 = sphi 0, %s30
      %p27 = scmp.ge.s32.totalorder %s26, 4
      %s36 = sphi 0, %s38
      %s39 = sphi 0, %s36
      %s40 = sphi 0, %s39
      %s56 = sphi 0, %s40
      %s62 = sphi 0, %s64
      %s65 = sphi 0, %s62
      %s66 = sphi 0, %s65
      %s82 = sphi 0, %s66
      %s88 = sphi 0, %s90
      %s91 = sphi 0, %s88
      %s92 = sphi 0, %s91
      %s108 = sphi 0, %s92
      %s112 = sphi 0, %s112
      %s114 = sphi 0, %s112
      %s115 = sphi 0, %s114
      %s129 = sphi 0, %s115
      %s133 = sphi 0, %s133
      %s135 = sphi 0, %s133
      %s136 = sphi 0, %s135
      %s150 = sphi 0, %s136
      %s154 = sphi 0, %s154
      %s156 = sphi 0, %s154
      %s157 = sphi 0, %s156
      %s171 = sphi 0, %s157
      %s175 = sphi 0, %s175
      %s177 = sphi 0, %s175
      %s178 = sphi 0, %s177
      %s192 = sphi 0, %s178
      %s196 = sphi 0, %s196
      %s198 = sphi 0, %s196
      %s199 = sphi 0, %s198
      %s213 = sphi 0, %s199
      %s217 = sphi 0, %s217
      %s219 = sphi 0, %s217
      %s220 = sphi 0, %s219
      %s234 = sphi 0, %s220
      %s238 = sphi 0, %s238
      %s240 = sphi 0, %s238
      %s241 = sphi 0, %s240
      %s255 = sphi 0, %s241
      %s261 = sphi 0, %s263
      %s264 = sphi 0, %s261
      %s265 = sphi 0, %s264
      %s281 = sphi 0, %s265
    $region4: #{tpu_custom_call.1} parent=1 // loop_header_branch
      %29 = sbr.rel (%p27) target = $region8
    $region5: #{tpu_custom_call.1} parent=1 // loop_body
      %s31 = ssub.s32 %s26, 1
      %s32 = ssub.s32 %s26, 2
      %s33 = sadd.s32 %s26, 1
      %s34 = ssub.s32 %s26, %s33
      %p35 = scmp.eq.s32.totalorder %s34, 0
      %s37 = sadd.s32 %s36, 1
      %s38 = scalar_select %p35, %s36, %s37
      %p41 = pneg %p35
      %p42 = scmp.eq.s32.totalorder %s26, 1
      %p43 = por %p41, %p42
      %p44 = scmp.ne.s32.totalorder %s36, %s39
      %p45 = scmp.eq.s32.totalorder %s26, 0
      %p46 = por %p44, %p45
      %p47 = scmp.ne.s32.totalorder %s36, %s39
      %p48 = scmp.eq.s32.totalorder %s31, 1
      %p49 = por %p47, %p48
      %p50 = scmp.ne.s32.totalorder %s39, %s40
      %p51 = scmp.eq.s32.totalorder %s31, 0
      %p52 = por %p50, %p51
      %p53 = scmp.ne.s32.totalorder %s39, %s40
      %p54 = scmp.eq.s32.totalorder %s32, 1
      %p55 = por %p53, %p54
      %p57 = scmp.ne.s32.totalorder %s40, %s56
      %p58 = scmp.eq.s32.totalorder %s32, 0
      %p59 = por %p57, %p58
      %s60 = ssub.s32 %s26, %s33
      %p61 = scmp.eq.s32.totalorder %s60, 0
      %s63 = sadd.s32 %s62, 1
      %s64 = scalar_select %p61, %s62, %s63
      %p67 = pneg %p61
      %p68 = scmp.eq.s32.totalorder %s26, 1
      %p69 = por %p67, %p68
      %p70 = scmp.ne.s32.totalorder %s62, %s65
      %p71 = scmp.eq.s32.totalorder %s26, 0
      %p72 = por %p70, %p71
      %p73 = scmp.ne.s32.totalorder %s62, %s65
      %p74 = scmp.eq.s32.totalorder %s31, 1
      %p75 = por %p73, %p74
      %p76 = scmp.ne.s32.totalorder %s65, %s66
      %p77 = scmp.eq.s32.totalorder %s31, 0
      %p78 = por %p76, %p77
      %p79 = scmp.ne.s32.totalorder %s65, %s66
      %p80 = scmp.eq.s32.totalorder %s32, 1
      %p81 = por %p79, %p80
      %p83 = scmp.ne.s32.totalorder %s66, %s82
      %p84 = scmp.eq.s32.totalorder %s32, 0
      %p85 = por %p83, %p84
      %s86 = ssub.s32 %s26, %s33
      %p87 = scmp.eq.s32.totalorder %s86, 0
      %s89 = sadd.s32 %s88, 1
      %s90 = scalar_select %p87, %s88, %s89
      %p93 = pneg %p87
      %p94 = scmp.eq.s32.totalorder %s26, 1
      %p95 = por %p93, %p94
      %p96 = scmp.ne.s32.totalorder %s88, %s91
      %p97 = scmp.eq.s32.totalorder %s26, 0
      %p98 = por %p96, %p97
      %p99 = scmp.ne.s32.totalorder %s88, %s91
      %p100 = scmp.eq.s32.totalorder %s31, 1
      %p101 = por %p99, %p100
      %p102 = scmp.ne.s32.totalorder %s91, %s92
      %p103 = scmp.eq.s32.totalorder %s31, 0
      %p104 = por %p102, %p103
      %p105 = scmp.ne.s32.totalorder %s91, %s92
      %p106 = scmp.eq.s32.totalorder %s32, 1
      %p107 = por %p105, %p106
      %p109 = scmp.ne.s32.totalorder %s92, %s108
      %p110 = scmp.eq.s32.totalorder %s32, 0
      %p111 = por %p109, %p110
      %s113 = sadd.s32 %s112, 1
      %p116 = scmp.eq.s32.totalorder %s26, 1
      %p117 = scmp.ne.s32.totalorder %s112, %s114
      %p118 = scmp.eq.s32.totalorder %s26, 0
      %p119 = por %p117, %p118
      %p120 = scmp.ne.s32.totalorder %s112, %s114
      %p121 = scmp.eq.s32.totalorder %s31, 1
      %p122 = por %p120, %p121
      %p123 = scmp.ne.s32.totalorder %s114, %s115
      %p124 = scmp.eq.s32.totalorder %s31, 0
      %p125 = por %p123, %p124
      %p126 = scmp.ne.s32.totalorder %s114, %s115
      %p127 = scmp.eq.s32.totalorder %s32, 1
      %p128 = por %p126, %p127
      %p130 = scmp.ne.s32.totalorder %s115, %s129
      %p131 = scmp.eq.s32.totalorder %s32, 0
      %p132 = por %p130, %p131
      %s134 = sadd.s32 %s133, 1
      %p137 = scmp.eq.s32.totalorder %s26, 1
      %p138 = scmp.ne.s32.totalorder %s133, %s135
      %p139 = scmp.eq.s32.totalorder %s26, 0
      %p140 = por %p138, %p139
      %p141 = scmp.ne.s32.totalorder %s133, %s135
      %p142 = scmp.eq.s32.totalorder %s31, 1
      %p143 = por %p141, %p142
      %p144 = scmp.ne.s32.totalorder %s135, %s136
      %p145 = scmp.eq.s32.totalorder %s31, 0
      %p146 = por %p144, %p145
      %p147 = scmp.ne.s32.totalorder %s135, %s136
      %p148 = scmp.eq.s32.totalorder %s32, 1
      %p149 = por %p147, %p148
      %p151 = scmp.ne.s32.totalorder %s136, %s150
      %p152 = scmp.eq.s32.totalorder %s32, 0
      %p153 = por %p151, %p152
      %s155 = sadd.s32 %s154, 1
      %p158 = scmp.eq.s32.totalorder %s26, 1
      %p159 = scmp.ne.s32.totalorder %s154, %s156
      %p160 = scmp.eq.s32.totalorder %s26, 0
      %p161 = por %p159, %p160
      %p162 = scmp.ne.s32.totalorder %s154, %s156
      %p163 = scmp.eq.s32.totalorder %s31, 1
      %p164 = por %p162, %p163
      %p165 = scmp.ne.s32.totalorder %s156, %s157
      %p166 = scmp.eq.s32.totalorder %s31, 0
      %p167 = por %p165, %p166
      %p168 = scmp.ne.s32.totalorder %s156, %s157
      %p169 = scmp.eq.s32.totalorder %s32, 1
      %p170 = por %p168, %p169
      %p172 = scmp.ne.s32.totalorder %s157, %s171
      %p173 = scmp.eq.s32.totalorder %s32, 0
      %p174 = por %p172, %p173
      %s176 = sadd.s32 %s175, 1
      %p179 = scmp.eq.s32.totalorder %s26, 1
      %p180 = scmp.ne.s32.totalorder %s175, %s177
      %p181 = scmp.eq.s32.totalorder %s26, 0
      %p182 = por %p180, %p181
      %p183 = scmp.ne.s32.totalorder %s175, %s177
      %p184 = scmp.eq.s32.totalorder %s31, 1
      %p185 = por %p183, %p184
      %p186 = scmp.ne.s32.totalorder %s177, %s178
      %p187 = scmp.eq.s32.totalorder %s31, 0
      %p188 = por %p186, %p187
      %p189 = scmp.ne.s32.totalorder %s177, %s178
      %p190 = scmp.eq.s32.totalorder %s32, 1
      %p191 = por %p189, %p190
      %p193 = scmp.ne.s32.totalorder %s178, %s192
      %p194 = scmp.eq.s32.totalorder %s32, 0
      %p195 = por %p193, %p194
      %s197 = sadd.s32 %s196, 1
      %p200 = scmp.eq.s32.totalorder %s26, 1
      %p201 = scmp.ne.s32.totalorder %s196, %s198
      %p202 = scmp.eq.s32.totalorder %s26, 0
      %p203 = por %p201, %p202
      %p204 = scmp.ne.s32.totalorder %s196, %s198
      %p205 = scmp.eq.s32.totalorder %s31, 1
      %p206 = por %p204, %p205
      %p207 = scmp.ne.s32.totalorder %s198, %s199
      %p208 = scmp.eq.s32.totalorder %s31, 0
      %p209 = por %p207, %p208
      %p210 = scmp.ne.s32.totalorder %s198, %s199
      %p211 = scmp.eq.s32.totalorder %s32, 1
      %p212 = por %p210, %p211
      %p214 = scmp.ne.s32.totalorder %s199, %s213
      %p215 = scmp.eq.s32.totalorder %s32, 0
      %p216 = por %p214, %p215
      %s218 = sadd.s32 %s217, 1
      %p221 = scmp.eq.s32.totalorder %s26, 1
      %p222 = scmp.ne.s32.totalorder %s217, %s219
      %p223 = scmp.eq.s32.totalorder %s26, 0
      %p224 = por %p222, %p223
      %p225 = scmp.ne.s32.totalorder %s217, %s219
      %p226 = scmp.eq.s32.totalorder %s31, 1
      %p227 = por %p225, %p226
      %p228 = scmp.ne.s32.totalorder %s219, %s220
      %p229 = scmp.eq.s32.totalorder %s31, 0
      %p230 = por %p228, %p229
      %p231 = scmp.ne.s32.totalorder %s219, %s220
      %p232 = scmp.eq.s32.totalorder %s32, 1
      %p233 = por %p231, %p232
      %p235 = scmp.ne.s32.totalorder %s220, %s234
      %p236 = scmp.eq.s32.totalorder %s32, 0
      %p237 = por %p235, %p236
      %s239 = sadd.s32 %s238, 1
      %p242 = scmp.eq.s32.totalorder %s26, 1
      %p243 = scmp.ne.s32.totalorder %s238, %s240
      %p244 = scmp.eq.s32.totalorder %s26, 0
      %p245 = por %p243, %p244
      %p246 = scmp.ne.s32.totalorder %s238, %s240
      %p247 = scmp.eq.s32.totalorder %s31, 1
      %p248 = por %p246, %p247
      %p249 = scmp.ne.s32.totalorder %s240, %s241
      %p250 = scmp.eq.s32.totalorder %s31, 0
      %p251 = por %p249, %p250
      %p252 = scmp.ne.s32.totalorder %s240, %s241
      %p253 = scmp.eq.s32.totalorder %s32, 1
      %p254 = por %p252, %p253
      %p256 = scmp.ne.s32.totalorder %s241, %s255
      %p257 = scmp.eq.s32.totalorder %s32, 0
      %p258 = por %p256, %p257
      %s259 = ssub.s32 %s26, %s33
      %p260 = scmp.eq.s32.totalorder %s259, 0
      %s262 = sadd.s32 %s261, 1
      %s263 = scalar_select %p260, %s261, %s262
      %p266 = pneg %p260
      %p267 = scmp.eq.s32.totalorder %s26, 1
      %p268 = por %p266, %p267
      %p269 = scmp.ne.s32.totalorder %s261, %s264
      %p270 = scmp.eq.s32.totalorder %s26, 0
      %p271 = por %p269, %p270
      %p272 = scmp.ne.s32.totalorder %s261, %s264
      %p273 = scmp.eq.s32.totalorder %s31, 1
      %p274 = por %p272, %p273
      %p275 = scmp.ne.s32.totalorder %s264, %s265
      %p276 = scmp.eq.s32.totalorder %s31, 0
      %p277 = por %p275, %p276
      %p278 = scmp.ne.s32.totalorder %s264, %s265
      %p279 = scmp.eq.s32.totalorder %s32, 1
      %p280 = por %p278, %p279
      %p282 = scmp.ne.s32.totalorder %s265, %s281
      %p283 = scmp.eq.s32.totalorder %s32, 0
      %p284 = por %p282, %p283
      %p285 = scmp.le.s32.totalorder 1, %s26
      %p286 = scmp.lt.s32.totalorder %s26, 3
      %p287 = pnand %p285, %p286
      %p288 = pneg %p287
      // Predicated region
      $region9: #{tpu_custom_call.1} parent=5 // pred_check
        _
      $region10: #{tpu_custom_call.1} parent=5 // pred_check_branch
        %290 = sbr.rel (%p287) target = $region12
      $region11: #{tpu_custom_call.1} parent=5 // pred_region
        %s291 = ssub.s32 %s26, 1
        // Predicated region
        $region13: #{tpu_custom_call.1} parent=11 // pred_check
          %p292 = pneg %p125
        $region14: #{tpu_custom_call.1} parent=11 // pred_check_branch
          %294 = sbr.rel (%p292) target = $region16
        $region15: #{tpu_custom_call.1} parent=11 // pred_region
          _
        $region16: #{tpu_custom_call.1} parent=11 // pred_fallthru
          _
        // Predicated region
        $region17: #{tpu_custom_call.1} parent=11 // pred_check
          %p295 = pneg %p146
        $region18: #{tpu_custom_call.1} parent=11 // pred_check_branch
          %297 = sbr.rel (%p295) target = $region20
        $region19: #{tpu_custom_call.1} parent=11 // pred_region
          %s299 = ssub.s32 512, 512
          %300 = vsyncadd [#allocation7], %s299
          %s301 = sshll.u32 [#allocation9], 4
          %s302 = int_to_ptr.vmem [resolvable:$true] %s301
          %307 = dma.hbm_to_vmem [thread:$0]  %s4, 512, %s302, [#allocation7], 128, 128, 8
        $region20: #{tpu_custom_call.1} parent=11 // pred_fallthru
          _
        // Predicated region
        $region21: #{tpu_custom_call.1} parent=11 // pred_check
          %p308 = pneg %p167
        $region22: #{tpu_custom_call.1} parent=11 // pred_check_branch
          %310 = sbr.rel (%p308) target = $region24
        $region23: #{tpu_custom_call.1} parent=11 // pred_region
          _
        $region24: #{tpu_custom_call.1} parent=11 // pred_fallthru
          _
        // Predicated region
        $region25: #{tpu_custom_call.1} parent=11 // pred_check
          %p311 = pneg %p188
        $region26: #{tpu_custom_call.1} parent=11 // pred_check_branch
          %313 = sbr.rel (%p311) target = $region28
        $region27: #{tpu_custom_call.1} parent=11 // pred_region
          _
        $region28: #{tpu_custom_call.1} parent=11 // pred_fallthru
          _
        // Predicated region
        $region29: #{tpu_custom_call.1} parent=11 // pred_check
          %p314 = pneg %p209
        $region30: #{tpu_custom_call.1} parent=11 // pred_check_branch
          %316 = sbr.rel (%p314) target = $region32
        $region31: #{tpu_custom_call.1} parent=11 // pred_region
          _
        $region32: #{tpu_custom_call.1} parent=11 // pred_fallthru
          _
        // Predicated region
        $region33: #{tpu_custom_call.1} parent=11 // pred_check
          %p317 = pneg %p230
        $region34: #{tpu_custom_call.1} parent=11 // pred_check_branch
          %319 = sbr.rel (%p317) target = $region36
        $region35: #{tpu_custom_call.1} parent=11 // pred_region
          _
        $region36: #{tpu_custom_call.1} parent=11 // pred_fallthru
          _
        // Predicated region
        $region37: #{tpu_custom_call.1} parent=11 // pred_check
          %p320 = pneg %p251
        $region38: #{tpu_custom_call.1} parent=11 // pred_check_branch
          %322 = sbr.rel (%p320) target = $region40
        $region39: #{tpu_custom_call.1} parent=11 // pred_region
          _
        $region40: #{tpu_custom_call.1} parent=11 // pred_fallthru
          _
      $region12: #{tpu_custom_call.1} parent=5 // pred_fallthru
        _
      %p323 = scmp.lt.s32.totalorder %s26, 2
      // Predicated region
      $region41: #{tpu_custom_call.1} parent=5 // pred_check
        %p324 = pneg %p323
      $region42: #{tpu_custom_call.1} parent=5 // pred_check_branch
        %326 = sbr.rel (%p324) target = $region44
      $region43: #{tpu_custom_call.1} parent=5 // pred_region
        // Predicated region
        $region45: #{tpu_custom_call.1} parent=43 // pred_check
          %p327 = pneg %p46
        $region46: #{tpu_custom_call.1} parent=43 // pred_check_branch
          %329 = sbr.rel (%p327) target = $region48
        $region47: #{tpu_custom_call.1} parent=43 // pred_region
          %s330 = sand.u32 %s36, 1
          %s331 = scalar_lea.sflag [#allocation4], %s330
          %s332 = sand.u32 %s36, 1
          %s333 = smul.addr %s332, 4
          %s334 = scalar_lea.vmem [#allocation3], %s333
          %s335 = smul.u32 4, %s26
          %s337 = ssub.s32 64, 64
          %338 = vsyncadd %s331, %s337
          %s339 = smul.addr %s335, 16
          %s340 = scalar_lea.hbm %s0, %s339
          %s342 = sshll.u32 %s334, 4
          %s343 = int_to_ptr.vmem [resolvable:$true] %s342
          %345 = dma.hbm_to_vmem [thread:$0]  %s340, 64, %s343, %s331
        $region48: #{tpu_custom_call.1} parent=43 // pred_fallthru
          _
        // Predicated region
        $region49: #{tpu_custom_call.1} parent=43 // pred_check
          %p346 = pneg %p72
        $region50: #{tpu_custom_call.1} parent=43 // pred_check_branch
          %348 = sbr.rel (%p346) target = $region52
        $region51: #{tpu_custom_call.1} parent=43 // pred_region
          %s349 = sand.u32 %s26, 1
          %s350 = scalar_lea.sflag [#allocation7], %s349
          %s351 = sand.u32 %s62, 1
          %s352 = smul.addr %s351, 4
          %s353 = scalar_lea.vmem [#allocation6], %s352
          %s354 = smul.u32 4, %s26
          %s356 = ssub.s32 64, 64
          %357 = vsyncadd %s350, %s356
          %s358 = smul.addr %s354, 16
          %s359 = scalar_lea.hbm %s1, %s358
          %s361 = sshll.u32 %s353, 4
          %s362 = int_to_ptr.vmem [resolvable:$true] %s361
          %364 = dma.hbm_to_vmem [thread:$0]  %s359, 64, %s362, %s350
        $region52: #{tpu_custom_call.1} parent=43 // pred_fallthru
          _
        // Predicated region
        $region53: #{tpu_custom_call.1} parent=43 // pred_check
          %p365 = pneg %p98
        $region54: #{tpu_custom_call.1} parent=43 // pred_check_branch
          %367 = sbr.rel (%p365) target = $region56
        $region55: #{tpu_custom_call.1} parent=43 // pred_region
          %s368 = sand.u32 %s88, 1
          %s369 = sand.u32 %s88, 1
          %s370 = smul.addr %s369, 64
          %s371 = scalar_lea.vmem [#allocation8], %s370
          %s372 = smul.u32 4, %s26
          %s373 = smul.addr %s372, 8
          %s374 = scalar_lea.vmem %s2, %s373
          // Predicated region
          $region57: #{tpu_custom_call.1} parent=55 // pred_check
            _
          $region58: #{tpu_custom_call.1} parent=55 // pred_check_branch
            %376 = sbr.rel (0) target = $region60
          $region59: #{tpu_custom_call.1} parent=55 // pred_region
            // Predicated region
            $region61: #{tpu_custom_call.1} parent=59 // pred_check
              _
            $region62: #{tpu_custom_call.1} parent=59 // pred_check_branch
              %378 = sbr.rel (0) target = $region64
            $region63: #{tpu_custom_call.1} parent=59 // pred_region
              loop: start=0, step=1, limit=1
              $region65: #{tpu_custom_call.1} parent=63 // loop_pre_header
                _
              $region66: #{tpu_custom_call.1} parent=63 // loop_header
                %s380 = sphi 0, %s384
                %p381 = scmp.ge.s32.totalorder %s380, 1
                %s385 = sphi %s374, %s374
                %s386 = sphi %s371, %s371
              $region67: #{tpu_custom_call.1} parent=63 // loop_header_branch
                %383 = sbr.rel (%p381) target = $region71
              $region68: #{tpu_custom_call.1} parent=63 // loop_body
                %v387 = vld [vmem:[%s385] sm:$0xff]
                %388 = vst [vmem:[%s386] sm:$0xff] %v387
                %v389 = vld [vmem:[%s385 + $0x8] sm:$0xff]
                %390 = vst [vmem:[%s386 + $0x8] sm:$0xff] %v389
                %v391 = vld [vmem:[%s385 + $0x10] sm:$0xff]
                %392 = vst [vmem:[%s386 + $0x10] sm:$0xff] %v391
                %v393 = vld [vmem:[%s385 + $0x18] sm:$0xff]
                %394 = vst [vmem:[%s386 + $0x18] sm:$0xff] %v393
                %v395 = vld [vmem:[%s385 + $0x40] sm:$0xff]
                %396 = vst [vmem:[%s386 + $0x20] sm:$0xff] %v395
                %v397 = vld [vmem:[%s385 + $0x48] sm:$0xff]
                %398 = vst [vmem:[%s386 + $0x28] sm:$0xff] %v397
                %v399 = vld [vmem:[%s385 + $0x50] sm:$0xff]
                %400 = vst [vmem:[%s386 + $0x30] sm:$0xff] %v399
                %v401 = vld [vmem:[%s385 + $0x58] sm:$0xff]
                %402 = vst [vmem:[%s386 + $0x38] sm:$0xff] %v401
              $region69: #{tpu_custom_call.1} parent=63 // loop_footer
                %s384 = sadd.s32 1, %s380
              $region70: #{tpu_custom_call.1} parent=63 // loop_footer_branch
                %379 = sbr.rel target = $region66
              $region71: #{tpu_custom_call.1} parent=63 // loop_exit
                _
            $region64: #{tpu_custom_call.1} parent=59 // pred_fallthru
              _
            // Predicated region
            $region72: #{tpu_custom_call.1} parent=59 // pred_check
              _
            $region73: #{tpu_custom_call.1} parent=59 // pred_check_branch
              %404 = sbr.rel target = $region75
            $region74: #{tpu_custom_call.1} parent=59 // pred_region
              _
            $region75: #{tpu_custom_call.1} parent=59 // pred_fallthru
              _
          $region60: #{tpu_custom_call.1} parent=55 // pred_fallthru
            _
          %405 = vnop
        $region56: #{tpu_custom_call.1} parent=43 // pred_fallthru
          _
      $region44: #{tpu_custom_call.1} parent=5 // pred_fallthru
        _
      %p406 = scmp.le.s32.totalorder 1, %s26
      %p407 = scmp.lt.s32.totalorder %s26, 3
      %p408 = pnand %p406, %p407
      %p409 = pneg %p408
      // Predicated region
      $region76: #{tpu_custom_call.1} parent=5 // pred_check
        _
      $region77: #{tpu_custom_call.1} parent=5 // pred_check_branch
        %411 = sbr.rel (%p408) target = $region79
      $region78: #{tpu_custom_call.1} parent=5 // pred_region
        %s412 = ssub.s32 %s26, 1
        %s413 = sand.u32 %s39, 1
        %s414 = scalar_lea.sflag [#allocation4], %s413
        %s415 = sand.u32 %s39, 1
        %s416 = smul.addr %s415, 4
        %s417 = scalar_lea.vmem [#allocation3], %s416
        // Predicated region
        $region80: #{tpu_custom_call.1} parent=78 // pred_check
          %p418 = pneg %p52
        $region81: #{tpu_custom_call.1} parent=78 // pred_check_branch
          %420 = sbr.rel (%p418) target = $region83
        $region82: #{tpu_custom_call.1} parent=78 // pred_region
          %421 = dma.done %s414, 64
        $region83: #{tpu_custom_call.1} parent=78 // pred_fallthru
          _
        %s422 = sand.u32 %s31, 1
        %s423 = scalar_lea.sflag [#allocation7], %s422
        %s424 = sand.u32 %s65, 1
        %s425 = smul.addr %s424, 4
        %s426 = scalar_lea.vmem [#allocation6], %s425
        // Predicated region
        $region84: #{tpu_custom_call.1} parent=78 // pred_check
          %p427 = pneg %p78
        $region85: #{tpu_custom_call.1} parent=78 // pred_check_branch
          %429 = sbr.rel (%p427) target = $region87
        $region86: #{tpu_custom_call.1} parent=78 // pred_region
          %430 = dma.done %s423, 64
        $region87: #{tpu_custom_call.1} parent=78 // pred_fallthru
          _
        %s431 = sand.u32 %s91, 1
        %s432 = sand.u32 %s91, 1
        %s433 = smul.addr %s432, 64
        %s434 = scalar_lea.vmem [#allocation8], %s433
        // Predicated region
        $region88: #{tpu_custom_call.1} parent=78 // pred_check
          %p435 = pneg %p104
        $region89: #{tpu_custom_call.1} parent=78 // pred_check_branch
          %437 = sbr.rel (%p435) target = $region91
        $region90: #{tpu_custom_call.1} parent=78 // pred_region
          _
        $region91: #{tpu_custom_call.1} parent=78 // pred_fallthru
          _
        // Predicated region
        $region92: #{tpu_custom_call.1} parent=78 // pred_check
          %p438 = pneg %p146
        $region93: #{tpu_custom_call.1} parent=78 // pred_check_branch
          %440 = sbr.rel (%p438) target = $region95
        $region94: #{tpu_custom_call.1} parent=78 // pred_region
          %441 = dma.done [#allocation7], 512
        $region95: #{tpu_custom_call.1} parent=78 // pred_fallthru
          _
        %s442 = sand.u32 %s39, 1
        %s443 = scalar_lea.sflag [#allocation4], %s442
        %s444 = sand.u32 %s39, 1
        %s445 = smul.addr %s444, 4
        %s446 = scalar_lea.vmem [#allocation3], %s445
        %p447 = pneg %p52
        %p448 = pneg %p49
        %s449 = sand.u32 %s31, 1
        %s450 = scalar_lea.sflag [#allocation7], %s449
        %s451 = sand.u32 %s65, 1
        %s452 = smul.addr %s451, 4
        %s453 = scalar_lea.vmem [#allocation6], %s452
        %p454 = pneg %p78
        %p455 = pneg %p75
        %s456 = sand.u32 %s91, 1
        %s457 = sand.u32 %s91, 1
        %s458 = smul.addr %s457, 64
        %s459 = scalar_lea.vmem [#allocation8], %s458
        %p460 = pneg %p104
        %p461 = pneg %p101
        %p462 = pneg %p125
        %p463 = pneg %p122
        %p464 = pneg %p146
        %p465 = pneg %p143
        %p466 = pneg %p167
        %p467 = pneg %p164
        %p468 = pneg %p188
        %p469 = pneg %p185
        %p470 = pneg %p209
        %p471 = pneg %p206
        %p472 = pneg %p230
        %p473 = pneg %p227
        %p474 = pneg %p251
        %p475 = pneg %p248
        %p476 = pneg %p277
        %p477 = pneg %p274
        %s478 = sand.u32 %s264, 1
        %s479 = scalar_lea.sflag [#allocation5], %s478
        %s480 = sand.u32 %s264, 1
        %s481 = smul.addr %s480, 4
        %s482 = scalar_lea.vmem [#allocation10], %s481
        %s483 = smul.u32 4, %s31
        %s484 = smul.u32 4, %s31
        %s485 = smul.u32 4, %s31
        %s486 = smul.u32 4, %s31
        %v488 = vld [vmem:[%s417] sm:$0xf]
        %v489 = vlaneseq
        %v490 = vshrl.u32 %v489, 7
        %v491 = vadd.s32 %v490, 8
        %v492 = vadd.s32 %v490, 16
        %v493 = vadd.s32 %v490, 24
        %v494 = vadd.s32 %v490, 32
        %v495 = vadd.s32 %v490, 40
        %v496 = vadd.s32 %v490, 48
        %v497 = vadd.s32 %v490, 56
        %v498 = vlaneseq
        %v499 = vshrl.u32 %v498, 7
        %v500 = vsub.s32 0, %v499
        %v501 = vrot.slane %v488, %v500
        %v502 = vlaneseq
        %v503 = vshrl.u32 %v502, 7
        %v504 = vsub.s32 1, %v503
        %v505 = vrot.slane %v488, %v504
        %v506 = vlaneseq
        %v507 = vshrl.u32 %v506, 7
        %v508 = vsub.s32 2, %v507
        %v509 = vrot.slane %v488, %v508
        %v510 = vlaneseq
        %v511 = vshrl.u32 %v510, 7
        %v512 = vsub.s32 3, %v511
        %v513 = vrot.slane %v488, %v512
        %vm514 = vcmp.eq.s32.totalorder %v490, %v501
        %vm515 = vcmp.eq.s32.totalorder %v490, %v505
        %vm516 = vcmp.eq.s32.totalorder %v490, %v509
        %vm517 = vcmp.eq.s32.totalorder %v490, %v513
        %vm518 = vcmp.eq.s32.totalorder %v491, %v501
        %vm519 = vcmp.eq.s32.totalorder %v491, %v505
        %vm520 = vcmp.eq.s32.totalorder %v491, %v509
        %vm521 = vcmp.eq.s32.totalorder %v491, %v513
        %vm522 = vcmp.eq.s32.totalorder %v492, %v501
        %vm523 = vcmp.eq.s32.totalorder %v492, %v505
        %vm524 = vcmp.eq.s32.totalorder %v492, %v509
        %vm525 = vcmp.eq.s32.totalorder %v492, %v513
        %vm526 = vcmp.eq.s32.totalorder %v493, %v501
        %vm527 = vcmp.eq.s32.totalorder %v493, %v505
        %vm528 = vcmp.eq.s32.totalorder %v493, %v509
        %vm529 = vcmp.eq.s32.totalorder %v493, %v513
        %vm530 = vcmp.eq.s32.totalorder %v494, %v501
        %vm531 = vcmp.eq.s32.totalorder %v494, %v505
        %vm532 = vcmp.eq.s32.totalorder %v494, %v509
        %vm533 = vcmp.eq.s32.totalorder %v494, %v513
        %vm534 = vcmp.eq.s32.totalorder %v495, %v501
        %vm535 = vcmp.eq.s32.totalorder %v495, %v505
        %vm536 = vcmp.eq.s32.totalorder %v495, %v509
        %vm537 = vcmp.eq.s32.totalorder %v495, %v513
        %vm538 = vcmp.eq.s32.totalorder %v496, %v501
        %vm539 = vcmp.eq.s32.totalorder %v496, %v505
        %vm540 = vcmp.eq.s32.totalorder %v496, %v509
        %vm541 = vcmp.eq.s32.totalorder %v496, %v513
        %vm542 = vcmp.eq.s32.totalorder %v497, %v501
        %vm543 = vcmp.eq.s32.totalorder %v497, %v505
        %vm544 = vcmp.eq.s32.totalorder %v497, %v509
        %vm545 = vcmp.eq.s32.totalorder %v497, %v513
        %v546 = vsel %vm514, 1, 0
        %v547 = vsel %vm515, 1, 0
        %v548 = vsel %vm516, 1, 0
        %v549 = vsel %vm517, 1, 0
        %v550 = vsel %vm518, 1, 0
        %v551 = vsel %vm519, 1, 0
        %v552 = vsel %vm520, 1, 0
        %v553 = vsel %vm521, 1, 0
        %v554 = vsel %vm522, 1, 0
        %v555 = vsel %vm523, 1, 0
        %v556 = vsel %vm524, 1, 0
        %v557 = vsel %vm525, 1, 0
        %v558 = vsel %vm526, 1, 0
        %v559 = vsel %vm527, 1, 0
        %v560 = vsel %vm528, 1, 0
        %v561 = vsel %vm529, 1, 0
        %v562 = vsel %vm530, 1, 0
        %v563 = vsel %vm531, 1, 0
        %v564 = vsel %vm532, 1, 0
        %v565 = vsel %vm533, 1, 0
        %v566 = vsel %vm534, 1, 0
        %v567 = vsel %vm535, 1, 0
        %v568 = vsel %vm536, 1, 0
        %v569 = vsel %vm537, 1, 0
        %v570 = vsel %vm538, 1, 0
        %v571 = vsel %vm539, 1, 0
        %v572 = vsel %vm540, 1, 0
        %v573 = vsel %vm541, 1, 0
        %v574 = vsel %vm542, 1, 0
        %v575 = vsel %vm543, 1, 0
        %v576 = vsel %vm544, 1, 0
        %v577 = vsel %vm545, 1, 0
        %v578 = vcvt.s32.f32 %v546
        %v579 = vcvt.s32.f32 %v547
        %v580 = vcvt.s32.f32 %v548
        %v581 = vcvt.s32.f32 %v549
        %v582 = vcvt.s32.f32 %v550
        %v583 = vcvt.s32.f32 %v551
        %v584 = vcvt.s32.f32 %v552
        %v585 = vcvt.s32.f32 %v553
        %v586 = vcvt.s32.f32 %v554
        %v587 = vcvt.s32.f32 %v555
        %v588 = vcvt.s32.f32 %v556
        %v589 = vcvt.s32.f32 %v557
        %v590 = vcvt.s32.f32 %v558
        %v591 = vcvt.s32.f32 %v559
        %v592 = vcvt.s32.f32 %v560
        %v593 = vcvt.s32.f32 %v561
        %v594 = vcvt.s32.f32 %v562
        %v595 = vcvt.s32.f32 %v563
        %v596 = vcvt.s32.f32 %v564
        %v597 = vcvt.s32.f32 %v565
        %v598 = vcvt.s32.f32 %v566
        %v599 = vcvt.s32.f32 %v567
        %v600 = vcvt.s32.f32 %v568
        %v601 = vcvt.s32.f32 %v569
        %v602 = vcvt.s32.f32 %v570
        %v603 = vcvt.s32.f32 %v571
        %v604 = vcvt.s32.f32 %v572
        %v605 = vcvt.s32.f32 %v573
        %v606 = vcvt.s32.f32 %v574
        %v607 = vcvt.s32.f32 %v575
        %v608 = vcvt.s32.f32 %v576
        %v609 = vcvt.s32.f32 %v577
        %v610 = vld [vmem:[%s3] sm:$0xff]
        %v611 = vld [vmem:[%s3 + $0x8] sm:$0xff]
        %v612 = vld [vmem:[%s3 + $0x10] sm:$0xff]
        %v613 = vld [vmem:[%s3 + $0x18] sm:$0xff]
        %vm614 = vcmask 523264
        %v616 = vsel %vm614, %v610, 0
        %v619 = vsel %vm614, %v611, 0
        %v622 = vsel %vm614, %v612, 0
        %v625 = vsel %vm614, %v613, 0
        %627 = vmatprep.subr.mxu0 0.0
        %628 = vmatpush1.msra.mxu0 0.0
        %629 = vmatprep.subr.mxu0 0.0
        %630 = vmatpush1.msra.mxu0 0.0
        %631 = vmatprep.subr.mxu0 0.0
        %632 = vmatpush1.msra.mxu0 0.0
        %633 = vmatprep.subr.mxu0 0.0
        %634 = vmatpush1.msra.mxu0 0.0
        %635 = vmatprep.subr.mxu0 0.0
        %636 = vmatpush1.msra.mxu0 0.0
        %637 = vmatprep.subr.mxu0 0.0
        %638 = vmatpush1.msra.mxu0 0.0
        %639 = vmatprep.subr.mxu0 0.0
        %640 = vmatpush1.msra.mxu0 0.0
        %641 = vmatprep.subr.mxu0 0.0
        %642 = vmatpush1.msra.mxu0 0.0
        %v643 = vand.u32 %v607, 4294901760
        %644 = vmatprep.subr.mxu0 %v643
        %v645 = vand.u32 %v606, 4294901760
        %646 = vmatpush1.msra.mxu0 %v645
        %v647 = vand.u32 %v603, 4294901760
        %648 = vmatprep.subr.mxu0 %v647
        %v649 = vand.u32 %v602, 4294901760
        %650 = vmatpush1.msra.mxu0 %v649
        %v651 = vand.u32 %v599, 4294901760
        %652 = vmatprep.subr.mxu0 %v651
        %v653 = vand.u32 %v598, 4294901760
        %654 = vmatpush1.msra.mxu0 %v653
        %v655 = vand.u32 %v595, 4294901760
        %656 = vmatprep.subr.mxu0 %v655
        %v657 = vand.u32 %v594, 4294901760
        %658 = vmatpush1.msra.mxu0 %v657
        %v659 = vand.u32 %v591, 4294901760
        %660 = vmatprep.subr.mxu0 %v659
        %v661 = vand.u32 %v590, 4294901760
        %662 = vmatpush1.msra.mxu0 %v661
        %v663 = vand.u32 %v587, 4294901760
        %664 = vmatprep.subr.mxu0 %v663
        %v665 = vand.u32 %v586, 4294901760
        %666 = vmatpush1.msra.mxu0 %v665
        %v667 = vand.u32 %v583, 4294901760
        %668 = vmatprep.subr.mxu0 %v667
        %v669 = vand.u32 %v582, 4294901760
        %670 = vmatpush1.msra.mxu0 %v669
        %v671 = vand.u32 %v579, 4294901760
        %672 = vmatprep.subr.mxu0 %v671
        %v673 = vand.u32 %v578, 4294901760
        %674 = vmatpush1.msra.mxu0 %v673
        %675 = vmatprep.subr.mxu0 0.0
        %676 = vmatpush2.msra.mxu0 0.0
        %677 = vmatprep.subr.mxu0 0.0
        %678 = vmatpush2.msra.mxu0 0.0
        %679 = vmatprep.subr.mxu0 0.0
        %680 = vmatpush2.msra.mxu0 0.0
        %681 = vmatprep.subr.mxu0 0.0
        %682 = vmatpush2.msra.mxu0 0.0
        %683 = vmatprep.subr.mxu0 0.0
        %684 = vmatpush2.msra.mxu0 0.0
        %685 = vmatprep.subr.mxu0 0.0
        %686 = vmatpush2.msra.mxu0 0.0
        %687 = vmatprep.subr.mxu0 0.0
        %688 = vmatpush2.msra.mxu0 0.0
        %689 = vmatprep.subr.mxu0 0.0
        %690 = vmatpush2.msra.mxu0 0.0
        %691 = vmatprep.subr.mxu0 0.0
        %692 = vmatpush2.msra.mxu0 0.0
        %693 = vmatprep.subr.mxu0 0.0
        %694 = vmatpush2.msra.mxu0 0.0
        %695 = vmatprep.subr.mxu0 0.0
        %696 = vmatpush2.msra.mxu0 0.0
        %697 = vmatprep.subr.mxu0 0.0
        %698 = vmatpush2.msra.mxu0 0.0
        %699 = vmatprep.subr.mxu0 0.0
        %700 = vmatpush2.msra.mxu0 0.0
        %701 = vmatprep.subr.mxu0 0.0
        %702 = vmatpush2.msra.mxu0 0.0
        %703 = vmatprep.subr.mxu0 0.0
        %704 = vmatpush2.msra.mxu0 0.0
        %705 = vmatprep.subr.mxu0 0.0
        %706 = vmatpush2.msra.mxu0 0.0
        %707 = vmatprep.mubr.f32.mxu0 0.0
        %v708 = vand.u32 %v616, 4294901760
        %v709 = vsub.f32 %v616, %v708
        %v710 = vand.u32 %v709, 4294901760
        %v711 = vsub.f32 %v709, %v710
        %v712 = vand.u32 %v711, 4294901760
        %713 = vmatmul.mubr.f32.gmra.mxu0 %v712
        %v714 = vpop.f32.mrf.mxu0
        %v715 = vadd.f32 0.0, %v714
        %v716 = vpop.f32.mrf.mxu0
        %v717 = vadd.f32 0.0, %v716
        %718 = vmatprep.mubr.f32.mxu0 0.0
        %v719 = vand.u32 %v619, 4294901760
        %v720 = vsub.f32 %v619, %v719
        %v721 = vand.u32 %v720, 4294901760
        %v722 = vsub.f32 %v720, %v721
        %v723 = vand.u32 %v722, 4294901760
        %724 = vmatmul.mubr.f32.gmra.mxu0 %v723
        %v725 = vpop.f32.mrf.mxu0
        %v726 = vadd.f32 0.0, %v725
        %v727 = vpop.f32.mrf.mxu0
        %v728 = vadd.f32 0.0, %v727
        %729 = vmatprep.mubr.f32.mxu0 0.0
        %v730 = vand.u32 %v622, 4294901760
        %v731 = vsub.f32 %v622, %v730
        %v732 = vand.u32 %v731, 4294901760
        %v733 = vsub.f32 %v731, %v732
        %v734 = vand.u32 %v733, 4294901760
        %735 = vmatmul.mubr.f32.gmra.mxu0 %v734
        %v736 = vpop.f32.mrf.mxu0
        %v737 = vadd.f32 0.0, %v736
        %v738 = vpop.f32.mrf.mxu0
        %v739 = vadd.f32 0.0, %v738
        %740 = vmatprep.mubr.f32.mxu0 0.0
        %v741 = vand.u32 %v625, 4294901760
        %v742 = vsub.f32 %v625, %v741
        %v743 = vand.u32 %v742, 4294901760
        %v744 = vsub.f32 %v742, %v743
        %v745 = vand.u32 %v744, 4294901760
        %746 = vmatmul.mubr.f32.gmra.mxu0 %v745
        %v747 = vpop.f32.mrf.mxu0
        %v748 = vadd.f32 0.0, %v747
        %v749 = vpop.f32.mrf.mxu0
        %v750 = vadd.f32 0.0, %v749
        %751 = vdwg.mxu0
        %752 = vmatprep.subr.mxu0 0.0
        %753 = vmatpush1.msra.mxu0 0.0
        %754 = vmatprep.subr.mxu0 0.0
        %755 = vmatpush1.msra.mxu0 0.0
        %756 = vmatprep.subr.mxu0 0.0
        %757 = vmatpush1.msra.mxu0 0.0
        %758 = vmatprep.subr.mxu0 0.0
        %759 = vmatpush1.msra.mxu0 0.0
        %760 = vmatprep.subr.mxu0 0.0
        %761 = vmatpush1.msra.mxu0 0.0
        %762 = vmatprep.subr.mxu0 0.0
        %763 = vmatpush1.msra.mxu0 0.0
        %764 = vmatprep.subr.mxu0 0.0
        %765 = vmatpush1.msra.mxu0 0.0
        %766 = vmatprep.subr.mxu0 0.0
        %767 = vmatpush1.msra.mxu0 0.0
        %v768 = vand.u32 %v607, 4294901760
        %v769 = vsub.f32 %v607, %v768
        %v770 = vand.u32 %v769, 4294901760
        %v771 = vsub.f32 %v769, %v770
        %v772 = vand.u32 %v771, 4294901760
        %773 = vmatprep.subr.mxu0 %v772
        %v774 = vand.u32 %v606, 4294901760
        %v775 = vsub.f32 %v606, %v774
        %v776 = vand.u32 %v775, 4294901760
        %v777 = vsub.f32 %v775, %v776
        %v778 = vand.u32 %v777, 4294901760
        %779 = vmatpush1.msra.mxu0 %v778
        %v780 = vand.u32 %v603, 4294901760
        %v781 = vsub.f32 %v603, %v780
        %v782 = vand.u32 %v781, 4294901760
        %v783 = vsub.f32 %v781, %v782
        %v784 = vand.u32 %v783, 4294901760
        %785 = vmatprep.subr.mxu0 %v784
        %v786 = vand.u32 %v602, 4294901760
        %v787 = vsub.f32 %v602, %v786
        %v788 = vand.u32 %v787, 4294901760
        %v789 = vsub.f32 %v787, %v788
        %v790 = vand.u32 %v789, 4294901760
        %791 = vmatpush1.msra.mxu0 %v790
        %v792 = vand.u32 %v599, 4294901760
        %v793 = vsub.f32 %v599, %v792
        %v794 = vand.u32 %v793, 4294901760
        %v795 = vsub.f32 %v793, %v794
        %v796 = vand.u32 %v795, 4294901760
        %797 = vmatprep.subr.mxu0 %v796
        %v798 = vand.u32 %v598, 4294901760
        %v799 = vsub.f32 %v598, %v798
        %v800 = vand.u32 %v799, 4294901760
        %v801 = vsub.f32 %v799, %v800
        %v802 = vand.u32 %v801, 4294901760
        %803 = vmatpush1.msra.mxu0 %v802
        %v804 = vand.u32 %v595, 4294901760
        %v805 = vsub.f32 %v595, %v804
        %v806 = vand.u32 %v805, 4294901760
        %v807 = vsub.f32 %v805, %v806
        %v808 = vand.u32 %v807, 4294901760
        %809 = vmatprep.subr.mxu0 %v808
        %v810 = vand.u32 %v594, 4294901760
        %v811 = vsub.f32 %v594, %v810
        %v812 = vand.u32 %v811, 4294901760
        %v813 = vsub.f32 %v811, %v812
        %v814 = vand.u32 %v813, 4294901760
        %815 = vmatpush1.msra.mxu0 %v814
        %v816 = vand.u32 %v591, 4294901760
        %v817 = vsub.f32 %v591, %v816
        %v818 = vand.u32 %v817, 4294901760
        %v819 = vsub.f32 %v817, %v818
        %v820 = vand.u32 %v819, 4294901760
        %821 = vmatprep.subr.mxu0 %v820
        %v822 = vand.u32 %v590, 4294901760
        %v823 = vsub.f32 %v590, %v822
        %v824 = vand.u32 %v823, 4294901760
        %v825 = vsub.f32 %v823, %v824
        %v826 = vand.u32 %v825, 4294901760
        %827 = vmatpush1.msra.mxu0 %v826
        %v828 = vand.u32 %v587, 4294901760
        %v829 = vsub.f32 %v587, %v828
        %v830 = vand.u32 %v829, 4294901760
        %v831 = vsub.f32 %v829, %v830
        %v832 = vand.u32 %v831, 4294901760
        %833 = vmatprep.subr.mxu0 %v832
        %v834 = vand.u32 %v586, 4294901760
        %v835 = vsub.f32 %v586, %v834
        %v836 = vand.u32 %v835, 4294901760
        %v837 = vsub.f32 %v835, %v836
        %v838 = vand.u32 %v837, 4294901760
        %839 = vmatpush1.msra.mxu0 %v838
        %v840 = vand.u32 %v583, 4294901760
        %v841 = vsub.f32 %v583, %v840
        %v842 = vand.u32 %v841, 4294901760
        %v843 = vsub.f32 %v841, %v842
        %v844 = vand.u32 %v843, 4294901760
        %845 = vmatprep.subr.mxu0 %v844
        %v846 = vand.u32 %v582, 4294901760
        %v847 = vsub.f32 %v582, %v846
        %v848 = vand.u32 %v847, 4294901760
        %v849 = vsub.f32 %v847, %v848
        %v850 = vand.u32 %v849, 4294901760
        %851 = vmatpush1.msra.mxu0 %v850
        %v852 = vand.u32 %v579, 4294901760
        %v853 = vsub.f32 %v579, %v852
        %v854 = vand.u32 %v853, 4294901760
        %v855 = vsub.f32 %v853, %v854
        %v856 = vand.u32 %v855, 4294901760
        %857 = vmatprep.subr.mxu0 %v856
        %v858 = vand.u32 %v578, 4294901760
        %v859 = vsub.f32 %v578, %v858
        %v860 = vand.u32 %v859, 4294901760
        %v861 = vsub.f32 %v859, %v860
        %v862 = vand.u32 %v861, 4294901760
        %863 = vmatpush1.msra.mxu0 %v862
        %864 = vmatprep.subr.mxu0 0.0
        %865 = vmatpush2.msra.mxu0 0.0
        %866 = vmatprep.subr.mxu0 0.0
        %867 = vmatpush2.msra.mxu0 0.0
        %868 = vmatprep.subr.mxu0 0.0
        %869 = vmatpush2.msra.mxu0 0.0
        %870 = vmatprep.subr.mxu0 0.0
        %871 = vmatpush2.msra.mxu0 0.0
        %872 = vmatprep.subr.mxu0 0.0
        %873 = vmatpush2.msra.mxu0 0.0
        %874 = vmatprep.subr.mxu0 0.0
        %875 = vmatpush2.msra.mxu0 0.0
        %876 = vmatprep.subr.mxu0 0.0
        %877 = vmatpush2.msra.mxu0 0.0
        %878 = vmatprep.subr.mxu0 0.0
        %879 = vmatpush2.msra.mxu0 0.0
        %880 = vmatprep.subr.mxu0 0.0
        %881 = vmatpush2.msra.mxu0 0.0
        %882 = vmatprep.subr.mxu0 0.0
        %883 = vmatpush2.msra.mxu0 0.0
        %884 = vmatprep.subr.mxu0 0.0
        %885 = vmatpush2.msra.mxu0 0.0
        %886 = vmatprep.subr.mxu0 0.0
        %887 = vmatpush2.msra.mxu0 0.0
        %888 = vmatprep.subr.mxu0 0.0
        %889 = vmatpush2.msra.mxu0 0.0
        %890 = vmatprep.subr.mxu0 0.0
        %891 = vmatpush2.msra.mxu0 0.0
        %892 = vmatprep.subr.mxu0 0.0
        %893 = vmatpush2.msra.mxu0 0.0
        %894 = vmatprep.subr.mxu0 0.0
        %895 = vmatpush2.msra.mxu0 0.0
        %896 = vmatprep.mubr.f32.mxu0 0.0
        %v897 = vand.u32 %v616, 4294901760
        %898 = vmatmul.mubr.f32.gmra.mxu0 %v897
        %v899 = vpop.f32.mrf.mxu0
        %v900 = vadd.f32 %v715, %v899
        %v901 = vpop.f32.mrf.mxu0
        %v902 = vadd.f32 %v717, %v901
        %903 = vmatprep.mubr.f32.mxu0 0.0
        %v904 = vand.u32 %v619, 4294901760
        %905 = vmatmul.mubr.f32.gmra.mxu0 %v904
        %v906 = vpop.f32.mrf.mxu0
        %v907 = vadd.f32 %v726, %v906
        %v908 = vpop.f32.mrf.mxu0
        %v909 = vadd.f32 %v728, %v908
        %910 = vmatprep.mubr.f32.mxu0 0.0
        %v911 = vand.u32 %v622, 4294901760
        %912 = vmatmul.mubr.f32.gmra.mxu0 %v911
        %v913 = vpop.f32.mrf.mxu0
        %v914 = vadd.f32 %v737, %v913
        %v915 = vpop.f32.mrf.mxu0
        %v916 = vadd.f32 %v739, %v915
        %917 = vmatprep.mubr.f32.mxu0 0.0
        %v918 = vand.u32 %v625, 4294901760
        %919 = vmatmul.mubr.f32.gmra.mxu0 %v918
        %v920 = vpop.f32.mrf.mxu0
        %v921 = vadd.f32 %v748, %v920
        %v922 = vpop.f32.mrf.mxu0
        %v923 = vadd.f32 %v750, %v922
        %924 = vdwg.mxu0
        %925 = vmatprep.subr.mxu0 0.0
        %926 = vmatpush1.msra.mxu0 0.0
        %927 = vmatprep.subr.mxu0 0.0
        %928 = vmatpush1.msra.mxu0 0.0
        %929 = vmatprep.subr.mxu0 0.0
        %930 = vmatpush1.msra.mxu0 0.0
        %931 = vmatprep.subr.mxu0 0.0
        %932 = vmatpush1.msra.mxu0 0.0
        %933 = vmatprep.subr.mxu0 0.0
        %934 = vmatpush1.msra.mxu0 0.0
        %935 = vmatprep.subr.mxu0 0.0
        %936 = vmatpush1.msra.mxu0 0.0
        %937 = vmatprep.subr.mxu0 0.0
        %938 = vmatpush1.msra.mxu0 0.0
        %939 = vmatprep.subr.mxu0 0.0
        %940 = vmatpush1.msra.mxu0 0.0
        %v941 = vand.u32 %v607, 4294901760
        %v942 = vsub.f32 %v607, %v941
        %943 = vmatprep.subr.mxu0 %v942
        %v944 = vand.u32 %v606, 4294901760
        %v945 = vsub.f32 %v606, %v944
        %946 = vmatpush1.msra.mxu0 %v945
        %v947 = vand.u32 %v603, 4294901760
        %v948 = vsub.f32 %v603, %v947
        %949 = vmatprep.subr.mxu0 %v948
        %v950 = vand.u32 %v602, 4294901760
        %v951 = vsub.f32 %v602, %v950
        %952 = vmatpush1.msra.mxu0 %v951
        %v953 = vand.u32 %v599, 4294901760
        %v954 = vsub.f32 %v599, %v953
        %955 = vmatprep.subr.mxu0 %v954
        %v956 = vand.u32 %v598, 4294901760
        %v957 = vsub.f32 %v598, %v956
        %958 = vmatpush1.msra.mxu0 %v957
        %v959 = vand.u32 %v595, 4294901760
        %v960 = vsub.f32 %v595, %v959
        %961 = vmatprep.subr.mxu0 %v960
        %v962 = vand.u32 %v594, 4294901760
        %v963 = vsub.f32 %v594, %v962
        %964 = vmatpush1.msra.mxu0 %v963
        %v965 = vand.u32 %v591, 4294901760
        %v966 = vsub.f32 %v591, %v965
        %967 = vmatprep.subr.mxu0 %v966
        %v968 = vand.u32 %v590, 4294901760
        %v969 = vsub.f32 %v590, %v968
        %970 = vmatpush1.msra.mxu0 %v969
        %v971 = vand.u32 %v587, 4294901760
        %v972 = vsub.f32 %v587, %v971
        %973 = vmatprep.subr.mxu0 %v972
        %v974 = vand.u32 %v586, 4294901760
        %v975 = vsub.f32 %v586, %v974
        %976 = vmatpush1.msra.mxu0 %v975
        %v977 = vand.u32 %v583, 4294901760
        %v978 = vsub.f32 %v583, %v977
        %979 = vmatprep.subr.mxu0 %v978
        %v980 = vand.u32 %v582, 4294901760
        %v981 = vsub.f32 %v582, %v980
        %982 = vmatpush1.msra.mxu0 %v981
        %v983 = vand.u32 %v579, 4294901760
        %v984 = vsub.f32 %v579, %v983
        %985 = vmatprep.subr.mxu0 %v984
        %v986 = vand.u32 %v578, 4294901760
        %v987 = vsub.f32 %v578, %v986
        %988 = vmatpush1.msra.mxu0 %v987
        %989 = vmatprep.subr.mxu0 0.0
        %990 = vmatpush2.msra.mxu0 0.0
        %991 = vmatprep.subr.mxu0 0.0
        %992 = vmatpush2.msra.mxu0 0.0
        %993 = vmatprep.subr.mxu0 0.0
        %994 = vmatpush2.msra.mxu0 0.0
        %995 = vmatprep.subr.mxu0 0.0
        %996 = vmatpush2.msra.mxu0 0.0
        %997 = vmatprep.subr.mxu0 0.0
        %998 = vmatpush2.msra.mxu0 0.0
        %999 = vmatprep.subr.mxu0 0.0
        %1000 = vmatpush2.msra.mxu0 0.0
        %1001 = vmatprep.subr.mxu0 0.0
        %1002 = vmatpush2.msra.mxu0 0.0
        %1003 = vmatprep.subr.mxu0 0.0
        %1004 = vmatpush2.msra.mxu0 0.0
        %1005 = vmatprep.subr.mxu0 0.0
        %1006 = vmatpush2.msra.mxu0 0.0
        %1007 = vmatprep.subr.mxu0 0.0
        %1008 = vmatpush2.msra.mxu0 0.0
        %1009 = vmatprep.subr.mxu0 0.0
        %1010 = vmatpush2.msra.mxu0 0.0
        %1011 = vmatprep.subr.mxu0 0.0
        %1012 = vmatpush2.msra.mxu0 0.0
        %1013 = vmatprep.subr.mxu0 0.0
        %1014 = vmatpush2.msra.mxu0 0.0
        %1015 = vmatprep.subr.mxu0 0.0
        %1016 = vmatpush2.msra.mxu0 0.0
        %1017 = vmatprep.subr.mxu0 0.0
        %1018 = vmatpush2.msra.mxu0 0.0
        %1019 = vmatprep.subr.mxu0 0.0
        %1020 = vmatpush2.msra.mxu0 0.0
        %1021 = vmatprep.mubr.f32.mxu0 0.0
        %v1022 = vand.u32 %v616, 4294901760
        %v1023 = vsub.f32 %v616, %v1022
        %1024 = vmatmul.mubr.f32.gmra.mxu0 %v1023
        %v1025 = vpop.f32.mrf.mxu0
        %v1026 = vadd.f32 %v900, %v1025
        %v1027 = vpop.f32.mrf.mxu0
        %v1028 = vadd.f32 %v902, %v1027
        %1029 = vmatprep.mubr.f32.mxu0 0.0
        %v1030 = vand.u32 %v619, 4294901760
        %v1031 = vsub.f32 %v619, %v1030
        %1032 = vmatmul.mubr.f32.gmra.mxu0 %v1031
        %v1033 = vpop.f32.mrf.mxu0
        %v1034 = vadd.f32 %v907, %v1033
        %v1035 = vpop.f32.mrf.mxu0
        %v1036 = vadd.f32 %v909, %v1035
        %1037 = vmatprep.mubr.f32.mxu0 0.0
        %v1038 = vand.u32 %v622, 4294901760
        %v1039 = vsub.f32 %v622, %v1038
        %1040 = vmatmul.mubr.f32.gmra.mxu0 %v1039
        %v1041 = vpop.f32.mrf.mxu0
        %v1042 = vadd.f32 %v914, %v1041
        %v1043 = vpop.f32.mrf.mxu0
        %v1044 = vadd.f32 %v916, %v1043
        %1045 = vmatprep.mubr.f32.mxu0 0.0
        %v1046 = vand.u32 %v625, 4294901760
        %v1047 = vsub.f32 %v625, %v1046
        %1048 = vmatmul.mubr.f32.gmra.mxu0 %v1047
        %v1049 = vpop.f32.mrf.mxu0
        %v1050 = vadd.f32 %v921, %v1049
        %v1051 = vpop.f32.mrf.mxu0
        %v1052 = vadd.f32 %v923, %v1051
        %1053 = vdwg.mxu0
        %1054 = vmatprep.subr.mxu0 0.0
        %1055 = vmatpush1.msra.mxu0 0.0
        %1056 = vmatprep.subr.mxu0 0.0
        %1057 = vmatpush1.msra.mxu0 0.0
        %1058 = vmatprep.subr.mxu0 0.0
        %1059 = vmatpush1.msra.mxu0 0.0
        %1060 = vmatprep.subr.mxu0 0.0
        %1061 = vmatpush1.msra.mxu0 0.0
        %1062 = vmatprep.subr.mxu0 0.0
        %1063 = vmatpush1.msra.mxu0 0.0
        %1064 = vmatprep.subr.mxu0 0.0
        %1065 = vmatpush1.msra.mxu0 0.0
        %1066 = vmatprep.subr.mxu0 0.0
        %1067 = vmatpush1.msra.mxu0 0.0
        %1068 = vmatprep.subr.mxu0 0.0
        %1069 = vmatpush1.msra.mxu0 0.0
        %v1070 = vand.u32 %v607, 4294901760
        %1071 = vmatprep.subr.mxu0 %v1070
        %v1072 = vand.u32 %v606, 4294901760
        %1073 = vmatpush1.msra.mxu0 %v1072
        %v1074 = vand.u32 %v603, 4294901760
        %1075 = vmatprep.subr.mxu0 %v1074
        %v1076 = vand.u32 %v602, 4294901760
        %1077 = vmatpush1.msra.mxu0 %v1076
        %v1078 = vand.u32 %v599, 4294901760
        %1079 = vmatprep.subr.mxu0 %v1078
        %v1080 = vand.u32 %v598, 4294901760
        %1081 = vmatpush1.msra.mxu0 %v1080
        %v1082 = vand.u32 %v595, 4294901760
        %1083 = vmatprep.subr.mxu0 %v1082
        %v1084 = vand.u32 %v594, 4294901760
        %1085 = vmatpush1.msra.mxu0 %v1084
        %v1086 = vand.u32 %v591, 4294901760
        %1087 = vmatprep.subr.mxu0 %v1086
        %v1088 = vand.u32 %v590, 4294901760
        %1089 = vmatpush1.msra.mxu0 %v1088
        %v1090 = vand.u32 %v587, 4294901760
        %1091 = vmatprep.subr.mxu0 %v1090
        %v1092 = vand.u32 %v586, 4294901760
        %1093 = vmatpush1.msra.mxu0 %v1092
        %v1094 = vand.u32 %v583, 4294901760
        %1095 = vmatprep.subr.mxu0 %v1094
        %v1096 = vand.u32 %v582, 4294901760
        %1097 = vmatpush1.msra.mxu0 %v1096
        %v1098 = vand.u32 %v579, 4294901760
        %1099 = vmatprep.subr.mxu0 %v1098
        %v1100 = vand.u32 %v578, 4294901760
        %1101 = vmatpush1.msra.mxu0 %v1100
        %1102 = vmatprep.subr.mxu0 0.0
        %1103 = vmatpush2.msra.mxu0 0.0
        %1104 = vmatprep.subr.mxu0 0.0
        %1105 = vmatpush2.msra.mxu0 0.0
        %1106 = vmatprep.subr.mxu0 0.0
        %1107 = vmatpush2.msra.mxu0 0.0
        %1108 = vmatprep.subr.mxu0 0.0
        %1109 = vmatpush2.msra.mxu0 0.0
        %1110 = vmatprep.subr.mxu0 0.0
        %1111 = vmatpush2.msra.mxu0 0.0
        %1112 = vmatprep.subr.mxu0 0.0
        %1113 = vmatpush2.msra.mxu0 0.0
        %1114 = vmatprep.subr.mxu0 0.0
        %1115 = vmatpush2.msra.mxu0 0.0
        %1116 = vmatprep.subr.mxu0 0.0
        %1117 = vmatpush2.msra.mxu0 0.0
        %1118 = vmatprep.subr.mxu0 0.0
        %1119 = vmatpush2.msra.mxu0 0.0
        %1120 = vmatprep.subr.mxu0 0.0
        %1121 = vmatpush2.msra.mxu0 0.0
        %1122 = vmatprep.subr.mxu0 0.0
        %1123 = vmatpush2.msra.mxu0 0.0
        %1124 = vmatprep.subr.mxu0 0.0
        %1125 = vmatpush2.msra.mxu0 0.0
        %1126 = vmatprep.subr.mxu0 0.0
        %1127 = vmatpush2.msra.mxu0 0.0
        %1128 = vmatprep.subr.mxu0 0.0
        %1129 = vmatpush2.msra.mxu0 0.0
        %1130 = vmatprep.subr.mxu0 0.0
        %1131 = vmatpush2.msra.mxu0 0.0
        %1132 = vmatprep.subr.mxu0 0.0
        %1133 = vmatpush2.msra.mxu0 0.0
        %1134 = vmatprep.mubr.f32.mxu0 0.0
        %v1135 = vand.u32 %v616, 4294901760
        %v1136 = vsub.f32 %v616, %v1135
        %v1137 = vand.u32 %v1136, 4294901760
        %1138 = vmatmul.mubr.f32.gmra.mxu0 %v1137
        %v1139 = vpop.f32.mrf.mxu0
        %v1140 = vadd.f32 %v1026, %v1139
        %v1141 = vpop.f32.mrf.mxu0
        %v1142 = vadd.f32 %v1028, %v1141
        %1143 = vmatprep.mubr.f32.mxu0 0.0
        %v1144 = vand.u32 %v619, 4294901760
        %v1145 = vsub.f32 %v619, %v1144
        %v1146 = vand.u32 %v1145, 4294901760
        %1147 = vmatmul.mubr.f32.gmra.mxu0 %v1146
        %v1148 = vpop.f32.mrf.mxu0
        %v1149 = vadd.f32 %v1034, %v1148
        %v1150 = vpop.f32.mrf.mxu0
        %v1151 = vadd.f32 %v1036, %v1150
        %1152 = vmatprep.mubr.f32.mxu0 0.0
        %v1153 = vand.u32 %v622, 4294901760
        %v1154 = vsub.f32 %v622, %v1153
        %v1155 = vand.u32 %v1154, 4294901760
        %1156 = vmatmul.mubr.f32.gmra.mxu0 %v1155
        %v1157 = vpop.f32.mrf.mxu0
        %v1158 = vadd.f32 %v1042, %v1157
        %v1159 = vpop.f32.mrf.mxu0
        %v1160 = vadd.f32 %v1044, %v1159
        %1161 = vmatprep.mubr.f32.mxu0 0.0
        %v1162 = vand.u32 %v625, 4294901760
        %v1163 = vsub.f32 %v625, %v1162
        %v1164 = vand.u32 %v1163, 4294901760
        %1165 = vmatmul.mubr.f32.gmra.mxu0 %v1164
        %v1166 = vpop.f32.mrf.mxu0
        %v1167 = vadd.f32 %v1050, %v1166
        %v1168 = vpop.f32.mrf.mxu0
        %v1169 = vadd.f32 %v1052, %v1168
        %1170 = vdwg.mxu0
        %1171 = vmatprep.subr.mxu0 0.0
        %1172 = vmatpush1.msra.mxu0 0.0
        %1173 = vmatprep.subr.mxu0 0.0
        %1174 = vmatpush1.msra.mxu0 0.0
        %1175 = vmatprep.subr.mxu0 0.0
        %1176 = vmatpush1.msra.mxu0 0.0
        %1177 = vmatprep.subr.mxu0 0.0
        %1178 = vmatpush1.msra.mxu0 0.0
        %1179 = vmatprep.subr.mxu0 0.0
        %1180 = vmatpush1.msra.mxu0 0.0
        %1181 = vmatprep.subr.mxu0 0.0
        %1182 = vmatpush1.msra.mxu0 0.0
        %1183 = vmatprep.subr.mxu0 0.0
        %1184 = vmatpush1.msra.mxu0 0.0
        %1185 = vmatprep.subr.mxu0 0.0
        %1186 = vmatpush1.msra.mxu0 0.0
        %v1187 = vand.u32 %v607, 4294901760
        %v1188 = vsub.f32 %v607, %v1187
        %v1189 = vand.u32 %v1188, 4294901760
        %1190 = vmatprep.subr.mxu0 %v1189
        %v1191 = vand.u32 %v606, 4294901760
        %v1192 = vsub.f32 %v606, %v1191
        %v1193 = vand.u32 %v1192, 4294901760
        %1194 = vmatpush1.msra.mxu0 %v1193
        %v1195 = vand.u32 %v603, 4294901760
        %v1196 = vsub.f32 %v603, %v1195
        %v1197 = vand.u32 %v1196, 4294901760
        %1198 = vmatprep.subr.mxu0 %v1197
        %v1199 = vand.u32 %v602, 4294901760
        %v1200 = vsub.f32 %v602, %v1199
        %v1201 = vand.u32 %v1200, 4294901760
        %1202 = vmatpush1.msra.mxu0 %v1201
        %v1203 = vand.u32 %v599, 4294901760
        %v1204 = vsub.f32 %v599, %v1203
        %v1205 = vand.u32 %v1204, 4294901760
        %1206 = vmatprep.subr.mxu0 %v1205
        %v1207 = vand.u32 %v598, 4294901760
        %v1208 = vsub.f32 %v598, %v1207
        %v1209 = vand.u32 %v1208, 4294901760
        %1210 = vmatpush1.msra.mxu0 %v1209
        %v1211 = vand.u32 %v595, 4294901760
        %v1212 = vsub.f32 %v595, %v1211
        %v1213 = vand.u32 %v1212, 4294901760
        %1214 = vmatprep.subr.mxu0 %v1213
        %v1215 = vand.u32 %v594, 4294901760
        %v1216 = vsub.f32 %v594, %v1215
        %v1217 = vand.u32 %v1216, 4294901760
        %1218 = vmatpush1.msra.mxu0 %v1217
        %v1219 = vand.u32 %v591, 4294901760
        %v1220 = vsub.f32 %v591, %v1219
        %v1221 = vand.u32 %v1220, 4294901760
        %1222 = vmatprep.subr.mxu0 %v1221
        %v1223 = vand.u32 %v590, 4294901760
        %v1224 = vsub.f32 %v590, %v1223
        %v1225 = vand.u32 %v1224, 4294901760
        %1226 = vmatpush1.msra.mxu0 %v1225
        %v1227 = vand.u32 %v587, 4294901760
        %v1228 = vsub.f32 %v587, %v1227
        %v1229 = vand.u32 %v1228, 4294901760
        %1230 = vmatprep.subr.mxu0 %v1229
        %v1231 = vand.u32 %v586, 4294901760
        %v1232 = vsub.f32 %v586, %v1231
        %v1233 = vand.u32 %v1232, 4294901760
        %1234 = vmatpush1.msra.mxu0 %v1233
        %v1235 = vand.u32 %v583, 4294901760
        %v1236 = vsub.f32 %v583, %v1235
        %v1237 = vand.u32 %v1236, 4294901760
        %1238 = vmatprep.subr.mxu0 %v1237
        %v1239 = vand.u32 %v582, 4294901760
        %v1240 = vsub.f32 %v582, %v1239
        %v1241 = vand.u32 %v1240, 4294901760
        %1242 = vmatpush1.msra.mxu0 %v1241
        %v1243 = vand.u32 %v579, 4294901760
        %v1244 = vsub.f32 %v579, %v1243
        %v1245 = vand.u32 %v1244, 4294901760
        %1246 = vmatprep.subr.mxu0 %v1245
        %v1247 = vand.u32 %v578, 4294901760
        %v1248 = vsub.f32 %v578, %v1247
        %v1249 = vand.u32 %v1248, 4294901760
        %1250 = vmatpush1.msra.mxu0 %v1249
        %1251 = vmatprep.subr.mxu0 0.0
        %1252 = vmatpush2.msra.mxu0 0.0
        %1253 = vmatprep.subr.mxu0 0.0
        %1254 = vmatpush2.msra.mxu0 0.0
        %1255 = vmatprep.subr.mxu0 0.0
        %1256 = vmatpush2.msra.mxu0 0.0
        %1257 = vmatprep.subr.mxu0 0.0
        %1258 = vmatpush2.msra.mxu0 0.0
        %1259 = vmatprep.subr.mxu0 0.0
        %1260 = vmatpush2.msra.mxu0 0.0
        %1261 = vmatprep.subr.mxu0 0.0
        %1262 = vmatpush2.msra.mxu0 0.0
        %1263 = vmatprep.subr.mxu0 0.0
        %1264 = vmatpush2.msra.mxu0 0.0
        %1265 = vmatprep.subr.mxu0 0.0
        %1266 = vmatpush2.msra.mxu0 0.0
        %1267 = vmatprep.subr.mxu0 0.0
        %1268 = vmatpush2.msra.mxu0 0.0
        %1269 = vmatprep.subr.mxu0 0.0
        %1270 = vmatpush2.msra.mxu0 0.0
        %1271 = vmatprep.subr.mxu0 0.0
        %1272 = vmatpush2.msra.mxu0 0.0
        %1273 = vmatprep.subr.mxu0 0.0
        %1274 = vmatpush2.msra.mxu0 0.0
        %1275 = vmatprep.subr.mxu0 0.0
        %1276 = vmatpush2.msra.mxu0 0.0
        %1277 = vmatprep.subr.mxu0 0.0
        %1278 = vmatpush2.msra.mxu0 0.0
        %1279 = vmatprep.subr.mxu0 0.0
        %1280 = vmatpush2.msra.mxu0 0.0
        %1281 = vmatprep.subr.mxu0 0.0
        %1282 = vmatpush2.msra.mxu0 0.0
        %1283 = vmatprep.mubr.f32.mxu0 0.0
        %v1284 = vand.u32 %v616, 4294901760
        %1285 = vmatmul.mubr.f32.gmra.mxu0 %v1284
        %v1286 = vpop.f32.mrf.mxu0
        %v1287 = vadd.f32 %v1140, %v1286
        %v1288 = vpop.f32.mrf.mxu0
        %v1289 = vadd.f32 %v1142, %v1288
        %1290 = vmatprep.mubr.f32.mxu0 0.0
        %v1291 = vand.u32 %v619, 4294901760
        %1292 = vmatmul.mubr.f32.gmra.mxu0 %v1291
        %v1293 = vpop.f32.mrf.mxu0
        %v1294 = vadd.f32 %v1149, %v1293
        %v1295 = vpop.f32.mrf.mxu0
        %v1296 = vadd.f32 %v1151, %v1295
        %1297 = vmatprep.mubr.f32.mxu0 0.0
        %v1298 = vand.u32 %v622, 4294901760
        %1299 = vmatmul.mubr.f32.gmra.mxu0 %v1298
        %v1300 = vpop.f32.mrf.mxu0
        %v1301 = vadd.f32 %v1158, %v1300
        %v1302 = vpop.f32.mrf.mxu0
        %v1303 = vadd.f32 %v1160, %v1302
        %1304 = vmatprep.mubr.f32.mxu0 0.0
        %v1305 = vand.u32 %v625, 4294901760
        %1306 = vmatmul.mubr.f32.gmra.mxu0 %v1305
        %v1307 = vpop.f32.mrf.mxu0
        %v1308 = vadd.f32 %v1167, %v1307
        %v1309 = vpop.f32.mrf.mxu0
        %v1310 = vadd.f32 %v1169, %v1309
        %1311 = vdwg.mxu0
        %1312 = vmatprep.subr.mxu0 0.0
        %1313 = vmatpush1.msra.mxu0 0.0
        %1314 = vmatprep.subr.mxu0 0.0
        %1315 = vmatpush1.msra.mxu0 0.0
        %1316 = vmatprep.subr.mxu0 0.0
        %1317 = vmatpush1.msra.mxu0 0.0
        %1318 = vmatprep.subr.mxu0 0.0
        %1319 = vmatpush1.msra.mxu0 0.0
        %1320 = vmatprep.subr.mxu0 0.0
        %1321 = vmatpush1.msra.mxu0 0.0
        %1322 = vmatprep.subr.mxu0 0.0
        %1323 = vmatpush1.msra.mxu0 0.0
        %1324 = vmatprep.subr.mxu0 0.0
        %1325 = vmatpush1.msra.mxu0 0.0
        %1326 = vmatprep.subr.mxu0 0.0
        %1327 = vmatpush1.msra.mxu0 0.0
        %v1328 = vand.u32 %v607, 4294901760
        %1329 = vmatprep.subr.mxu0 %v1328
        %v1330 = vand.u32 %v606, 4294901760
        %1331 = vmatpush1.msra.mxu0 %v1330
        %v1332 = vand.u32 %v603, 4294901760
        %1333 = vmatprep.subr.mxu0 %v1332
        %v1334 = vand.u32 %v602, 4294901760
        %1335 = vmatpush1.msra.mxu0 %v1334
        %v1336 = vand.u32 %v599, 4294901760
        %1337 = vmatprep.subr.mxu0 %v1336
        %v1338 = vand.u32 %v598, 4294901760
        %1339 = vmatpush1.msra.mxu0 %v1338
        %v1340 = vand.u32 %v595, 4294901760
        %1341 = vmatprep.subr.mxu0 %v1340
        %v1342 = vand.u32 %v594, 4294901760
        %1343 = vmatpush1.msra.mxu0 %v1342
        %v1344 = vand.u32 %v591, 4294901760
        %1345 = vmatprep.subr.mxu0 %v1344
        %v1346 = vand.u32 %v590, 4294901760
        %1347 = vmatpush1.msra.mxu0 %v1346
        %v1348 = vand.u32 %v587, 4294901760
        %1349 = vmatprep.subr.mxu0 %v1348
        %v1350 = vand.u32 %v586, 4294901760
        %1351 = vmatpush1.msra.mxu0 %v1350
        %v1352 = vand.u32 %v583, 4294901760
        %1353 = vmatprep.subr.mxu0 %v1352
        %v1354 = vand.u32 %v582, 4294901760
        %1355 = vmatpush1.msra.mxu0 %v1354
        %v1356 = vand.u32 %v579, 4294901760
        %1357 = vmatprep.subr.mxu0 %v1356
        %v1358 = vand.u32 %v578, 4294901760
        %1359 = vmatpush1.msra.mxu0 %v1358
        %1360 = vmatprep.subr.mxu0 0.0
        %1361 = vmatpush2.msra.mxu0 0.0
        %1362 = vmatprep.subr.mxu0 0.0
        %1363 = vmatpush2.msra.mxu0 0.0
        %1364 = vmatprep.subr.mxu0 0.0
        %1365 = vmatpush2.msra.mxu0 0.0
        %1366 = vmatprep.subr.mxu0 0.0
        %1367 = vmatpush2.msra.mxu0 0.0
        %1368 = vmatprep.subr.mxu0 0.0
        %1369 = vmatpush2.msra.mxu0 0.0
        %1370 = vmatprep.subr.mxu0 0.0
        %1371 = vmatpush2.msra.mxu0 0.0
        %1372 = vmatprep.subr.mxu0 0.0
        %1373 = vmatpush2.msra.mxu0 0.0
        %1374 = vmatprep.subr.mxu0 0.0
        %1375 = vmatpush2.msra.mxu0 0.0
        %1376 = vmatprep.subr.mxu0 0.0
        %1377 = vmatpush2.msra.mxu0 0.0
        %1378 = vmatprep.subr.mxu0 0.0
        %1379 = vmatpush2.msra.mxu0 0.0
        %1380 = vmatprep.subr.mxu0 0.0
        %1381 = vmatpush2.msra.mxu0 0.0
        %1382 = vmatprep.subr.mxu0 0.0
        %1383 = vmatpush2.msra.mxu0 0.0
        %1384 = vmatprep.subr.mxu0 0.0
        %1385 = vmatpush2.msra.mxu0 0.0
        %1386 = vmatprep.subr.mxu0 0.0
        %1387 = vmatpush2.msra.mxu0 0.0
        %1388 = vmatprep.subr.mxu0 0.0
        %1389 = vmatpush2.msra.mxu0 0.0
        %1390 = vmatprep.subr.mxu0 0.0
        %1391 = vmatpush2.msra.mxu0 0.0
        %1392 = vmatprep.mubr.f32.mxu0 0.0
        %v1393 = vand.u32 %v616, 4294901760
        %1394 = vmatmul.mubr.f32.gmra.mxu0 %v1393
        %v1395 = vpop.f32.mrf.mxu0
        %v1396 = vadd.f32 %v1287, %v1395
        %v1397 = vpop.f32.mrf.mxu0
        %v1398 = vadd.f32 %v1289, %v1397
        %1399 = vmatprep.mubr.f32.mxu0 0.0
        %v1400 = vand.u32 %v619, 4294901760
        %1401 = vmatmul.mubr.f32.gmra.mxu0 %v1400
        %v1402 = vpop.f32.mrf.mxu0
        %v1403 = vadd.f32 %v1294, %v1402
        %v1404 = vpop.f32.mrf.mxu0
        %v1405 = vadd.f32 %v1296, %v1404
        %1406 = vmatprep.mubr.f32.mxu0 0.0
        %v1407 = vand.u32 %v622, 4294901760
        %1408 = vmatmul.mubr.f32.gmra.mxu0 %v1407
        %v1409 = vpop.f32.mrf.mxu0
        %v1410 = vadd.f32 %v1301, %v1409
        %v1411 = vpop.f32.mrf.mxu0
        %v1412 = vadd.f32 %v1303, %v1411
        %1413 = vmatprep.mubr.f32.mxu0 0.0
        %v1414 = vand.u32 %v625, 4294901760
        %1415 = vmatmul.mubr.f32.gmra.mxu0 %v1414
        %v1416 = vpop.f32.mrf.mxu0
        %v1417 = vadd.f32 %v1308, %v1416
        %v1418 = vpop.f32.mrf.mxu0
        %v1419 = vadd.f32 %v1310, %v1418
        %1420 = vdwg.mxu0
        %1421 = vmatprep.subr.mxu0 0.0
        %1422 = vmatpush1.msra.mxu0 0.0
        %1423 = vmatprep.subr.mxu0 0.0
        %1424 = vmatpush1.msra.mxu0 0.0
        %1425 = vmatprep.subr.mxu0 0.0
        %1426 = vmatpush1.msra.mxu0 0.0
        %1427 = vmatprep.subr.mxu0 0.0
        %1428 = vmatpush1.msra.mxu0 0.0
        %1429 = vmatprep.subr.mxu0 0.0
        %1430 = vmatpush1.msra.mxu0 0.0
        %1431 = vmatprep.subr.mxu0 0.0
        %1432 = vmatpush1.msra.mxu0 0.0
        %1433 = vmatprep.subr.mxu0 0.0
        %1434 = vmatpush1.msra.mxu0 0.0
        %1435 = vmatprep.subr.mxu0 0.0
        %1436 = vmatpush1.msra.mxu0 0.0
        %v1437 = vand.u32 %v609, 4294901760
        %1438 = vmatprep.subr.mxu0 %v1437
        %v1439 = vand.u32 %v608, 4294901760
        %1440 = vmatpush1.msra.mxu0 %v1439
        %v1441 = vand.u32 %v605, 4294901760
        %1442 = vmatprep.subr.mxu0 %v1441
        %v1443 = vand.u32 %v604, 4294901760
        %1444 = vmatpush1.msra.mxu0 %v1443
        %v1445 = vand.u32 %v601, 4294901760
        %1446 = vmatprep.subr.mxu0 %v1445
        %v1447 = vand.u32 %v600, 4294901760
        %1448 = vmatpush1.msra.mxu0 %v1447
        %v1449 = vand.u32 %v597, 4294901760
        %1450 = vmatprep.subr.mxu0 %v1449
        %v1451 = vand.u32 %v596, 4294901760
        %1452 = vmatpush1.msra.mxu0 %v1451
        %v1453 = vand.u32 %v593, 4294901760
        %1454 = vmatprep.subr.mxu0 %v1453
        %v1455 = vand.u32 %v592, 4294901760
        %1456 = vmatpush1.msra.mxu0 %v1455
        %v1457 = vand.u32 %v589, 4294901760
        %1458 = vmatprep.subr.mxu0 %v1457
        %v1459 = vand.u32 %v588, 4294901760
        %1460 = vmatpush1.msra.mxu0 %v1459
        %v1461 = vand.u32 %v585, 4294901760
        %1462 = vmatprep.subr.mxu0 %v1461
        %v1463 = vand.u32 %v584, 4294901760
        %1464 = vmatpush1.msra.mxu0 %v1463
        %v1465 = vand.u32 %v581, 4294901760
        %1466 = vmatprep.subr.mxu0 %v1465
        %v1467 = vand.u32 %v580, 4294901760
        %1468 = vmatpush1.msra.mxu0 %v1467
        %1469 = vmatprep.subr.mxu0 0.0
        %1470 = vmatpush2.msra.mxu0 0.0
        %1471 = vmatprep.subr.mxu0 0.0
        %1472 = vmatpush2.msra.mxu0 0.0
        %1473 = vmatprep.subr.mxu0 0.0
        %1474 = vmatpush2.msra.mxu0 0.0
        %1475 = vmatprep.subr.mxu0 0.0
        %1476 = vmatpush2.msra.mxu0 0.0
        %1477 = vmatprep.subr.mxu0 0.0
        %1478 = vmatpush2.msra.mxu0 0.0
        %1479 = vmatprep.subr.mxu0 0.0
        %1480 = vmatpush2.msra.mxu0 0.0
        %1481 = vmatprep.subr.mxu0 0.0
        %1482 = vmatpush2.msra.mxu0 0.0
        %1483 = vmatprep.subr.mxu0 0.0
        %1484 = vmatpush2.msra.mxu0 0.0
        %1485 = vmatprep.subr.mxu0 0.0
        %1486 = vmatpush2.msra.mxu0 0.0
        %1487 = vmatprep.subr.mxu0 0.0
        %1488 = vmatpush2.msra.mxu0 0.0
        %1489 = vmatprep.subr.mxu0 0.0
        %1490 = vmatpush2.msra.mxu0 0.0
        %1491 = vmatprep.subr.mxu0 0.0
        %1492 = vmatpush2.msra.mxu0 0.0
        %1493 = vmatprep.subr.mxu0 0.0
        %1494 = vmatpush2.msra.mxu0 0.0
        %1495 = vmatprep.subr.mxu0 0.0
        %1496 = vmatpush2.msra.mxu0 0.0
        %1497 = vmatprep.subr.mxu0 0.0
        %1498 = vmatpush2.msra.mxu0 0.0
        %1499 = vmatprep.subr.mxu0 0.0
        %1500 = vmatpush2.msra.mxu0 0.0
        %1501 = vmatprep.mubr.f32.mxu0 0.0
        %v1502 = vand.u32 %v616, 4294901760
        %v1503 = vsub.f32 %v616, %v1502
        %v1504 = vand.u32 %v1503, 4294901760
        %v1505 = vsub.f32 %v1503, %v1504
        %v1506 = vand.u32 %v1505, 4294901760
        %1507 = vmatmul.mubr.f32.gmra.mxu0 %v1506
        %v1508 = vpop.f32.mrf.mxu0
        %v1509 = vadd.f32 0.0, %v1508
        %v1510 = vpop.f32.mrf.mxu0
        %v1511 = vadd.f32 0.0, %v1510
        %1512 = vmatprep.mubr.f32.mxu0 0.0
        %v1513 = vand.u32 %v619, 4294901760
        %v1514 = vsub.f32 %v619, %v1513
        %v1515 = vand.u32 %v1514, 4294901760
        %v1516 = vsub.f32 %v1514, %v1515
        %v1517 = vand.u32 %v1516, 4294901760
        %1518 = vmatmul.mubr.f32.gmra.mxu0 %v1517
        %v1519 = vpop.f32.mrf.mxu0
        %v1520 = vadd.f32 0.0, %v1519
        %v1521 = vpop.f32.mrf.mxu0
        %v1522 = vadd.f32 0.0, %v1521
        %1523 = vmatprep.mubr.f32.mxu0 0.0
        %v1524 = vand.u32 %v622, 4294901760
        %v1525 = vsub.f32 %v622, %v1524
        %v1526 = vand.u32 %v1525, 4294901760
        %v1527 = vsub.f32 %v1525, %v1526
        %v1528 = vand.u32 %v1527, 4294901760
        %1529 = vmatmul.mubr.f32.gmra.mxu0 %v1528
        %v1530 = vpop.f32.mrf.mxu0
        %v1531 = vadd.f32 0.0, %v1530
        %v1532 = vpop.f32.mrf.mxu0
        %v1533 = vadd.f32 0.0, %v1532
        %1534 = vmatprep.mubr.f32.mxu0 0.0
        %v1535 = vand.u32 %v625, 4294901760
        %v1536 = vsub.f32 %v625, %v1535
        %v1537 = vand.u32 %v1536, 4294901760
        %v1538 = vsub.f32 %v1536, %v1537
        %v1539 = vand.u32 %v1538, 4294901760
        %1540 = vmatmul.mubr.f32.gmra.mxu0 %v1539
        %v1541 = vpop.f32.mrf.mxu0
        %v1542 = vadd.f32 0.0, %v1541
        %v1543 = vpop.f32.mrf.mxu0
        %v1544 = vadd.f32 0.0, %v1543
        %1545 = vdwg.mxu0
        %1546 = vmatprep.subr.mxu0 0.0
        %1547 = vmatpush1.msra.mxu0 0.0
        %1548 = vmatprep.subr.mxu0 0.0
        %1549 = vmatpush1.msra.mxu0 0.0
        %1550 = vmatprep.subr.mxu0 0.0
        %1551 = vmatpush1.msra.mxu0 0.0
        %1552 = vmatprep.subr.mxu0 0.0
        %1553 = vmatpush1.msra.mxu0 0.0
        %1554 = vmatprep.subr.mxu0 0.0
        %1555 = vmatpush1.msra.mxu0 0.0
        %1556 = vmatprep.subr.mxu0 0.0
        %1557 = vmatpush1.msra.mxu0 0.0
        %1558 = vmatprep.subr.mxu0 0.0
        %1559 = vmatpush1.msra.mxu0 0.0
        %1560 = vmatprep.subr.mxu0 0.0
        %1561 = vmatpush1.msra.mxu0 0.0
        %v1562 = vand.u32 %v609, 4294901760
        %v1563 = vsub.f32 %v609, %v1562
        %v1564 = vand.u32 %v1563, 4294901760
        %v1565 = vsub.f32 %v1563, %v1564
        %v1566 = vand.u32 %v1565, 4294901760
        %1567 = vmatprep.subr.mxu0 %v1566
        %v1568 = vand.u32 %v608, 4294901760
        %v1569 = vsub.f32 %v608, %v1568
        %v1570 = vand.u32 %v1569, 4294901760
        %v1571 = vsub.f32 %v1569, %v1570
        %v1572 = vand.u32 %v1571, 4294901760
        %1573 = vmatpush1.msra.mxu0 %v1572
        %v1574 = vand.u32 %v605, 4294901760
        %v1575 = vsub.f32 %v605, %v1574
        %v1576 = vand.u32 %v1575, 4294901760
        %v1577 = vsub.f32 %v1575, %v1576
        %v1578 = vand.u32 %v1577, 4294901760
        %1579 = vmatprep.subr.mxu0 %v1578
        %v1580 = vand.u32 %v604, 4294901760
        %v1581 = vsub.f32 %v604, %v1580
        %v1582 = vand.u32 %v1581, 4294901760
        %v1583 = vsub.f32 %v1581, %v1582
        %v1584 = vand.u32 %v1583, 4294901760
        %1585 = vmatpush1.msra.mxu0 %v1584
        %v1586 = vand.u32 %v601, 4294901760
        %v1587 = vsub.f32 %v601, %v1586
        %v1588 = vand.u32 %v1587, 4294901760
        %v1589 = vsub.f32 %v1587, %v1588
        %v1590 = vand.u32 %v1589, 4294901760
        %1591 = vmatprep.subr.mxu0 %v1590
        %v1592 = vand.u32 %v600, 4294901760
        %v1593 = vsub.f32 %v600, %v1592
        %v1594 = vand.u32 %v1593, 4294901760
        %v1595 = vsub.f32 %v1593, %v1594
        %v1596 = vand.u32 %v1595, 4294901760
        %1597 = vmatpush1.msra.mxu0 %v1596
        %v1598 = vand.u32 %v597, 4294901760
        %v1599 = vsub.f32 %v597, %v1598
        %v1600 = vand.u32 %v1599, 4294901760
        %v1601 = vsub.f32 %v1599, %v1600
        %v1602 = vand.u32 %v1601, 4294901760
        %1603 = vmatprep.subr.mxu0 %v1602
        %v1604 = vand.u32 %v596, 4294901760
        %v1605 = vsub.f32 %v596, %v1604
        %v1606 = vand.u32 %v1605, 4294901760
        %v1607 = vsub.f32 %v1605, %v1606
        %v1608 = vand.u32 %v1607, 4294901760
        %1609 = vmatpush1.msra.mxu0 %v1608
        %v1610 = vand.u32 %v593, 4294901760
        %v1611 = vsub.f32 %v593, %v1610
        %v1612 = vand.u32 %v1611, 4294901760
        %v1613 = vsub.f32 %v1611, %v1612
        %v1614 = vand.u32 %v1613, 4294901760
        %1615 = vmatprep.subr.mxu0 %v1614
        %v1616 = vand.u32 %v592, 4294901760
        %v1617 = vsub.f32 %v592, %v1616
        %v1618 = vand.u32 %v1617, 4294901760
        %v1619 = vsub.f32 %v1617, %v1618
        %v1620 = vand.u32 %v1619, 4294901760
        %1621 = vmatpush1.msra.mxu0 %v1620
        %v1622 = vand.u32 %v589, 4294901760
        %v1623 = vsub.f32 %v589, %v1622
        %v1624 = vand.u32 %v1623, 4294901760
        %v1625 = vsub.f32 %v1623, %v1624
        %v1626 = vand.u32 %v1625, 4294901760
        %1627 = vmatprep.subr.mxu0 %v1626
        %v1628 = vand.u32 %v588, 4294901760
        %v1629 = vsub.f32 %v588, %v1628
        %v1630 = vand.u32 %v1629, 4294901760
        %v1631 = vsub.f32 %v1629, %v1630
        %v1632 = vand.u32 %v1631, 4294901760
        %1633 = vmatpush1.msra.mxu0 %v1632
        %v1634 = vand.u32 %v585, 4294901760
        %v1635 = vsub.f32 %v585, %v1634
        %v1636 = vand.u32 %v1635, 4294901760
        %v1637 = vsub.f32 %v1635, %v1636
        %v1638 = vand.u32 %v1637, 4294901760
        %1639 = vmatprep.subr.mxu0 %v1638
        %v1640 = vand.u32 %v584, 4294901760
        %v1641 = vsub.f32 %v584, %v1640
        %v1642 = vand.u32 %v1641, 4294901760
        %v1643 = vsub.f32 %v1641, %v1642
        %v1644 = vand.u32 %v1643, 4294901760
        %1645 = vmatpush1.msra.mxu0 %v1644
        %v1646 = vand.u32 %v581, 4294901760
        %v1647 = vsub.f32 %v581, %v1646
        %v1648 = vand.u32 %v1647, 4294901760
        %v1649 = vsub.f32 %v1647, %v1648
        %v1650 = vand.u32 %v1649, 4294901760
        %1651 = vmatprep.subr.mxu0 %v1650
        %v1652 = vand.u32 %v580, 4294901760
        %v1653 = vsub.f32 %v580, %v1652
        %v1654 = vand.u32 %v1653, 4294901760
        %v1655 = vsub.f32 %v1653, %v1654
        %v1656 = vand.u32 %v1655, 4294901760
        %1657 = vmatpush1.msra.mxu0 %v1656
        %1658 = vmatprep.subr.mxu0 0.0
        %1659 = vmatpush2.msra.mxu0 0.0
        %1660 = vmatprep.subr.mxu0 0.0
        %1661 = vmatpush2.msra.mxu0 0.0
        %1662 = vmatprep.subr.mxu0 0.0
        %1663 = vmatpush2.msra.mxu0 0.0
        %1664 = vmatprep.subr.mxu0 0.0
        %1665 = vmatpush2.msra.mxu0 0.0
        %1666 = vmatprep.subr.mxu0 0.0
        %1667 = vmatpush2.msra.mxu0 0.0
        %1668 = vmatprep.subr.mxu0 0.0
        %1669 = vmatpush2.msra.mxu0 0.0
        %1670 = vmatprep.subr.mxu0 0.0
        %1671 = vmatpush2.msra.mxu0 0.0
        %1672 = vmatprep.subr.mxu0 0.0
        %1673 = vmatpush2.msra.mxu0 0.0
        %1674 = vmatprep.subr.mxu0 0.0
        %1675 = vmatpush2.msra.mxu0 0.0
        %1676 = vmatprep.subr.mxu0 0.0
        %1677 = vmatpush2.msra.mxu0 0.0
        %1678 = vmatprep.subr.mxu0 0.0
        %1679 = vmatpush2.msra.mxu0 0.0
        %1680 = vmatprep.subr.mxu0 0.0
        %1681 = vmatpush2.msra.mxu0 0.0
        %1682 = vmatprep.subr.mxu0 0.0
        %1683 = vmatpush2.msra.mxu0 0.0
        %1684 = vmatprep.subr.mxu0 0.0
        %1685 = vmatpush2.msra.mxu0 0.0
        %1686 = vmatprep.subr.mxu0 0.0
        %1687 = vmatpush2.msra.mxu0 0.0
        %1688 = vmatprep.subr.mxu0 0.0
        %1689 = vmatpush2.msra.mxu0 0.0
        %1690 = vmatprep.mubr.f32.mxu0 0.0
        %v1691 = vand.u32 %v616, 4294901760
        %1692 = vmatmul.mubr.f32.gmra.mxu0 %v1691
        %v1693 = vpop.f32.mrf.mxu0
        %v1694 = vadd.f32 %v1509, %v1693
        %v1695 = vpop.f32.mrf.mxu0
        %v1696 = vadd.f32 %v1511, %v1695
        %1697 = vmatprep.mubr.f32.mxu0 0.0
        %v1698 = vand.u32 %v619, 4294901760
        %1699 = vmatmul.mubr.f32.gmra.mxu0 %v1698
        %v1700 = vpop.f32.mrf.mxu0
        %v1701 = vadd.f32 %v1520, %v1700
        %v1702 = vpop.f32.mrf.mxu0
        %v1703 = vadd.f32 %v1522, %v1702
        %1704 = vmatprep.mubr.f32.mxu0 0.0
        %v1705 = vand.u32 %v622, 4294901760
        %1706 = vmatmul.mubr.f32.gmra.mxu0 %v1705
        %v1707 = vpop.f32.mrf.mxu0
        %v1708 = vadd.f32 %v1531, %v1707
        %v1709 = vpop.f32.mrf.mxu0
        %v1710 = vadd.f32 %v1533, %v1709
        %1711 = vmatprep.mubr.f32.mxu0 0.0
        %v1712 = vand.u32 %v625, 4294901760
        %1713 = vmatmul.mubr.f32.gmra.mxu0 %v1712
        %v1714 = vpop.f32.mrf.mxu0
        %v1715 = vadd.f32 %v1542, %v1714
        %v1716 = vpop.f32.mrf.mxu0
        %v1717 = vadd.f32 %v1544, %v1716
        %1718 = vdwg.mxu0
        %1719 = vmatprep.subr.mxu0 0.0
        %1720 = vmatpush1.msra.mxu0 0.0
        %1721 = vmatprep.subr.mxu0 0.0
        %1722 = vmatpush1.msra.mxu0 0.0
        %1723 = vmatprep.subr.mxu0 0.0
        %1724 = vmatpush1.msra.mxu0 0.0
        %1725 = vmatprep.subr.mxu0 0.0
        %1726 = vmatpush1.msra.mxu0 0.0
        %1727 = vmatprep.subr.mxu0 0.0
        %1728 = vmatpush1.msra.mxu0 0.0
        %1729 = vmatprep.subr.mxu0 0.0
        %1730 = vmatpush1.msra.mxu0 0.0
        %1731 = vmatprep.subr.mxu0 0.0
        %1732 = vmatpush1.msra.mxu0 0.0
        %1733 = vmatprep.subr.mxu0 0.0
        %1734 = vmatpush1.msra.mxu0 0.0
        %v1735 = vand.u32 %v609, 4294901760
        %v1736 = vsub.f32 %v609, %v1735
        %1737 = vmatprep.subr.mxu0 %v1736
        %v1738 = vand.u32 %v608, 4294901760
        %v1739 = vsub.f32 %v608, %v1738
        %1740 = vmatpush1.msra.mxu0 %v1739
        %v1741 = vand.u32 %v605, 4294901760
        %v1742 = vsub.f32 %v605, %v1741
        %1743 = vmatprep.subr.mxu0 %v1742
        %v1744 = vand.u32 %v604, 4294901760
        %v1745 = vsub.f32 %v604, %v1744
        %1746 = vmatpush1.msra.mxu0 %v1745
        %v1747 = vand.u32 %v601, 4294901760
        %v1748 = vsub.f32 %v601, %v1747
        %1749 = vmatprep.subr.mxu0 %v1748
        %v1750 = vand.u32 %v600, 4294901760
        %v1751 = vsub.f32 %v600, %v1750
        %1752 = vmatpush1.msra.mxu0 %v1751
        %v1753 = vand.u32 %v597, 4294901760
        %v1754 = vsub.f32 %v597, %v1753
        %1755 = vmatprep.subr.mxu0 %v1754
        %v1756 = vand.u32 %v596, 4294901760
        %v1757 = vsub.f32 %v596, %v1756
        %1758 = vmatpush1.msra.mxu0 %v1757
        %v1759 = vand.u32 %v593, 4294901760
        %v1760 = vsub.f32 %v593, %v1759
        %1761 = vmatprep.subr.mxu0 %v1760
        %v1762 = vand.u32 %v592, 4294901760
        %v1763 = vsub.f32 %v592, %v1762
        %1764 = vmatpush1.msra.mxu0 %v1763
        %v1765 = vand.u32 %v589, 4294901760
        %v1766 = vsub.f32 %v589, %v1765
        %1767 = vmatprep.subr.mxu0 %v1766
        %v1768 = vand.u32 %v588, 4294901760
        %v1769 = vsub.f32 %v588, %v1768
        %1770 = vmatpush1.msra.mxu0 %v1769
        %v1771 = vand.u32 %v585, 4294901760
        %v1772 = vsub.f32 %v585, %v1771
        %1773 = vmatprep.subr.mxu0 %v1772
        %v1774 = vand.u32 %v584, 4294901760
        %v1775 = vsub.f32 %v584, %v1774
        %1776 = vmatpush1.msra.mxu0 %v1775
        %v1777 = vand.u32 %v581, 4294901760
        %v1778 = vsub.f32 %v581, %v1777
        %1779 = vmatprep.subr.mxu0 %v1778
        %v1780 = vand.u32 %v580, 4294901760
        %v1781 = vsub.f32 %v580, %v1780
        %1782 = vmatpush1.msra.mxu0 %v1781
        %1783 = vmatprep.subr.mxu0 0.0
        %1784 = vmatpush2.msra.mxu0 0.0
        %1785 = vmatprep.subr.mxu0 0.0
        %1786 = vmatpush2.msra.mxu0 0.0
        %1787 = vmatprep.subr.mxu0 0.0
        %1788 = vmatpush2.msra.mxu0 0.0
        %1789 = vmatprep.subr.mxu0 0.0
        %1790 = vmatpush2.msra.mxu0 0.0
        %1791 = vmatprep.subr.mxu0 0.0
        %1792 = vmatpush2.msra.mxu0 0.0
        %1793 = vmatprep.subr.mxu0 0.0
        %1794 = vmatpush2.msra.mxu0 0.0
        %1795 = vmatprep.subr.mxu0 0.0
        %1796 = vmatpush2.msra.mxu0 0.0
        %1797 = vmatprep.subr.mxu0 0.0
        %1798 = vmatpush2.msra.mxu0 0.0
        %1799 = vmatprep.subr.mxu0 0.0
        %1800 = vmatpush2.msra.mxu0 0.0
        %1801 = vmatprep.subr.mxu0 0.0
        %1802 = vmatpush2.msra.mxu0 0.0
        %1803 = vmatprep.subr.mxu0 0.0
        %1804 = vmatpush2.msra.mxu0 0.0
        %1805 = vmatprep.subr.mxu0 0.0
        %1806 = vmatpush2.msra.mxu0 0.0
        %1807 = vmatprep.subr.mxu0 0.0
        %1808 = vmatpush2.msra.mxu0 0.0
        %1809 = vmatprep.subr.mxu0 0.0
        %1810 = vmatpush2.msra.mxu0 0.0
        %1811 = vmatprep.subr.mxu0 0.0
        %1812 = vmatpush2.msra.mxu0 0.0
        %1813 = vmatprep.subr.mxu0 0.0
        %1814 = vmatpush2.msra.mxu0 0.0
        %1815 = vmatprep.mubr.f32.mxu0 0.0
        %v1816 = vand.u32 %v616, 4294901760
        %v1817 = vsub.f32 %v616, %v1816
        %1818 = vmatmul.mubr.f32.gmra.mxu0 %v1817
        %v1819 = vpop.f32.mrf.mxu0
        %v1820 = vadd.f32 %v1694, %v1819
        %v1821 = vpop.f32.mrf.mxu0
        %v1822 = vadd.f32 %v1696, %v1821
        %1823 = vmatprep.mubr.f32.mxu0 0.0
        %v1824 = vand.u32 %v619, 4294901760
        %v1825 = vsub.f32 %v619, %v1824
        %1826 = vmatmul.mubr.f32.gmra.mxu0 %v1825
        %v1827 = vpop.f32.mrf.mxu0
        %v1828 = vadd.f32 %v1701, %v1827
        %v1829 = vpop.f32.mrf.mxu0
        %v1830 = vadd.f32 %v1703, %v1829
        %1831 = vmatprep.mubr.f32.mxu0 0.0
        %v1832 = vand.u32 %v622, 4294901760
        %v1833 = vsub.f32 %v622, %v1832
        %1834 = vmatmul.mubr.f32.gmra.mxu0 %v1833
        %v1835 = vpop.f32.mrf.mxu0
        %v1836 = vadd.f32 %v1708, %v1835
        %v1837 = vpop.f32.mrf.mxu0
        %v1838 = vadd.f32 %v1710, %v1837
        %1839 = vmatprep.mubr.f32.mxu0 0.0
        %v1840 = vand.u32 %v625, 4294901760
        %v1841 = vsub.f32 %v625, %v1840
        %1842 = vmatmul.mubr.f32.gmra.mxu0 %v1841
        %v1843 = vpop.f32.mrf.mxu0
        %v1844 = vadd.f32 %v1715, %v1843
        %v1845 = vpop.f32.mrf.mxu0
        %v1846 = vadd.f32 %v1717, %v1845
        %1847 = vdwg.mxu0
        %1848 = vmatprep.subr.mxu0 0.0
        %1849 = vmatpush1.msra.mxu0 0.0
        %1850 = vmatprep.subr.mxu0 0.0
        %1851 = vmatpush1.msra.mxu0 0.0
        %1852 = vmatprep.subr.mxu0 0.0
        %1853 = vmatpush1.msra.mxu0 0.0
        %1854 = vmatprep.subr.mxu0 0.0
        %1855 = vmatpush1.msra.mxu0 0.0
        %1856 = vmatprep.subr.mxu0 0.0
        %1857 = vmatpush1.msra.mxu0 0.0
        %1858 = vmatprep.subr.mxu0 0.0
        %1859 = vmatpush1.msra.mxu0 0.0
        %1860 = vmatprep.subr.mxu0 0.0
        %1861 = vmatpush1.msra.mxu0 0.0
        %1862 = vmatprep.subr.mxu0 0.0
        %1863 = vmatpush1.msra.mxu0 0.0
        %v1864 = vand.u32 %v609, 4294901760
        %1865 = vmatprep.subr.mxu0 %v1864
        %v1866 = vand.u32 %v608, 4294901760
        %1867 = vmatpush1.msra.mxu0 %v1866
        %v1868 = vand.u32 %v605, 4294901760
        %1869 = vmatprep.subr.mxu0 %v1868
        %v1870 = vand.u32 %v604, 4294901760
        %1871 = vmatpush1.msra.mxu0 %v1870
        %v1872 = vand.u32 %v601, 4294901760
        %1873 = vmatprep.subr.mxu0 %v1872
        %v1874 = vand.u32 %v600, 4294901760
        %1875 = vmatpush1.msra.mxu0 %v1874
        %v1876 = vand.u32 %v597, 4294901760
        %1877 = vmatprep.subr.mxu0 %v1876
        %v1878 = vand.u32 %v596, 4294901760
        %1879 = vmatpush1.msra.mxu0 %v1878
        %v1880 = vand.u32 %v593, 4294901760
        %1881 = vmatprep.subr.mxu0 %v1880
        %v1882 = vand.u32 %v592, 4294901760
        %1883 = vmatpush1.msra.mxu0 %v1882
        %v1884 = vand.u32 %v589, 4294901760
        %1885 = vmatprep.subr.mxu0 %v1884
        %v1886 = vand.u32 %v588, 4294901760
        %1887 = vmatpush1.msra.mxu0 %v1886
        %v1888 = vand.u32 %v585, 4294901760
        %1889 = vmatprep.subr.mxu0 %v1888
        %v1890 = vand.u32 %v584, 4294901760
        %1891 = vmatpush1.msra.mxu0 %v1890
        %v1892 = vand.u32 %v581, 4294901760
        %1893 = vmatprep.subr.mxu0 %v1892
        %v1894 = vand.u32 %v580, 4294901760
        %1895 = vmatpush1.msra.mxu0 %v1894
        %1896 = vmatprep.subr.mxu0 0.0
        %1897 = vmatpush2.msra.mxu0 0.0
        %1898 = vmatprep.subr.mxu0 0.0
        %1899 = vmatpush2.msra.mxu0 0.0
        %1900 = vmatprep.subr.mxu0 0.0
        %1901 = vmatpush2.msra.mxu0 0.0
        %1902 = vmatprep.subr.mxu0 0.0
        %1903 = vmatpush2.msra.mxu0 0.0
        %1904 = vmatprep.subr.mxu0 0.0
        %1905 = vmatpush2.msra.mxu0 0.0
        %1906 = vmatprep.subr.mxu0 0.0
        %1907 = vmatpush2.msra.mxu0 0.0
        %1908 = vmatprep.subr.mxu0 0.0
        %1909 = vmatpush2.msra.mxu0 0.0
        %1910 = vmatprep.subr.mxu0 0.0
        %1911 = vmatpush2.msra.mxu0 0.0
        %1912 = vmatprep.subr.mxu0 0.0
        %1913 = vmatpush2.msra.mxu0 0.0
        %1914 = vmatprep.subr.mxu0 0.0
        %1915 = vmatpush2.msra.mxu0 0.0
        %1916 = vmatprep.subr.mxu0 0.0
        %1917 = vmatpush2.msra.mxu0 0.0
        %1918 = vmatprep.subr.mxu0 0.0
        %1919 = vmatpush2.msra.mxu0 0.0
        %1920 = vmatprep.subr.mxu0 0.0
        %1921 = vmatpush2.msra.mxu0 0.0
        %1922 = vmatprep.subr.mxu0 0.0
        %1923 = vmatpush2.msra.mxu0 0.0
        %1924 = vmatprep.subr.mxu0 0.0
        %1925 = vmatpush2.msra.mxu0 0.0
        %1926 = vmatprep.subr.mxu0 0.0
        %1927 = vmatpush2.msra.mxu0 0.0
        %1928 = vmatprep.mubr.f32.mxu0 0.0
        %v1929 = vand.u32 %v616, 4294901760
        %v1930 = vsub.f32 %v616, %v1929
        %v1931 = vand.u32 %v1930, 4294901760
        %1932 = vmatmul.mubr.f32.gmra.mxu0 %v1931
        %v1933 = vpop.f32.mrf.mxu0
        %v1934 = vadd.f32 %v1820, %v1933
        %v1935 = vpop.f32.mrf.mxu0
        %v1936 = vadd.f32 %v1822, %v1935
        %1937 = vmatprep.mubr.f32.mxu0 0.0
        %v1938 = vand.u32 %v619, 4294901760
        %v1939 = vsub.f32 %v619, %v1938
        %v1940 = vand.u32 %v1939, 4294901760
        %1941 = vmatmul.mubr.f32.gmra.mxu0 %v1940
        %v1942 = vpop.f32.mrf.mxu0
        %v1943 = vadd.f32 %v1828, %v1942
        %v1944 = vpop.f32.mrf.mxu0
        %v1945 = vadd.f32 %v1830, %v1944
        %1946 = vmatprep.mubr.f32.mxu0 0.0
        %v1947 = vand.u32 %v622, 4294901760
        %v1948 = vsub.f32 %v622, %v1947
        %v1949 = vand.u32 %v1948, 4294901760
        %1950 = vmatmul.mubr.f32.gmra.mxu0 %v1949
        %v1951 = vpop.f32.mrf.mxu0
        %v1952 = vadd.f32 %v1836, %v1951
        %v1953 = vpop.f32.mrf.mxu0
        %v1954 = vadd.f32 %v1838, %v1953
        %1955 = vmatprep.mubr.f32.mxu0 0.0
        %v1956 = vand.u32 %v625, 4294901760
        %v1957 = vsub.f32 %v625, %v1956
        %v1958 = vand.u32 %v1957, 4294901760
        %1959 = vmatmul.mubr.f32.gmra.mxu0 %v1958
        %v1960 = vpop.f32.mrf.mxu0
        %v1961 = vadd.f32 %v1844, %v1960
        %v1962 = vpop.f32.mrf.mxu0
        %v1963 = vadd.f32 %v1846, %v1962
        %1964 = vdwg.mxu0
        %1965 = vmatprep.subr.mxu0 0.0
        %1966 = vmatpush1.msra.mxu0 0.0
        %1967 = vmatprep.subr.mxu0 0.0
        %1968 = vmatpush1.msra.mxu0 0.0
        %1969 = vmatprep.subr.mxu0 0.0
        %1970 = vmatpush1.msra.mxu0 0.0
        %1971 = vmatprep.subr.mxu0 0.0
        %1972 = vmatpush1.msra.mxu0 0.0
        %1973 = vmatprep.subr.mxu0 0.0
        %1974 = vmatpush1.msra.mxu0 0.0
        %1975 = vmatprep.subr.mxu0 0.0
        %1976 = vmatpush1.msra.mxu0 0.0
        %1977 = vmatprep.subr.mxu0 0.0
        %1978 = vmatpush1.msra.mxu0 0.0
        %1979 = vmatprep.subr.mxu0 0.0
        %1980 = vmatpush1.msra.mxu0 0.0
        %v1981 = vand.u32 %v609, 4294901760
        %v1982 = vsub.f32 %v609, %v1981
        %v1983 = vand.u32 %v1982, 4294901760
        %1984 = vmatprep.subr.mxu0 %v1983
        %v1985 = vand.u32 %v608, 4294901760
        %v1986 = vsub.f32 %v608, %v1985
        %v1987 = vand.u32 %v1986, 4294901760
        %1988 = vmatpush1.msra.mxu0 %v1987
        %v1989 = vand.u32 %v605, 4294901760
        %v1990 = vsub.f32 %v605, %v1989
        %v1991 = vand.u32 %v1990, 4294901760
        %1992 = vmatprep.subr.mxu0 %v1991
        %v1993 = vand.u32 %v604, 4294901760
        %v1994 = vsub.f32 %v604, %v1993
        %v1995 = vand.u32 %v1994, 4294901760
        %1996 = vmatpush1.msra.mxu0 %v1995
        %v1997 = vand.u32 %v601, 4294901760
        %v1998 = vsub.f32 %v601, %v1997
        %v1999 = vand.u32 %v1998, 4294901760
        %2000 = vmatprep.subr.mxu0 %v1999
        %v2001 = vand.u32 %v600, 4294901760
        %v2002 = vsub.f32 %v600, %v2001
        %v2003 = vand.u32 %v2002, 4294901760
        %2004 = vmatpush1.msra.mxu0 %v2003
        %v2005 = vand.u32 %v597, 4294901760
        %v2006 = vsub.f32 %v597, %v2005
        %v2007 = vand.u32 %v2006, 4294901760
        %2008 = vmatprep.subr.mxu0 %v2007
        %v2009 = vand.u32 %v596, 4294901760
        %v2010 = vsub.f32 %v596, %v2009
        %v2011 = vand.u32 %v2010, 4294901760
        %2012 = vmatpush1.msra.mxu0 %v2011
        %v2013 = vand.u32 %v593, 4294901760
        %v2014 = vsub.f32 %v593, %v2013
        %v2015 = vand.u32 %v2014, 4294901760
        %2016 = vmatprep.subr.mxu0 %v2015
        %v2017 = vand.u32 %v592, 4294901760
        %v2018 = vsub.f32 %v592, %v2017
        %v2019 = vand.u32 %v2018, 4294901760
        %2020 = vmatpush1.msra.mxu0 %v2019
        %v2021 = vand.u32 %v589, 4294901760
        %v2022 = vsub.f32 %v589, %v2021
        %v2023 = vand.u32 %v2022, 4294901760
        %2024 = vmatprep.subr.mxu0 %v2023
        %v2025 = vand.u32 %v588, 4294901760
        %v2026 = vsub.f32 %v588, %v2025
        %v2027 = vand.u32 %v2026, 4294901760
        %2028 = vmatpush1.msra.mxu0 %v2027
        %v2029 = vand.u32 %v585, 4294901760
        %v2030 = vsub.f32 %v585, %v2029
        %v2031 = vand.u32 %v2030, 4294901760
        %2032 = vmatprep.subr.mxu0 %v2031
        %v2033 = vand.u32 %v584, 4294901760
        %v2034 = vsub.f32 %v584, %v2033
        %v2035 = vand.u32 %v2034, 4294901760
        %2036 = vmatpush1.msra.mxu0 %v2035
        %v2037 = vand.u32 %v581, 4294901760
        %v2038 = vsub.f32 %v581, %v2037
        %v2039 = vand.u32 %v2038, 4294901760
        %2040 = vmatprep.subr.mxu0 %v2039
        %v2041 = vand.u32 %v580, 4294901760
        %v2042 = vsub.f32 %v580, %v2041
        %v2043 = vand.u32 %v2042, 4294901760
        %2044 = vmatpush1.msra.mxu0 %v2043
        %2045 = vmatprep.subr.mxu0 0.0
        %2046 = vmatpush2.msra.mxu0 0.0
        %2047 = vmatprep.subr.mxu0 0.0
        %2048 = vmatpush2.msra.mxu0 0.0
        %2049 = vmatprep.subr.mxu0 0.0
        %2050 = vmatpush2.msra.mxu0 0.0
        %2051 = vmatprep.subr.mxu0 0.0
        %2052 = vmatpush2.msra.mxu0 0.0
        %2053 = vmatprep.subr.mxu0 0.0
        %2054 = vmatpush2.msra.mxu0 0.0
        %2055 = vmatprep.subr.mxu0 0.0
        %2056 = vmatpush2.msra.mxu0 0.0
        %2057 = vmatprep.subr.mxu0 0.0
        %2058 = vmatpush2.msra.mxu0 0.0
        %2059 = vmatprep.subr.mxu0 0.0
        %2060 = vmatpush2.msra.mxu0 0.0
        %2061 = vmatprep.subr.mxu0 0.0
        %2062 = vmatpush2.msra.mxu0 0.0
        %2063 = vmatprep.subr.mxu0 0.0
        %2064 = vmatpush2.msra.mxu0 0.0
        %2065 = vmatprep.subr.mxu0 0.0
        %2066 = vmatpush2.msra.mxu0 0.0
        %2067 = vmatprep.subr.mxu0 0.0
        %2068 = vmatpush2.msra.mxu0 0.0
        %2069 = vmatprep.subr.mxu0 0.0
        %2070 = vmatpush2.msra.mxu0 0.0
        %2071 = vmatprep.subr.mxu0 0.0
        %2072 = vmatpush2.msra.mxu0 0.0
        %2073 = vmatprep.subr.mxu0 0.0
        %2074 = vmatpush2.msra.mxu0 0.0
        %2075 = vmatprep.subr.mxu0 0.0
        %2076 = vmatpush2.msra.mxu0 0.0
        %2077 = vmatprep.mubr.f32.mxu0 0.0
        %v2078 = vand.u32 %v616, 4294901760
        %2079 = vmatmul.mubr.f32.gmra.mxu0 %v2078
        %v2080 = vpop.f32.mrf.mxu0
        %v2081 = vadd.f32 %v1934, %v2080
        %v2082 = vpop.f32.mrf.mxu0
        %v2083 = vadd.f32 %v1936, %v2082
        %2084 = vmatprep.mubr.f32.mxu0 0.0
        %v2085 = vand.u32 %v619, 4294901760
        %2086 = vmatmul.mubr.f32.gmra.mxu0 %v2085
        %v2087 = vpop.f32.mrf.mxu0
        %v2088 = vadd.f32 %v1943, %v2087
        %v2089 = vpop.f32.mrf.mxu0
        %v2090 = vadd.f32 %v1945, %v2089
        %2091 = vmatprep.mubr.f32.mxu0 0.0
        %v2092 = vand.u32 %v622, 4294901760
        %2093 = vmatmul.mubr.f32.gmra.mxu0 %v2092
        %v2094 = vpop.f32.mrf.mxu0
        %v2095 = vadd.f32 %v1952, %v2094
        %v2096 = vpop.f32.mrf.mxu0
        %v2097 = vadd.f32 %v1954, %v2096
        %2098 = vmatprep.mubr.f32.mxu0 0.0
        %v2099 = vand.u32 %v625, 4294901760
        %2100 = vmatmul.mubr.f32.gmra.mxu0 %v2099
        %v2101 = vpop.f32.mrf.mxu0
        %v2102 = vadd.f32 %v1961, %v2101
        %v2103 = vpop.f32.mrf.mxu0
        %v2104 = vadd.f32 %v1963, %v2103
        %2105 = vdwg.mxu0
        %2106 = vmatprep.subr.mxu0 0.0
        %2107 = vmatpush1.msra.mxu0 0.0
        %2108 = vmatprep.subr.mxu0 0.0
        %2109 = vmatpush1.msra.mxu0 0.0
        %2110 = vmatprep.subr.mxu0 0.0
        %2111 = vmatpush1.msra.mxu0 0.0
        %2112 = vmatprep.subr.mxu0 0.0
        %2113 = vmatpush1.msra.mxu0 0.0
        %2114 = vmatprep.subr.mxu0 0.0
        %2115 = vmatpush1.msra.mxu0 0.0
        %2116 = vmatprep.subr.mxu0 0.0
        %2117 = vmatpush1.msra.mxu0 0.0
        %2118 = vmatprep.subr.mxu0 0.0
        %2119 = vmatpush1.msra.mxu0 0.0
        %2120 = vmatprep.subr.mxu0 0.0
        %2121 = vmatpush1.msra.mxu0 0.0
        %v2122 = vand.u32 %v609, 4294901760
        %2123 = vmatprep.subr.mxu0 %v2122
        %v2124 = vand.u32 %v608, 4294901760
        %2125 = vmatpush1.msra.mxu0 %v2124
        %v2126 = vand.u32 %v605, 4294901760
        %2127 = vmatprep.subr.mxu0 %v2126
        %v2128 = vand.u32 %v604, 4294901760
        %2129 = vmatpush1.msra.mxu0 %v2128
        %v2130 = vand.u32 %v601, 4294901760
        %2131 = vmatprep.subr.mxu0 %v2130
        %v2132 = vand.u32 %v600, 4294901760
        %2133 = vmatpush1.msra.mxu0 %v2132
        %v2134 = vand.u32 %v597, 4294901760
        %2135 = vmatprep.subr.mxu0 %v2134
        %v2136 = vand.u32 %v596, 4294901760
        %2137 = vmatpush1.msra.mxu0 %v2136
        %v2138 = vand.u32 %v593, 4294901760
        %2139 = vmatprep.subr.mxu0 %v2138
        %v2140 = vand.u32 %v592, 4294901760
        %2141 = vmatpush1.msra.mxu0 %v2140
        %v2142 = vand.u32 %v589, 4294901760
        %2143 = vmatprep.subr.mxu0 %v2142
        %v2144 = vand.u32 %v588, 4294901760
        %2145 = vmatpush1.msra.mxu0 %v2144
        %v2146 = vand.u32 %v585, 4294901760
        %2147 = vmatprep.subr.mxu0 %v2146
        %v2148 = vand.u32 %v584, 4294901760
        %2149 = vmatpush1.msra.mxu0 %v2148
        %v2150 = vand.u32 %v581, 4294901760
        %2151 = vmatprep.subr.mxu0 %v2150
        %v2152 = vand.u32 %v580, 4294901760
        %2153 = vmatpush1.msra.mxu0 %v2152
        %2154 = vmatprep.subr.mxu0 0.0
        %2155 = vmatpush2.msra.mxu0 0.0
        %2156 = vmatprep.subr.mxu0 0.0
        %2157 = vmatpush2.msra.mxu0 0.0
        %2158 = vmatprep.subr.mxu0 0.0
        %2159 = vmatpush2.msra.mxu0 0.0
        %2160 = vmatprep.subr.mxu0 0.0
        %2161 = vmatpush2.msra.mxu0 0.0
        %2162 = vmatprep.subr.mxu0 0.0
        %2163 = vmatpush2.msra.mxu0 0.0
        %2164 = vmatprep.subr.mxu0 0.0
        %2165 = vmatpush2.msra.mxu0 0.0
        %2166 = vmatprep.subr.mxu0 0.0
        %2167 = vmatpush2.msra.mxu0 0.0
        %2168 = vmatprep.subr.mxu0 0.0
        %2169 = vmatpush2.msra.mxu0 0.0
        %2170 = vmatprep.subr.mxu0 0.0
        %2171 = vmatpush2.msra.mxu0 0.0
        %2172 = vmatprep.subr.mxu0 0.0
        %2173 = vmatpush2.msra.mxu0 0.0
        %2174 = vmatprep.subr.mxu0 0.0
        %2175 = vmatpush2.msra.mxu0 0.0
        %2176 = vmatprep.subr.mxu0 0.0
        %2177 = vmatpush2.msra.mxu0 0.0
        %2178 = vmatprep.subr.mxu0 0.0
        %2179 = vmatpush2.msra.mxu0 0.0
        %2180 = vmatprep.subr.mxu0 0.0
        %2181 = vmatpush2.msra.mxu0 0.0
        %2182 = vmatprep.subr.mxu0 0.0
        %2183 = vmatpush2.msra.mxu0 0.0
        %2184 = vmatprep.subr.mxu0 0.0
        %2185 = vmatpush2.msra.mxu0 0.0
        %2186 = vmatprep.mubr.f32.mxu0 0.0
        %v2187 = vand.u32 %v616, 4294901760
        %2188 = vmatmul.mubr.f32.gmra.mxu0 %v2187
        %v2189 = vpop.f32.mrf.mxu0
        %v2190 = vadd.f32 %v2081, %v2189
        %v2191 = vpop.f32.mrf.mxu0
        %v2192 = vadd.f32 %v2083, %v2191
        %2193 = vmatprep.mubr.f32.mxu0 0.0
        %v2194 = vand.u32 %v619, 4294901760
        %2195 = vmatmul.mubr.f32.gmra.mxu0 %v2194
        %v2196 = vpop.f32.mrf.mxu0
        %v2197 = vadd.f32 %v2088, %v2196
        %v2198 = vpop.f32.mrf.mxu0
        %v2199 = vadd.f32 %v2090, %v2198
        %2200 = vmatprep.mubr.f32.mxu0 0.0
        %v2201 = vand.u32 %v622, 4294901760
        %2202 = vmatmul.mubr.f32.gmra.mxu0 %v2201
        %v2203 = vpop.f32.mrf.mxu0
        %v2204 = vadd.f32 %v2095, %v2203
        %v2205 = vpop.f32.mrf.mxu0
        %v2206 = vadd.f32 %v2097, %v2205
        %2207 = vmatprep.mubr.f32.mxu0 0.0
        %v2208 = vand.u32 %v625, 4294901760
        %2209 = vmatmul.mubr.f32.gmra.mxu0 %v2208
        %v2210 = vpop.f32.mrf.mxu0
        %v2211 = vadd.f32 %v2102, %v2210
        %v2212 = vpop.f32.mrf.mxu0
        %v2213 = vadd.f32 %v2104, %v2212
        %2214 = vdwg.mxu0
        %v2215 = vld [vmem:[%s426] sm:$0xf]
        %v2216 = vadd.s32 %v490, 64
        %v2217 = vadd.s32 %v490, 72
        %v2218 = vadd.s32 %v490, 80
        %v2219 = vadd.s32 %v490, 88
        %v2220 = vadd.s32 %v490, 96
        %v2221 = vadd.s32 %v490, 104
        %v2222 = vadd.s32 %v490, 112
        %v2223 = vadd.s32 %v490, 120
        %v2224 = vlaneseq
        %v2225 = vshrl.u32 %v2224, 7
        %v2226 = vsub.s32 0, %v2225
        %v2227 = vrot.slane %v2215, %v2226
        %v2228 = vlaneseq
        %v2229 = vshrl.u32 %v2228, 7
        %v2230 = vsub.s32 1, %v2229
        %v2231 = vrot.slane %v2215, %v2230
        %v2232 = vlaneseq
        %v2233 = vshrl.u32 %v2232, 7
        %v2234 = vsub.s32 2, %v2233
        %v2235 = vrot.slane %v2215, %v2234
        %v2236 = vlaneseq
        %v2237 = vshrl.u32 %v2236, 7
        %v2238 = vsub.s32 3, %v2237
        %v2239 = vrot.slane %v2215, %v2238
        %vm2240 = vcmp.eq.s32.totalorder %v490, %v2227
        %vm2241 = vcmp.eq.s32.totalorder %v490, %v2231
        %vm2242 = vcmp.eq.s32.totalorder %v490, %v2235
        %vm2243 = vcmp.eq.s32.totalorder %v490, %v2239
        %vm2244 = vcmp.eq.s32.totalorder %v491, %v2227
        %vm2245 = vcmp.eq.s32.totalorder %v491, %v2231
        %vm2246 = vcmp.eq.s32.totalorder %v491, %v2235
        %vm2247 = vcmp.eq.s32.totalorder %v491, %v2239
        %vm2248 = vcmp.eq.s32.totalorder %v492, %v2227
        %vm2249 = vcmp.eq.s32.totalorder %v492, %v2231
        %vm2250 = vcmp.eq.s32.totalorder %v492, %v2235
        %vm2251 = vcmp.eq.s32.totalorder %v492, %v2239
        %vm2252 = vcmp.eq.s32.totalorder %v493, %v2227
        %vm2253 = vcmp.eq.s32.totalorder %v493, %v2231
        %vm2254 = vcmp.eq.s32.totalorder %v493, %v2235
        %vm2255 = vcmp.eq.s32.totalorder %v493, %v2239
        %vm2256 = vcmp.eq.s32.totalorder %v494, %v2227
        %vm2257 = vcmp.eq.s32.totalorder %v494, %v2231
        %vm2258 = vcmp.eq.s32.totalorder %v494, %v2235
        %vm2259 = vcmp.eq.s32.totalorder %v494, %v2239
        %vm2260 = vcmp.eq.s32.totalorder %v495, %v2227
        %vm2261 = vcmp.eq.s32.totalorder %v495, %v2231
        %vm2262 = vcmp.eq.s32.totalorder %v495, %v2235
        %vm2263 = vcmp.eq.s32.totalorder %v495, %v2239
        %vm2264 = vcmp.eq.s32.totalorder %v496, %v2227
        %vm2265 = vcmp.eq.s32.totalorder %v496, %v2231
        %vm2266 = vcmp.eq.s32.totalorder %v496, %v2235
        %vm2267 = vcmp.eq.s32.totalorder %v496, %v2239
        %vm2268 = vcmp.eq.s32.totalorder %v497, %v2227
        %vm2269 = vcmp.eq.s32.totalorder %v497, %v2231
        %vm2270 = vcmp.eq.s32.totalorder %v497, %v2235
        %vm2271 = vcmp.eq.s32.totalorder %v497, %v2239
        %vm2272 = vcmp.eq.s32.totalorder %v2216, %v2227
        %vm2273 = vcmp.eq.s32.totalorder %v2216, %v2231
        %vm2274 = vcmp.eq.s32.totalorder %v2216, %v2235
        %vm2275 = vcmp.eq.s32.totalorder %v2216, %v2239
        %vm2276 = vcmp.eq.s32.totalorder %v2217, %v2227
        %vm2277 = vcmp.eq.s32.totalorder %v2217, %v2231
        %vm2278 = vcmp.eq.s32.totalorder %v2217, %v2235
        %vm2279 = vcmp.eq.s32.totalorder %v2217, %v2239
        %vm2280 = vcmp.eq.s32.totalorder %v2218, %v2227
        %vm2281 = vcmp.eq.s32.totalorder %v2218, %v2231
        %vm2282 = vcmp.eq.s32.totalorder %v2218, %v2235
        %vm2283 = vcmp.eq.s32.totalorder %v2218, %v2239
        %vm2284 = vcmp.eq.s32.totalorder %v2219, %v2227
        %vm2285 = vcmp.eq.s32.totalorder %v2219, %v2231
        %vm2286 = vcmp.eq.s32.totalorder %v2219, %v2235
        %vm2287 = vcmp.eq.s32.totalorder %v2219, %v2239
        %vm2288 = vcmp.eq.s32.totalorder %v2220, %v2227
        %vm2289 = vcmp.eq.s32.totalorder %v2220, %v2231
        %vm2290 = vcmp.eq.s32.totalorder %v2220, %v2235
        %vm2291 = vcmp.eq.s32.totalorder %v2220, %v2239
        %vm2292 = vcmp.eq.s32.totalorder %v2221, %v2227
        %vm2293 = vcmp.eq.s32.totalorder %v2221, %v2231
        %vm2294 = vcmp.eq.s32.totalorder %v2221, %v2235
        %vm2295 = vcmp.eq.s32.totalorder %v2221, %v2239
        %vm2296 = vcmp.eq.s32.totalorder %v2222, %v2227
        %vm2297 = vcmp.eq.s32.totalorder %v2222, %v2231
        %vm2298 = vcmp.eq.s32.totalorder %v2222, %v2235
        %vm2299 = vcmp.eq.s32.totalorder %v2222, %v2239
        %vm2300 = vcmp.eq.s32.totalorder %v2223, %v2227
        %vm2301 = vcmp.eq.s32.totalorder %v2223, %v2231
        %vm2302 = vcmp.eq.s32.totalorder %v2223, %v2235
        %vm2303 = vcmp.eq.s32.totalorder %v2223, %v2239
        %v2304 = vsel %vm2240, 1, 0
        %v2305 = vsel %vm2241, 1, 0
        %v2306 = vsel %vm2242, 1, 0
        %v2307 = vsel %vm2243, 1, 0
        %v2308 = vsel %vm2244, 1, 0
        %v2309 = vsel %vm2245, 1, 0
        %v2310 = vsel %vm2246, 1, 0
        %v2311 = vsel %vm2247, 1, 0
        %v2312 = vsel %vm2248, 1, 0
        %v2313 = vsel %vm2249, 1, 0
        %v2314 = vsel %vm2250, 1, 0
        %v2315 = vsel %vm2251, 1, 0
        %v2316 = vsel %vm2252, 1, 0
        %v2317 = vsel %vm2253, 1, 0
        %v2318 = vsel %vm2254, 1, 0
        %v2319 = vsel %vm2255, 1, 0
        %v2320 = vsel %vm2256, 1, 0
        %v2321 = vsel %vm2257, 1, 0
        %v2322 = vsel %vm2258, 1, 0
        %v2323 = vsel %vm2259, 1, 0
        %v2324 = vsel %vm2260, 1, 0
        %v2325 = vsel %vm2261, 1, 0
        %v2326 = vsel %vm2262, 1, 0
        %v2327 = vsel %vm2263, 1, 0
        %v2328 = vsel %vm2264, 1, 0
        %v2329 = vsel %vm2265, 1, 0
        %v2330 = vsel %vm2266, 1, 0
        %v2331 = vsel %vm2267, 1, 0
        %v2332 = vsel %vm2268, 1, 0
        %v2333 = vsel %vm2269, 1, 0
        %v2334 = vsel %vm2270, 1, 0
        %v2335 = vsel %vm2271, 1, 0
        %v2336 = vsel %vm2272, 1, 0
        %v2337 = vsel %vm2273, 1, 0
        %v2338 = vsel %vm2274, 1, 0
        %v2339 = vsel %vm2275, 1, 0
        %v2340 = vsel %vm2276, 1, 0
        %v2341 = vsel %vm2277, 1, 0
        %v2342 = vsel %vm2278, 1, 0
        %v2343 = vsel %vm2279, 1, 0
        %v2344 = vsel %vm2280, 1, 0
        %v2345 = vsel %vm2281, 1, 0
        %v2346 = vsel %vm2282, 1, 0
        %v2347 = vsel %vm2283, 1, 0
        %v2348 = vsel %vm2284, 1, 0
        %v2349 = vsel %vm2285, 1, 0
        %v2350 = vsel %vm2286, 1, 0
        %v2351 = vsel %vm2287, 1, 0
        %v2352 = vsel %vm2288, 1, 0
        %v2353 = vsel %vm2289, 1, 0
        %v2354 = vsel %vm2290, 1, 0
        %v2355 = vsel %vm2291, 1, 0
        %v2356 = vsel %vm2292, 1, 0
        %v2357 = vsel %vm2293, 1, 0
        %v2358 = vsel %vm2294, 1, 0
        %v2359 = vsel %vm2295, 1, 0
        %v2360 = vsel %vm2296, 1, 0
        %v2361 = vsel %vm2297, 1, 0
        %v2362 = vsel %vm2298, 1, 0
        %v2363 = vsel %vm2299, 1, 0
        %v2364 = vsel %vm2300, 1, 0
        %v2365 = vsel %vm2301, 1, 0
        %v2366 = vsel %vm2302, 1, 0
        %v2367 = vsel %vm2303, 1, 0
        %v2368 = vcvt.s32.f32 %v2304
        %v2369 = vcvt.s32.f32 %v2305
        %v2370 = vcvt.s32.f32 %v2306
        %v2371 = vcvt.s32.f32 %v2307
        %v2372 = vcvt.s32.f32 %v2308
        %v2373 = vcvt.s32.f32 %v2309
        %v2374 = vcvt.s32.f32 %v2310
        %v2375 = vcvt.s32.f32 %v2311
        %v2376 = vcvt.s32.f32 %v2312
        %v2377 = vcvt.s32.f32 %v2313
        %v2378 = vcvt.s32.f32 %v2314
        %v2379 = vcvt.s32.f32 %v2315
        %v2380 = vcvt.s32.f32 %v2316
        %v2381 = vcvt.s32.f32 %v2317
        %v2382 = vcvt.s32.f32 %v2318
        %v2383 = vcvt.s32.f32 %v2319
        %v2384 = vcvt.s32.f32 %v2320
        %v2385 = vcvt.s32.f32 %v2321
        %v2386 = vcvt.s32.f32 %v2322
        %v2387 = vcvt.s32.f32 %v2323
        %v2388 = vcvt.s32.f32 %v2324
        %v2389 = vcvt.s32.f32 %v2325
        %v2390 = vcvt.s32.f32 %v2326
        %v2391 = vcvt.s32.f32 %v2327
        %v2392 = vcvt.s32.f32 %v2328
        %v2393 = vcvt.s32.f32 %v2329
        %v2394 = vcvt.s32.f32 %v2330
        %v2395 = vcvt.s32.f32 %v2331
        %v2396 = vcvt.s32.f32 %v2332
        %v2397 = vcvt.s32.f32 %v2333
        %v2398 = vcvt.s32.f32 %v2334
        %v2399 = vcvt.s32.f32 %v2335
        %v2400 = vcvt.s32.f32 %v2336
        %v2401 = vcvt.s32.f32 %v2337
        %v2402 = vcvt.s32.f32 %v2338
        %v2403 = vcvt.s32.f32 %v2339
        %v2404 = vcvt.s32.f32 %v2340
        %v2405 = vcvt.s32.f32 %v2341
        %v2406 = vcvt.s32.f32 %v2342
        %v2407 = vcvt.s32.f32 %v2343
        %v2408 = vcvt.s32.f32 %v2344
        %v2409 = vcvt.s32.f32 %v2345
        %v2410 = vcvt.s32.f32 %v2346
        %v2411 = vcvt.s32.f32 %v2347
        %v2412 = vcvt.s32.f32 %v2348
        %v2413 = vcvt.s32.f32 %v2349
        %v2414 = vcvt.s32.f32 %v2350
        %v2415 = vcvt.s32.f32 %v2351
        %v2416 = vcvt.s32.f32 %v2352
        %v2417 = vcvt.s32.f32 %v2353
        %v2418 = vcvt.s32.f32 %v2354
        %v2419 = vcvt.s32.f32 %v2355
        %v2420 = vcvt.s32.f32 %v2356
        %v2421 = vcvt.s32.f32 %v2357
        %v2422 = vcvt.s32.f32 %v2358
        %v2423 = vcvt.s32.f32 %v2359
        %v2424 = vcvt.s32.f32 %v2360
        %v2425 = vcvt.s32.f32 %v2361
        %v2426 = vcvt.s32.f32 %v2362
        %v2427 = vcvt.s32.f32 %v2363
        %v2428 = vcvt.s32.f32 %v2364
        %v2429 = vcvt.s32.f32 %v2365
        %v2430 = vcvt.s32.f32 %v2366
        %v2431 = vcvt.s32.f32 %v2367
        %v2432 = vld [vmem:[#allocation9] sm:$0xff]
        %v2433 = vld [vmem:[#allocation9 + $0x8] sm:$0xff]
        %v2434 = vld [vmem:[#allocation9 + $0x10] sm:$0xff]
        %v2435 = vld [vmem:[#allocation9 + $0x18] sm:$0xff]
        %v2436 = vand.u32 %v2429, 4294901760
        %2437 = vmatprep.subr.mxu0 %v2436
        %v2438 = vand.u32 %v2428, 4294901760
        %2439 = vmatpush1.msra.mxu0 %v2438
        %v2440 = vand.u32 %v2425, 4294901760
        %2441 = vmatprep.subr.mxu0 %v2440
        %v2442 = vand.u32 %v2424, 4294901760
        %2443 = vmatpush1.msra.mxu0 %v2442
        %v2444 = vand.u32 %v2421, 4294901760
        %2445 = vmatprep.subr.mxu0 %v2444
        %v2446 = vand.u32 %v2420, 4294901760
        %2447 = vmatpush1.msra.mxu0 %v2446
        %v2448 = vand.u32 %v2417, 4294901760
        %2449 = vmatprep.subr.mxu0 %v2448
        %v2450 = vand.u32 %v2416, 4294901760
        %2451 = vmatpush1.msra.mxu0 %v2450
        %v2452 = vand.u32 %v2413, 4294901760
        %2453 = vmatprep.subr.mxu0 %v2452
        %v2454 = vand.u32 %v2412, 4294901760
        %2455 = vmatpush1.msra.mxu0 %v2454
        %v2456 = vand.u32 %v2409, 4294901760
        %2457 = vmatprep.subr.mxu0 %v2456
        %v2458 = vand.u32 %v2408, 4294901760
        %2459 = vmatpush1.msra.mxu0 %v2458
        %v2460 = vand.u32 %v2405, 4294901760
        %2461 = vmatprep.subr.mxu0 %v2460
        %v2462 = vand.u32 %v2404, 4294901760
        %2463 = vmatpush1.msra.mxu0 %v2462
        %v2464 = vand.u32 %v2401, 4294901760
        %2465 = vmatprep.subr.mxu0 %v2464
        %v2466 = vand.u32 %v2400, 4294901760
        %2467 = vmatpush1.msra.mxu0 %v2466
        %v2468 = vand.u32 %v2397, 4294901760
        %2469 = vmatprep.subr.mxu0 %v2468
        %v2470 = vand.u32 %v2396, 4294901760
        %2471 = vmatpush1.msra.mxu0 %v2470
        %v2472 = vand.u32 %v2393, 4294901760
        %2473 = vmatprep.subr.mxu0 %v2472
        %v2474 = vand.u32 %v2392, 4294901760
        %2475 = vmatpush1.msra.mxu0 %v2474
        %v2476 = vand.u32 %v2389, 4294901760
        %2477 = vmatprep.subr.mxu0 %v2476
        %v2478 = vand.u32 %v2388, 4294901760
        %2479 = vmatpush1.msra.mxu0 %v2478
        %v2480 = vand.u32 %v2385, 4294901760
        %2481 = vmatprep.subr.mxu0 %v2480
        %v2482 = vand.u32 %v2384, 4294901760
        %2483 = vmatpush1.msra.mxu0 %v2482
        %v2484 = vand.u32 %v2381, 4294901760
        %2485 = vmatprep.subr.mxu0 %v2484
        %v2486 = vand.u32 %v2380, 4294901760
        %2487 = vmatpush1.msra.mxu0 %v2486
        %v2488 = vand.u32 %v2377, 4294901760
        %2489 = vmatprep.subr.mxu0 %v2488
        %v2490 = vand.u32 %v2376, 4294901760
        %2491 = vmatpush1.msra.mxu0 %v2490
        %v2492 = vand.u32 %v2373, 4294901760
        %2493 = vmatprep.subr.mxu0 %v2492
        %v2494 = vand.u32 %v2372, 4294901760
        %2495 = vmatpush1.msra.mxu0 %v2494
        %v2496 = vand.u32 %v2369, 4294901760
        %2497 = vmatprep.subr.mxu0 %v2496
        %v2498 = vand.u32 %v2368, 4294901760
        %2499 = vmatpush1.msra.mxu0 %v2498
        %2500 = vmatprep.subr.mxu0 0.0
        %2501 = vmatpush2.msra.mxu0 0.0
        %2502 = vmatprep.subr.mxu0 0.0
        %2503 = vmatpush2.msra.mxu0 0.0
        %2504 = vmatprep.subr.mxu0 0.0
        %2505 = vmatpush2.msra.mxu0 0.0
        %2506 = vmatprep.subr.mxu0 0.0
        %2507 = vmatpush2.msra.mxu0 0.0
        %2508 = vmatprep.subr.mxu0 0.0
        %2509 = vmatpush2.msra.mxu0 0.0
        %2510 = vmatprep.subr.mxu0 0.0
        %2511 = vmatpush2.msra.mxu0 0.0
        %2512 = vmatprep.subr.mxu0 0.0
        %2513 = vmatpush2.msra.mxu0 0.0
        %2514 = vmatprep.subr.mxu0 0.0
        %2515 = vmatpush2.msra.mxu0 0.0
        %2516 = vmatprep.subr.mxu0 0.0
        %2517 = vmatpush2.msra.mxu0 0.0
        %2518 = vmatprep.subr.mxu0 0.0
        %2519 = vmatpush2.msra.mxu0 0.0
        %2520 = vmatprep.subr.mxu0 0.0
        %2521 = vmatpush2.msra.mxu0 0.0
        %2522 = vmatprep.subr.mxu0 0.0
        %2523 = vmatpush2.msra.mxu0 0.0
        %2524 = vmatprep.subr.mxu0 0.0
        %2525 = vmatpush2.msra.mxu0 0.0
        %2526 = vmatprep.subr.mxu0 0.0
        %2527 = vmatpush2.msra.mxu0 0.0
        %2528 = vmatprep.subr.mxu0 0.0
        %2529 = vmatpush2.msra.mxu0 0.0
        %2530 = vmatprep.subr.mxu0 0.0
        %2531 = vmatpush2.msra.mxu0 0.0
        %2532 = vmatprep.mubr.f32.mxu0 0.0
        %v2533 = vand.u32 %v2432, 4294901760
        %v2534 = vsub.f32 %v2432, %v2533
        %v2535 = vand.u32 %v2534, 4294901760
        %v2536 = vsub.f32 %v2534, %v2535
        %v2537 = vand.u32 %v2536, 4294901760
        %2538 = vmatmul.mubr.f32.gmra.mxu0 %v2537
        %v2539 = vpop.f32.mrf.mxu0
        %v2540 = vadd.f32 0.0, %v2539
        %v2541 = vpop.f32.mrf.mxu0
        %v2542 = vadd.f32 0.0, %v2541
        %2543 = vmatprep.mubr.f32.mxu0 0.0
        %v2544 = vand.u32 %v2433, 4294901760
        %v2545 = vsub.f32 %v2433, %v2544
        %v2546 = vand.u32 %v2545, 4294901760
        %v2547 = vsub.f32 %v2545, %v2546
        %v2548 = vand.u32 %v2547, 4294901760
        %2549 = vmatmul.mubr.f32.gmra.mxu0 %v2548
        %v2550 = vpop.f32.mrf.mxu0
        %v2551 = vadd.f32 0.0, %v2550
        %v2552 = vpop.f32.mrf.mxu0
        %v2553 = vadd.f32 0.0, %v2552
        %2554 = vmatprep.mubr.f32.mxu0 0.0
        %v2555 = vand.u32 %v2434, 4294901760
        %v2556 = vsub.f32 %v2434, %v2555
        %v2557 = vand.u32 %v2556, 4294901760
        %v2558 = vsub.f32 %v2556, %v2557
        %v2559 = vand.u32 %v2558, 4294901760
        %2560 = vmatmul.mubr.f32.gmra.mxu0 %v2559
        %v2561 = vpop.f32.mrf.mxu0
        %v2562 = vadd.f32 0.0, %v2561
        %v2563 = vpop.f32.mrf.mxu0
        %v2564 = vadd.f32 0.0, %v2563
        %2565 = vmatprep.mubr.f32.mxu0 0.0
        %v2566 = vand.u32 %v2435, 4294901760
        %v2567 = vsub.f32 %v2435, %v2566
        %v2568 = vand.u32 %v2567, 4294901760
        %v2569 = vsub.f32 %v2567, %v2568
        %v2570 = vand.u32 %v2569, 4294901760
        %2571 = vmatmul.mubr.f32.gmra.mxu0 %v2570
        %v2572 = vpop.f32.mrf.mxu0
        %v2573 = vadd.f32 0.0, %v2572
        %v2574 = vpop.f32.mrf.mxu0
        %v2575 = vadd.f32 0.0, %v2574
        %2576 = vdwg.mxu0
        %v2577 = vand.u32 %v2429, 4294901760
        %v2578 = vsub.f32 %v2429, %v2577
        %v2579 = vand.u32 %v2578, 4294901760
        %v2580 = vsub.f32 %v2578, %v2579
        %v2581 = vand.u32 %v2580, 4294901760
        %2582 = vmatprep.subr.mxu0 %v2581
        %v2583 = vand.u32 %v2428, 4294901760
        %v2584 = vsub.f32 %v2428, %v2583
        %v2585 = vand.u32 %v2584, 4294901760
        %v2586 = vsub.f32 %v2584, %v2585
        %v2587 = vand.u32 %v2586, 4294901760
        %2588 = vmatpush1.msra.mxu0 %v2587
        %v2589 = vand.u32 %v2425, 4294901760
        %v2590 = vsub.f32 %v2425, %v2589
        %v2591 = vand.u32 %v2590, 4294901760
        %v2592 = vsub.f32 %v2590, %v2591
        %v2593 = vand.u32 %v2592, 4294901760
        %2594 = vmatprep.subr.mxu0 %v2593
        %v2595 = vand.u32 %v2424, 4294901760
        %v2596 = vsub.f32 %v2424, %v2595
        %v2597 = vand.u32 %v2596, 4294901760
        %v2598 = vsub.f32 %v2596, %v2597
        %v2599 = vand.u32 %v2598, 4294901760
        %2600 = vmatpush1.msra.mxu0 %v2599
        %v2601 = vand.u32 %v2421, 4294901760
        %v2602 = vsub.f32 %v2421, %v2601
        %v2603 = vand.u32 %v2602, 4294901760
        %v2604 = vsub.f32 %v2602, %v2603
        %v2605 = vand.u32 %v2604, 4294901760
        %2606 = vmatprep.subr.mxu0 %v2605
        %v2607 = vand.u32 %v2420, 4294901760
        %v2608 = vsub.f32 %v2420, %v2607
        %v2609 = vand.u32 %v2608, 4294901760
        %v2610 = vsub.f32 %v2608, %v2609
        %v2611 = vand.u32 %v2610, 4294901760
        %2612 = vmatpush1.msra.mxu0 %v2611
        %v2613 = vand.u32 %v2417, 4294901760
        %v2614 = vsub.f32 %v2417, %v2613
        %v2615 = vand.u32 %v2614, 4294901760
        %v2616 = vsub.f32 %v2614, %v2615
        %v2617 = vand.u32 %v2616, 4294901760
        %2618 = vmatprep.subr.mxu0 %v2617
        %v2619 = vand.u32 %v2416, 4294901760
        %v2620 = vsub.f32 %v2416, %v2619
        %v2621 = vand.u32 %v2620, 4294901760
        %v2622 = vsub.f32 %v2620, %v2621
        %v2623 = vand.u32 %v2622, 4294901760
        %2624 = vmatpush1.msra.mxu0 %v2623
        %v2625 = vand.u32 %v2413, 4294901760
        %v2626 = vsub.f32 %v2413, %v2625
        %v2627 = vand.u32 %v2626, 4294901760
        %v2628 = vsub.f32 %v2626, %v2627
        %v2629 = vand.u32 %v2628, 4294901760
        %2630 = vmatprep.subr.mxu0 %v2629
        %v2631 = vand.u32 %v2412, 4294901760
        %v2632 = vsub.f32 %v2412, %v2631
        %v2633 = vand.u32 %v2632, 4294901760
        %v2634 = vsub.f32 %v2632, %v2633
        %v2635 = vand.u32 %v2634, 4294901760
        %2636 = vmatpush1.msra.mxu0 %v2635
        %v2637 = vand.u32 %v2409, 4294901760
        %v2638 = vsub.f32 %v2409, %v2637
        %v2639 = vand.u32 %v2638, 4294901760
        %v2640 = vsub.f32 %v2638, %v2639
        %v2641 = vand.u32 %v2640, 4294901760
        %2642 = vmatprep.subr.mxu0 %v2641
        %v2643 = vand.u32 %v2408, 4294901760
        %v2644 = vsub.f32 %v2408, %v2643
        %v2645 = vand.u32 %v2644, 4294901760
        %v2646 = vsub.f32 %v2644, %v2645
        %v2647 = vand.u32 %v2646, 4294901760
        %2648 = vmatpush1.msra.mxu0 %v2647
        %v2649 = vand.u32 %v2405, 4294901760
        %v2650 = vsub.f32 %v2405, %v2649
        %v2651 = vand.u32 %v2650, 4294901760
        %v2652 = vsub.f32 %v2650, %v2651
        %v2653 = vand.u32 %v2652, 4294901760
        %2654 = vmatprep.subr.mxu0 %v2653
        %v2655 = vand.u32 %v2404, 4294901760
        %v2656 = vsub.f32 %v2404, %v2655
        %v2657 = vand.u32 %v2656, 4294901760
        %v2658 = vsub.f32 %v2656, %v2657
        %v2659 = vand.u32 %v2658, 4294901760
        %2660 = vmatpush1.msra.mxu0 %v2659
        %v2661 = vand.u32 %v2401, 4294901760
        %v2662 = vsub.f32 %v2401, %v2661
        %v2663 = vand.u32 %v2662, 4294901760
        %v2664 = vsub.f32 %v2662, %v2663
        %v2665 = vand.u32 %v2664, 4294901760
        %2666 = vmatprep.subr.mxu0 %v2665
        %v2667 = vand.u32 %v2400, 4294901760
        %v2668 = vsub.f32 %v2400, %v2667
        %v2669 = vand.u32 %v2668, 4294901760
        %v2670 = vsub.f32 %v2668, %v2669
        %v2671 = vand.u32 %v2670, 4294901760
        %2672 = vmatpush1.msra.mxu0 %v2671
        %v2673 = vand.u32 %v2397, 4294901760
        %v2674 = vsub.f32 %v2397, %v2673
        %v2675 = vand.u32 %v2674, 4294901760
        %v2676 = vsub.f32 %v2674, %v2675
        %v2677 = vand.u32 %v2676, 4294901760
        %2678 = vmatprep.subr.mxu0 %v2677
        %v2679 = vand.u32 %v2396, 4294901760
        %v2680 = vsub.f32 %v2396, %v2679
        %v2681 = vand.u32 %v2680, 4294901760
        %v2682 = vsub.f32 %v2680, %v2681
        %v2683 = vand.u32 %v2682, 4294901760
        %2684 = vmatpush1.msra.mxu0 %v2683
        %v2685 = vand.u32 %v2393, 4294901760
        %v2686 = vsub.f32 %v2393, %v2685
        %v2687 = vand.u32 %v2686, 4294901760
        %v2688 = vsub.f32 %v2686, %v2687
        %v2689 = vand.u32 %v2688, 4294901760
        %2690 = vmatprep.subr.mxu0 %v2689
        %v2691 = vand.u32 %v2392, 4294901760
        %v2692 = vsub.f32 %v2392, %v2691
        %v2693 = vand.u32 %v2692, 4294901760
        %v2694 = vsub.f32 %v2692, %v2693
        %v2695 = vand.u32 %v2694, 4294901760
        %2696 = vmatpush1.msra.mxu0 %v2695
        %v2697 = vand.u32 %v2389, 4294901760
        %v2698 = vsub.f32 %v2389, %v2697
        %v2699 = vand.u32 %v2698, 4294901760
        %v2700 = vsub.f32 %v2698, %v2699
        %v2701 = vand.u32 %v2700, 4294901760
        %2702 = vmatprep.subr.mxu0 %v2701
        %v2703 = vand.u32 %v2388, 4294901760
        %v2704 = vsub.f32 %v2388, %v2703
        %v2705 = vand.u32 %v2704, 4294901760
        %v2706 = vsub.f32 %v2704, %v2705
        %v2707 = vand.u32 %v2706, 4294901760
        %2708 = vmatpush1.msra.mxu0 %v2707
        %v2709 = vand.u32 %v2385, 4294901760
        %v2710 = vsub.f32 %v2385, %v2709
        %v2711 = vand.u32 %v2710, 4294901760
        %v2712 = vsub.f32 %v2710, %v2711
        %v2713 = vand.u32 %v2712, 4294901760
        %2714 = vmatprep.subr.mxu0 %v2713
        %v2715 = vand.u32 %v2384, 4294901760
        %v2716 = vsub.f32 %v2384, %v2715
        %v2717 = vand.u32 %v2716, 4294901760
        %v2718 = vsub.f32 %v2716, %v2717
        %v2719 = vand.u32 %v2718, 4294901760
        %2720 = vmatpush1.msra.mxu0 %v2719
        %v2721 = vand.u32 %v2381, 4294901760
        %v2722 = vsub.f32 %v2381, %v2721
        %v2723 = vand.u32 %v2722, 4294901760
        %v2724 = vsub.f32 %v2722, %v2723
        %v2725 = vand.u32 %v2724, 4294901760
        %2726 = vmatprep.subr.mxu0 %v2725
        %v2727 = vand.u32 %v2380, 4294901760
        %v2728 = vsub.f32 %v2380, %v2727
        %v2729 = vand.u32 %v2728, 4294901760
        %v2730 = vsub.f32 %v2728, %v2729
        %v2731 = vand.u32 %v2730, 4294901760
        %2732 = vmatpush1.msra.mxu0 %v2731
        %v2733 = vand.u32 %v2377, 4294901760
        %v2734 = vsub.f32 %v2377, %v2733
        %v2735 = vand.u32 %v2734, 4294901760
        %v2736 = vsub.f32 %v2734, %v2735
        %v2737 = vand.u32 %v2736, 4294901760
        %2738 = vmatprep.subr.mxu0 %v2737
        %v2739 = vand.u32 %v2376, 4294901760
        %v2740 = vsub.f32 %v2376, %v2739
        %v2741 = vand.u32 %v2740, 4294901760
        %v2742 = vsub.f32 %v2740, %v2741
        %v2743 = vand.u32 %v2742, 4294901760
        %2744 = vmatpush1.msra.mxu0 %v2743
        %v2745 = vand.u32 %v2373, 4294901760
        %v2746 = vsub.f32 %v2373, %v2745
        %v2747 = vand.u32 %v2746, 4294901760
        %v2748 = vsub.f32 %v2746, %v2747
        %v2749 = vand.u32 %v2748, 4294901760
        %2750 = vmatprep.subr.mxu0 %v2749
        %v2751 = vand.u32 %v2372, 4294901760
        %v2752 = vsub.f32 %v2372, %v2751
        %v2753 = vand.u32 %v2752, 4294901760
        %v2754 = vsub.f32 %v2752, %v2753
        %v2755 = vand.u32 %v2754, 4294901760
        %2756 = vmatpush1.msra.mxu0 %v2755
        %v2757 = vand.u32 %v2369, 4294901760
        %v2758 = vsub.f32 %v2369, %v2757
        %v2759 = vand.u32 %v2758, 4294901760
        %v2760 = vsub.f32 %v2758, %v2759
        %v2761 = vand.u32 %v2760, 4294901760
        %2762 = vmatprep.subr.mxu0 %v2761
        %v2763 = vand.u32 %v2368, 4294901760
        %v2764 = vsub.f32 %v2368, %v2763
        %v2765 = vand.u32 %v2764, 4294901760
        %v2766 = vsub.f32 %v2764, %v2765
        %v2767 = vand.u32 %v2766, 4294901760
        %2768 = vmatpush1.msra.mxu0 %v2767
        %2769 = vmatprep.subr.mxu0 0.0
        %2770 = vmatpush2.msra.mxu0 0.0
        %2771 = vmatprep.subr.mxu0 0.0
        %2772 = vmatpush2.msra.mxu0 0.0
        %2773 = vmatprep.subr.mxu0 0.0
        %2774 = vmatpush2.msra.mxu0 0.0
        %2775 = vmatprep.subr.mxu0 0.0
        %2776 = vmatpush2.msra.mxu0 0.0
        %2777 = vmatprep.subr.mxu0 0.0
        %2778 = vmatpush2.msra.mxu0 0.0
        %2779 = vmatprep.subr.mxu0 0.0
        %2780 = vmatpush2.msra.mxu0 0.0
        %2781 = vmatprep.subr.mxu0 0.0
        %2782 = vmatpush2.msra.mxu0 0.0
        %2783 = vmatprep.subr.mxu0 0.0
        %2784 = vmatpush2.msra.mxu0 0.0
        %2785 = vmatprep.subr.mxu0 0.0
        %2786 = vmatpush2.msra.mxu0 0.0
        %2787 = vmatprep.subr.mxu0 0.0
        %2788 = vmatpush2.msra.mxu0 0.0
        %2789 = vmatprep.subr.mxu0 0.0
        %2790 = vmatpush2.msra.mxu0 0.0
        %2791 = vmatprep.subr.mxu0 0.0
        %2792 = vmatpush2.msra.mxu0 0.0
        %2793 = vmatprep.subr.mxu0 0.0
        %2794 = vmatpush2.msra.mxu0 0.0
        %2795 = vmatprep.subr.mxu0 0.0
        %2796 = vmatpush2.msra.mxu0 0.0
        %2797 = vmatprep.subr.mxu0 0.0
        %2798 = vmatpush2.msra.mxu0 0.0
        %2799 = vmatprep.subr.mxu0 0.0
        %2800 = vmatpush2.msra.mxu0 0.0
        %2801 = vmatprep.mubr.f32.mxu0 0.0
        %v2802 = vand.u32 %v2432, 4294901760
        %2803 = vmatmul.mubr.f32.gmra.mxu0 %v2802
        %v2804 = vpop.f32.mrf.mxu0
        %v2805 = vadd.f32 %v2540, %v2804
        %v2806 = vpop.f32.mrf.mxu0
        %v2807 = vadd.f32 %v2542, %v2806
        %2808 = vmatprep.mubr.f32.mxu0 0.0
        %v2809 = vand.u32 %v2433, 4294901760
        %2810 = vmatmul.mubr.f32.gmra.mxu0 %v2809
        %v2811 = vpop.f32.mrf.mxu0
        %v2812 = vadd.f32 %v2551, %v2811
        %v2813 = vpop.f32.mrf.mxu0
        %v2814 = vadd.f32 %v2553, %v2813
        %2815 = vmatprep.mubr.f32.mxu0 0.0
        %v2816 = vand.u32 %v2434, 4294901760
        %2817 = vmatmul.mubr.f32.gmra.mxu0 %v2816
        %v2818 = vpop.f32.mrf.mxu0
        %v2819 = vadd.f32 %v2562, %v2818
        %v2820 = vpop.f32.mrf.mxu0
        %v2821 = vadd.f32 %v2564, %v2820
        %2822 = vmatprep.mubr.f32.mxu0 0.0
        %v2823 = vand.u32 %v2435, 4294901760
        %2824 = vmatmul.mubr.f32.gmra.mxu0 %v2823
        %v2825 = vpop.f32.mrf.mxu0
        %v2826 = vadd.f32 %v2573, %v2825
        %v2827 = vpop.f32.mrf.mxu0
        %v2828 = vadd.f32 %v2575, %v2827
        %2829 = vdwg.mxu0
        %v2830 = vand.u32 %v2429, 4294901760
        %v2831 = vsub.f32 %v2429, %v2830
        %2832 = vmatprep.subr.mxu0 %v2831
        %v2833 = vand.u32 %v2428, 4294901760
        %v2834 = vsub.f32 %v2428, %v2833
        %2835 = vmatpush1.msra.mxu0 %v2834
        %v2836 = vand.u32 %v2425, 4294901760
        %v2837 = vsub.f32 %v2425, %v2836
        %2838 = vmatprep.subr.mxu0 %v2837
        %v2839 = vand.u32 %v2424, 4294901760
        %v2840 = vsub.f32 %v2424, %v2839
        %2841 = vmatpush1.msra.mxu0 %v2840
        %v2842 = vand.u32 %v2421, 4294901760
        %v2843 = vsub.f32 %v2421, %v2842
        %2844 = vmatprep.subr.mxu0 %v2843
        %v2845 = vand.u32 %v2420, 4294901760
        %v2846 = vsub.f32 %v2420, %v2845
        %2847 = vmatpush1.msra.mxu0 %v2846
        %v2848 = vand.u32 %v2417, 4294901760
        %v2849 = vsub.f32 %v2417, %v2848
        %2850 = vmatprep.subr.mxu0 %v2849
        %v2851 = vand.u32 %v2416, 4294901760
        %v2852 = vsub.f32 %v2416, %v2851
        %2853 = vmatpush1.msra.mxu0 %v2852
        %v2854 = vand.u32 %v2413, 4294901760
        %v2855 = vsub.f32 %v2413, %v2854
        %2856 = vmatprep.subr.mxu0 %v2855
        %v2857 = vand.u32 %v2412, 4294901760
        %v2858 = vsub.f32 %v2412, %v2857
        %2859 = vmatpush1.msra.mxu0 %v2858
        %v2860 = vand.u32 %v2409, 4294901760
        %v2861 = vsub.f32 %v2409, %v2860
        %2862 = vmatprep.subr.mxu0 %v2861
        %v2863 = vand.u32 %v2408, 4294901760
        %v2864 = vsub.f32 %v2408, %v2863
        %2865 = vmatpush1.msra.mxu0 %v2864
        %v2866 = vand.u32 %v2405, 4294901760
        %v2867 = vsub.f32 %v2405, %v2866
        %2868 = vmatprep.subr.mxu0 %v2867
        %v2869 = vand.u32 %v2404, 4294901760
        %v2870 = vsub.f32 %v2404, %v2869
        %2871 = vmatpush1.msra.mxu0 %v2870
        %v2872 = vand.u32 %v2401, 4294901760
        %v2873 = vsub.f32 %v2401, %v2872
        %2874 = vmatprep.subr.mxu0 %v2873
        %v2875 = vand.u32 %v2400, 4294901760
        %v2876 = vsub.f32 %v2400, %v2875
        %2877 = vmatpush1.msra.mxu0 %v2876
        %v2878 = vand.u32 %v2397, 4294901760
        %v2879 = vsub.f32 %v2397, %v2878
        %2880 = vmatprep.subr.mxu0 %v2879
        %v2881 = vand.u32 %v2396, 4294901760
        %v2882 = vsub.f32 %v2396, %v2881
        %2883 = vmatpush1.msra.mxu0 %v2882
        %v2884 = vand.u32 %v2393, 4294901760
        %v2885 = vsub.f32 %v2393, %v2884
        %2886 = vmatprep.subr.mxu0 %v2885
        %v2887 = vand.u32 %v2392, 4294901760
        %v2888 = vsub.f32 %v2392, %v2887
        %2889 = vmatpush1.msra.mxu0 %v2888
        %v2890 = vand.u32 %v2389, 4294901760
        %v2891 = vsub.f32 %v2389, %v2890
        %2892 = vmatprep.subr.mxu0 %v2891
        %v2893 = vand.u32 %v2388, 4294901760
        %v2894 = vsub.f32 %v2388, %v2893
        %2895 = vmatpush1.msra.mxu0 %v2894
        %v2896 = vand.u32 %v2385, 4294901760
        %v2897 = vsub.f32 %v2385, %v2896
        %2898 = vmatprep.subr.mxu0 %v2897
        %v2899 = vand.u32 %v2384, 4294901760
        %v2900 = vsub.f32 %v2384, %v2899
        %2901 = vmatpush1.msra.mxu0 %v2900
        %v2902 = vand.u32 %v2381, 4294901760
        %v2903 = vsub.f32 %v2381, %v2902
        %2904 = vmatprep.subr.mxu0 %v2903
        %v2905 = vand.u32 %v2380, 4294901760
        %v2906 = vsub.f32 %v2380, %v2905
        %2907 = vmatpush1.msra.mxu0 %v2906
        %v2908 = vand.u32 %v2377, 4294901760
        %v2909 = vsub.f32 %v2377, %v2908
        %2910 = vmatprep.subr.mxu0 %v2909
        %v2911 = vand.u32 %v2376, 4294901760
        %v2912 = vsub.f32 %v2376, %v2911
        %2913 = vmatpush1.msra.mxu0 %v2912
        %v2914 = vand.u32 %v2373, 4294901760
        %v2915 = vsub.f32 %v2373, %v2914
        %2916 = vmatprep.subr.mxu0 %v2915
        %v2917 = vand.u32 %v2372, 4294901760
        %v2918 = vsub.f32 %v2372, %v2917
        %2919 = vmatpush1.msra.mxu0 %v2918
        %v2920 = vand.u32 %v2369, 4294901760
        %v2921 = vsub.f32 %v2369, %v2920
        %2922 = vmatprep.subr.mxu0 %v2921
        %v2923 = vand.u32 %v2368, 4294901760
        %v2924 = vsub.f32 %v2368, %v2923
        %2925 = vmatpush1.msra.mxu0 %v2924
        %2926 = vmatprep.subr.mxu0 0.0
        %2927 = vmatpush2.msra.mxu0 0.0
        %2928 = vmatprep.subr.mxu0 0.0
        %2929 = vmatpush2.msra.mxu0 0.0
        %2930 = vmatprep.subr.mxu0 0.0
        %2931 = vmatpush2.msra.mxu0 0.0
        %2932 = vmatprep.subr.mxu0 0.0
        %2933 = vmatpush2.msra.mxu0 0.0
        %2934 = vmatprep.subr.mxu0 0.0
        %2935 = vmatpush2.msra.mxu0 0.0
        %2936 = vmatprep.subr.mxu0 0.0
        %2937 = vmatpush2.msra.mxu0 0.0
        %2938 = vmatprep.subr.mxu0 0.0
        %2939 = vmatpush2.msra.mxu0 0.0
        %2940 = vmatprep.subr.mxu0 0.0
        %2941 = vmatpush2.msra.mxu0 0.0
        %2942 = vmatprep.subr.mxu0 0.0
        %2943 = vmatpush2.msra.mxu0 0.0
        %2944 = vmatprep.subr.mxu0 0.0
        %2945 = vmatpush2.msra.mxu0 0.0
        %2946 = vmatprep.subr.mxu0 0.0
        %2947 = vmatpush2.msra.mxu0 0.0
        %2948 = vmatprep.subr.mxu0 0.0
        %2949 = vmatpush2.msra.mxu0 0.0
        %2950 = vmatprep.subr.mxu0 0.0
        %2951 = vmatpush2.msra.mxu0 0.0
        %2952 = vmatprep.subr.mxu0 0.0
        %2953 = vmatpush2.msra.mxu0 0.0
        %2954 = vmatprep.subr.mxu0 0.0
        %2955 = vmatpush2.msra.mxu0 0.0
        %2956 = vmatprep.subr.mxu0 0.0
        %2957 = vmatpush2.msra.mxu0 0.0
        %2958 = vmatprep.mubr.f32.mxu0 0.0
        %v2959 = vand.u32 %v2432, 4294901760
        %v2960 = vsub.f32 %v2432, %v2959
        %2961 = vmatmul.mubr.f32.gmra.mxu0 %v2960
        %v2962 = vpop.f32.mrf.mxu0
        %v2963 = vadd.f32 %v2805, %v2962
        %v2964 = vpop.f32.mrf.mxu0
        %v2965 = vadd.f32 %v2807, %v2964
        %2966 = vmatprep.mubr.f32.mxu0 0.0
        %v2967 = vand.u32 %v2433, 4294901760
        %v2968 = vsub.f32 %v2433, %v2967
        %2969 = vmatmul.mubr.f32.gmra.mxu0 %v2968
        %v2970 = vpop.f32.mrf.mxu0
        %v2971 = vadd.f32 %v2812, %v2970
        %v2972 = vpop.f32.mrf.mxu0
        %v2973 = vadd.f32 %v2814, %v2972
        %2974 = vmatprep.mubr.f32.mxu0 0.0
        %v2975 = vand.u32 %v2434, 4294901760
        %v2976 = vsub.f32 %v2434, %v2975
        %2977 = vmatmul.mubr.f32.gmra.mxu0 %v2976
        %v2978 = vpop.f32.mrf.mxu0
        %v2979 = vadd.f32 %v2819, %v2978
        %v2980 = vpop.f32.mrf.mxu0
        %v2981 = vadd.f32 %v2821, %v2980
        %2982 = vmatprep.mubr.f32.mxu0 0.0
        %v2983 = vand.u32 %v2435, 4294901760
        %v2984 = vsub.f32 %v2435, %v2983
        %2985 = vmatmul.mubr.f32.gmra.mxu0 %v2984
        %v2986 = vpop.f32.mrf.mxu0
        %v2987 = vadd.f32 %v2826, %v2986
        %v2988 = vpop.f32.mrf.mxu0
        %v2989 = vadd.f32 %v2828, %v2988
        %2990 = vdwg.mxu0
        %v2991 = vand.u32 %v2429, 4294901760
        %2992 = vmatprep.subr.mxu0 %v2991
        %v2993 = vand.u32 %v2428, 4294901760
        %2994 = vmatpush1.msra.mxu0 %v2993
        %v2995 = vand.u32 %v2425, 4294901760
        %2996 = vmatprep.subr.mxu0 %v2995
        %v2997 = vand.u32 %v2424, 4294901760
        %2998 = vmatpush1.msra.mxu0 %v2997
        %v2999 = vand.u32 %v2421, 4294901760
        %3000 = vmatprep.subr.mxu0 %v2999
        %v3001 = vand.u32 %v2420, 4294901760
        %3002 = vmatpush1.msra.mxu0 %v3001
        %v3003 = vand.u32 %v2417, 4294901760
        %3004 = vmatprep.subr.mxu0 %v3003
        %v3005 = vand.u32 %v2416, 4294901760
        %3006 = vmatpush1.msra.mxu0 %v3005
        %v3007 = vand.u32 %v2413, 4294901760
        %3008 = vmatprep.subr.mxu0 %v3007
        %v3009 = vand.u32 %v2412, 4294901760
        %3010 = vmatpush1.msra.mxu0 %v3009
        %v3011 = vand.u32 %v2409, 4294901760
        %3012 = vmatprep.subr.mxu0 %v3011
        %v3013 = vand.u32 %v2408, 4294901760
        %3014 = vmatpush1.msra.mxu0 %v3013
        %v3015 = vand.u32 %v2405, 4294901760
        %3016 = vmatprep.subr.mxu0 %v3015
        %v3017 = vand.u32 %v2404, 4294901760
        %3018 = vmatpush1.msra.mxu0 %v3017
        %v3019 = vand.u32 %v2401, 4294901760
        %3020 = vmatprep.subr.mxu0 %v3019
        %v3021 = vand.u32 %v2400, 4294901760
        %3022 = vmatpush1.msra.mxu0 %v3021
        %v3023 = vand.u32 %v2397, 4294901760
        %3024 = vmatprep.subr.mxu0 %v3023
        %v3025 = vand.u32 %v2396, 4294901760
        %3026 = vmatpush1.msra.mxu0 %v3025
        %v3027 = vand.u32 %v2393, 4294901760
        %3028 = vmatprep.subr.mxu0 %v3027
        %v3029 = vand.u32 %v2392, 4294901760
        %3030 = vmatpush1.msra.mxu0 %v3029
        %v3031 = vand.u32 %v2389, 4294901760
        %3032 = vmatprep.subr.mxu0 %v3031
        %v3033 = vand.u32 %v2388, 4294901760
        %3034 = vmatpush1.msra.mxu0 %v3033
        %v3035 = vand.u32 %v2385, 4294901760
        %3036 = vmatprep.subr.mxu0 %v3035
        %v3037 = vand.u32 %v2384, 4294901760
        %3038 = vmatpush1.msra.mxu0 %v3037
        %v3039 = vand.u32 %v2381, 4294901760
        %3040 = vmatprep.subr.mxu0 %v3039
        %v3041 = vand.u32 %v2380, 4294901760
        %3042 = vmatpush1.msra.mxu0 %v3041
        %v3043 = vand.u32 %v2377, 4294901760
        %3044 = vmatprep.subr.mxu0 %v3043
        %v3045 = vand.u32 %v2376, 4294901760
        %3046 = vmatpush1.msra.mxu0 %v3045
        %v3047 = vand.u32 %v2373, 4294901760
        %3048 = vmatprep.subr.mxu0 %v3047
        %v3049 = vand.u32 %v2372, 4294901760
        %3050 = vmatpush1.msra.mxu0 %v3049
        %v3051 = vand.u32 %v2369, 4294901760
        %3052 = vmatprep.subr.mxu0 %v3051
        %v3053 = vand.u32 %v2368, 4294901760
        %3054 = vmatpush1.msra.mxu0 %v3053
        %3055 = vmatprep.subr.mxu0 0.0
        %3056 = vmatpush2.msra.mxu0 0.0
        %3057 = vmatprep.subr.mxu0 0.0
        %3058 = vmatpush2.msra.mxu0 0.0
        %3059 = vmatprep.subr.mxu0 0.0
        %3060 = vmatpush2.msra.mxu0 0.0
        %3061 = vmatprep.subr.mxu0 0.0
        %3062 = vmatpush2.msra.mxu0 0.0
        %3063 = vmatprep.subr.mxu0 0.0
        %3064 = vmatpush2.msra.mxu0 0.0
        %3065 = vmatprep.subr.mxu0 0.0
        %3066 = vmatpush2.msra.mxu0 0.0
        %3067 = vmatprep.subr.mxu0 0.0
        %3068 = vmatpush2.msra.mxu0 0.0
        %3069 = vmatprep.subr.mxu0 0.0
        %3070 = vmatpush2.msra.mxu0 0.0
        %3071 = vmatprep.subr.mxu0 0.0
        %3072 = vmatpush2.msra.mxu0 0.0
        %3073 = vmatprep.subr.mxu0 0.0
        %3074 = vmatpush2.msra.mxu0 0.0
        %3075 = vmatprep.subr.mxu0 0.0
        %3076 = vmatpush2.msra.mxu0 0.0
        %3077 = vmatprep.subr.mxu0 0.0
        %3078 = vmatpush2.msra.mxu0 0.0
        %3079 = vmatprep.subr.mxu0 0.0
        %3080 = vmatpush2.msra.mxu0 0.0
        %3081 = vmatprep.subr.mxu0 0.0
        %3082 = vmatpush2.msra.mxu0 0.0
        %3083 = vmatprep.subr.mxu0 0.0
        %3084 = vmatpush2.msra.mxu0 0.0
        %3085 = vmatprep.subr.mxu0 0.0
        %3086 = vmatpush2.msra.mxu0 0.0
        %3087 = vmatprep.mubr.f32.mxu0 0.0
        %v3088 = vand.u32 %v2432, 4294901760
        %v3089 = vsub.f32 %v2432, %v3088
        %v3090 = vand.u32 %v3089, 4294901760
        %3091 = vmatmul.mubr.f32.gmra.mxu0 %v3090
        %v3092 = vpop.f32.mrf.mxu0
        %v3093 = vadd.f32 %v2963, %v3092
        %v3094 = vpop.f32.mrf.mxu0
        %v3095 = vadd.f32 %v2965, %v3094
        %3096 = vmatprep.mubr.f32.mxu0 0.0
        %v3097 = vand.u32 %v2433, 4294901760
        %v3098 = vsub.f32 %v2433, %v3097
        %v3099 = vand.u32 %v3098, 4294901760
        %3100 = vmatmul.mubr.f32.gmra.mxu0 %v3099
        %v3101 = vpop.f32.mrf.mxu0
        %v3102 = vadd.f32 %v2971, %v3101
        %v3103 = vpop.f32.mrf.mxu0
        %v3104 = vadd.f32 %v2973, %v3103
        %3105 = vmatprep.mubr.f32.mxu0 0.0
        %v3106 = vand.u32 %v2434, 4294901760
        %v3107 = vsub.f32 %v2434, %v3106
        %v3108 = vand.u32 %v3107, 4294901760
        %3109 = vmatmul.mubr.f32.gmra.mxu0 %v3108
        %v3110 = vpop.f32.mrf.mxu0
        %v3111 = vadd.f32 %v2979, %v3110
        %v3112 = vpop.f32.mrf.mxu0
        %v3113 = vadd.f32 %v2981, %v3112
        %3114 = vmatprep.mubr.f32.mxu0 0.0
        %v3115 = vand.u32 %v2435, 4294901760
        %v3116 = vsub.f32 %v2435, %v3115
        %v3117 = vand.u32 %v3116, 4294901760
        %3118 = vmatmul.mubr.f32.gmra.mxu0 %v3117
        %v3119 = vpop.f32.mrf.mxu0
        %v3120 = vadd.f32 %v2987, %v3119
        %v3121 = vpop.f32.mrf.mxu0
        %v3122 = vadd.f32 %v2989, %v3121
        %3123 = vdwg.mxu0
        %v3124 = vand.u32 %v2429, 4294901760
        %v3125 = vsub.f32 %v2429, %v3124
        %v3126 = vand.u32 %v3125, 4294901760
        %3127 = vmatprep.subr.mxu0 %v3126
        %v3128 = vand.u32 %v2428, 4294901760
        %v3129 = vsub.f32 %v2428, %v3128
        %v3130 = vand.u32 %v3129, 4294901760
        %3131 = vmatpush1.msra.mxu0 %v3130
        %v3132 = vand.u32 %v2425, 4294901760
        %v3133 = vsub.f32 %v2425, %v3132
        %v3134 = vand.u32 %v3133, 4294901760
        %3135 = vmatprep.subr.mxu0 %v3134
        %v3136 = vand.u32 %v2424, 4294901760
        %v3137 = vsub.f32 %v2424, %v3136
        %v3138 = vand.u32 %v3137, 4294901760
        %3139 = vmatpush1.msra.mxu0 %v3138
        %v3140 = vand.u32 %v2421, 4294901760
        %v3141 = vsub.f32 %v2421, %v3140
        %v3142 = vand.u32 %v3141, 4294901760
        %3143 = vmatprep.subr.mxu0 %v3142
        %v3144 = vand.u32 %v2420, 4294901760
        %v3145 = vsub.f32 %v2420, %v3144
        %v3146 = vand.u32 %v3145, 4294901760
        %3147 = vmatpush1.msra.mxu0 %v3146
        %v3148 = vand.u32 %v2417, 4294901760
        %v3149 = vsub.f32 %v2417, %v3148
        %v3150 = vand.u32 %v3149, 4294901760
        %3151 = vmatprep.subr.mxu0 %v3150
        %v3152 = vand.u32 %v2416, 4294901760
        %v3153 = vsub.f32 %v2416, %v3152
        %v3154 = vand.u32 %v3153, 4294901760
        %3155 = vmatpush1.msra.mxu0 %v3154
        %v3156 = vand.u32 %v2413, 4294901760
        %v3157 = vsub.f32 %v2413, %v3156
        %v3158 = vand.u32 %v3157, 4294901760
        %3159 = vmatprep.subr.mxu0 %v3158
        %v3160 = vand.u32 %v2412, 4294901760
        %v3161 = vsub.f32 %v2412, %v3160
        %v3162 = vand.u32 %v3161, 4294901760
        %3163 = vmatpush1.msra.mxu0 %v3162
        %v3164 = vand.u32 %v2409, 4294901760
        %v3165 = vsub.f32 %v2409, %v3164
        %v3166 = vand.u32 %v3165, 4294901760
        %3167 = vmatprep.subr.mxu0 %v3166
        %v3168 = vand.u32 %v2408, 4294901760
        %v3169 = vsub.f32 %v2408, %v3168
        %v3170 = vand.u32 %v3169, 4294901760
        %3171 = vmatpush1.msra.mxu0 %v3170
        %v3172 = vand.u32 %v2405, 4294901760
        %v3173 = vsub.f32 %v2405, %v3172
        %v3174 = vand.u32 %v3173, 4294901760
        %3175 = vmatprep.subr.mxu0 %v3174
        %v3176 = vand.u32 %v2404, 4294901760
        %v3177 = vsub.f32 %v2404, %v3176
        %v3178 = vand.u32 %v3177, 4294901760
        %3179 = vmatpush1.msra.mxu0 %v3178
        %v3180 = vand.u32 %v2401, 4294901760
        %v3181 = vsub.f32 %v2401, %v3180
        %v3182 = vand.u32 %v3181, 4294901760
        %3183 = vmatprep.subr.mxu0 %v3182
        %v3184 = vand.u32 %v2400, 4294901760
        %v3185 = vsub.f32 %v2400, %v3184
        %v3186 = vand.u32 %v3185, 4294901760
        %3187 = vmatpush1.msra.mxu0 %v3186
        %v3188 = vand.u32 %v2397, 4294901760
        %v3189 = vsub.f32 %v2397, %v3188
        %v3190 = vand.u32 %v3189, 4294901760
        %3191 = vmatprep.subr.mxu0 %v3190
        %v3192 = vand.u32 %v2396, 4294901760
        %v3193 = vsub.f32 %v2396, %v3192
        %v3194 = vand.u32 %v3193, 4294901760
        %3195 = vmatpush1.msra.mxu0 %v3194
        %v3196 = vand.u32 %v2393, 4294901760
        %v3197 = vsub.f32 %v2393, %v3196
        %v3198 = vand.u32 %v3197, 4294901760
        %3199 = vmatprep.subr.mxu0 %v3198
        %v3200 = vand.u32 %v2392, 4294901760
        %v3201 = vsub.f32 %v2392, %v3200
        %v3202 = vand.u32 %v3201, 4294901760
        %3203 = vmatpush1.msra.mxu0 %v3202
        %v3204 = vand.u32 %v2389, 4294901760
        %v3205 = vsub.f32 %v2389, %v3204
        %v3206 = vand.u32 %v3205, 4294901760
        %3207 = vmatprep.subr.mxu0 %v3206
        %v3208 = vand.u32 %v2388, 4294901760
        %v3209 = vsub.f32 %v2388, %v3208
        %v3210 = vand.u32 %v3209, 4294901760
        %3211 = vmatpush1.msra.mxu0 %v3210
        %v3212 = vand.u32 %v2385, 4294901760
        %v3213 = vsub.f32 %v2385, %v3212
        %v3214 = vand.u32 %v3213, 4294901760
        %3215 = vmatprep.subr.mxu0 %v3214
        %v3216 = vand.u32 %v2384, 4294901760
        %v3217 = vsub.f32 %v2384, %v3216
        %v3218 = vand.u32 %v3217, 4294901760
        %3219 = vmatpush1.msra.mxu0 %v3218
        %v3220 = vand.u32 %v2381, 4294901760
        %v3221 = vsub.f32 %v2381, %v3220
        %v3222 = vand.u32 %v3221, 4294901760
        %3223 = vmatprep.subr.mxu0 %v3222
        %v3224 = vand.u32 %v2380, 4294901760
        %v3225 = vsub.f32 %v2380, %v3224
        %v3226 = vand.u32 %v3225, 4294901760
        %3227 = vmatpush1.msra.mxu0 %v3226
        %v3228 = vand.u32 %v2377, 4294901760
        %v3229 = vsub.f32 %v2377, %v3228
        %v3230 = vand.u32 %v3229, 4294901760
        %3231 = vmatprep.subr.mxu0 %v3230
        %v3232 = vand.u32 %v2376, 4294901760
        %v3233 = vsub.f32 %v2376, %v3232
        %v3234 = vand.u32 %v3233, 4294901760
        %3235 = vmatpush1.msra.mxu0 %v3234
        %v3236 = vand.u32 %v2373, 4294901760
        %v3237 = vsub.f32 %v2373, %v3236
        %v3238 = vand.u32 %v3237, 4294901760
        %3239 = vmatprep.subr.mxu0 %v3238
        %v3240 = vand.u32 %v2372, 4294901760
        %v3241 = vsub.f32 %v2372, %v3240
        %v3242 = vand.u32 %v3241, 4294901760
        %3243 = vmatpush1.msra.mxu0 %v3242
        %v3244 = vand.u32 %v2369, 4294901760
        %v3245 = vsub.f32 %v2369, %v3244
        %v3246 = vand.u32 %v3245, 4294901760
        %3247 = vmatprep.subr.mxu0 %v3246
        %v3248 = vand.u32 %v2368, 4294901760
        %v3249 = vsub.f32 %v2368, %v3248
        %v3250 = vand.u32 %v3249, 4294901760
        %3251 = vmatpush1.msra.mxu0 %v3250
        %3252 = vmatprep.subr.mxu0 0.0
        %3253 = vmatpush2.msra.mxu0 0.0
        %3254 = vmatprep.subr.mxu0 0.0
        %3255 = vmatpush2.msra.mxu0 0.0
        %3256 = vmatprep.subr.mxu0 0.0
        %3257 = vmatpush2.msra.mxu0 0.0
        %3258 = vmatprep.subr.mxu0 0.0
        %3259 = vmatpush2.msra.mxu0 0.0
        %3260 = vmatprep.subr.mxu0 0.0
        %3261 = vmatpush2.msra.mxu0 0.0
        %3262 = vmatprep.subr.mxu0 0.0
        %3263 = vmatpush2.msra.mxu0 0.0
        %3264 = vmatprep.subr.mxu0 0.0
        %3265 = vmatpush2.msra.mxu0 0.0
        %3266 = vmatprep.subr.mxu0 0.0
        %3267 = vmatpush2.msra.mxu0 0.0
        %3268 = vmatprep.subr.mxu0 0.0
        %3269 = vmatpush2.msra.mxu0 0.0
        %3270 = vmatprep.subr.mxu0 0.0
        %3271 = vmatpush2.msra.mxu0 0.0
        %3272 = vmatprep.subr.mxu0 0.0
        %3273 = vmatpush2.msra.mxu0 0.0
        %3274 = vmatprep.subr.mxu0 0.0
        %3275 = vmatpush2.msra.mxu0 0.0
        %3276 = vmatprep.subr.mxu0 0.0
        %3277 = vmatpush2.msra.mxu0 0.0
        %3278 = vmatprep.subr.mxu0 0.0
        %3279 = vmatpush2.msra.mxu0 0.0
        %3280 = vmatprep.subr.mxu0 0.0
        %3281 = vmatpush2.msra.mxu0 0.0
        %3282 = vmatprep.subr.mxu0 0.0
        %3283 = vmatpush2.msra.mxu0 0.0
        %3284 = vmatprep.mubr.f32.mxu0 0.0
        %v3285 = vand.u32 %v2432, 4294901760
        %3286 = vmatmul.mubr.f32.gmra.mxu0 %v3285
        %v3287 = vpop.f32.mrf.mxu0
        %v3288 = vadd.f32 %v3093, %v3287
        %v3289 = vpop.f32.mrf.mxu0
        %v3290 = vadd.f32 %v3095, %v3289
        %3291 = vmatprep.mubr.f32.mxu0 0.0
        %v3292 = vand.u32 %v2433, 4294901760
        %3293 = vmatmul.mubr.f32.gmra.mxu0 %v3292
        %v3294 = vpop.f32.mrf.mxu0
        %v3295 = vadd.f32 %v3102, %v3294
        %v3296 = vpop.f32.mrf.mxu0
        %v3297 = vadd.f32 %v3104, %v3296
        %3298 = vmatprep.mubr.f32.mxu0 0.0
        %v3299 = vand.u32 %v2434, 4294901760
        %3300 = vmatmul.mubr.f32.gmra.mxu0 %v3299
        %v3301 = vpop.f32.mrf.mxu0
        %v3302 = vadd.f32 %v3111, %v3301
        %v3303 = vpop.f32.mrf.mxu0
        %v3304 = vadd.f32 %v3113, %v3303
        %3305 = vmatprep.mubr.f32.mxu0 0.0
        %v3306 = vand.u32 %v2435, 4294901760
        %3307 = vmatmul.mubr.f32.gmra.mxu0 %v3306
        %v3308 = vpop.f32.mrf.mxu0
        %v3309 = vadd.f32 %v3120, %v3308
        %v3310 = vpop.f32.mrf.mxu0
        %v3311 = vadd.f32 %v3122, %v3310
        %3312 = vdwg.mxu0
        %v3313 = vand.u32 %v2429, 4294901760
        %3314 = vmatprep.subr.mxu0 %v3313
        %v3315 = vand.u32 %v2428, 4294901760
        %3316 = vmatpush1.msra.mxu0 %v3315
        %v3317 = vand.u32 %v2425, 4294901760
        %3318 = vmatprep.subr.mxu0 %v3317
        %v3319 = vand.u32 %v2424, 4294901760
        %3320 = vmatpush1.msra.mxu0 %v3319
        %v3321 = vand.u32 %v2421, 4294901760
        %3322 = vmatprep.subr.mxu0 %v3321
        %v3323 = vand.u32 %v2420, 4294901760
        %3324 = vmatpush1.msra.mxu0 %v3323
        %v3325 = vand.u32 %v2417, 4294901760
        %3326 = vmatprep.subr.mxu0 %v3325
        %v3327 = vand.u32 %v2416, 4294901760
        %3328 = vmatpush1.msra.mxu0 %v3327
        %v3329 = vand.u32 %v2413, 4294901760
        %3330 = vmatprep.subr.mxu0 %v3329
        %v3331 = vand.u32 %v2412, 4294901760
        %3332 = vmatpush1.msra.mxu0 %v3331
        %v3333 = vand.u32 %v2409, 4294901760
        %3334 = vmatprep.subr.mxu0 %v3333
        %v3335 = vand.u32 %v2408, 4294901760
        %3336 = vmatpush1.msra.mxu0 %v3335
        %v3337 = vand.u32 %v2405, 4294901760
        %3338 = vmatprep.subr.mxu0 %v3337
        %v3339 = vand.u32 %v2404, 4294901760
        %3340 = vmatpush1.msra.mxu0 %v3339
        %v3341 = vand.u32 %v2401, 4294901760
        %3342 = vmatprep.subr.mxu0 %v3341
        %v3343 = vand.u32 %v2400, 4294901760
        %3344 = vmatpush1.msra.mxu0 %v3343
        %v3345 = vand.u32 %v2397, 4294901760
        %3346 = vmatprep.subr.mxu0 %v3345
        %v3347 = vand.u32 %v2396, 4294901760
        %3348 = vmatpush1.msra.mxu0 %v3347
        %v3349 = vand.u32 %v2393, 4294901760
        %3350 = vmatprep.subr.mxu0 %v3349
        %v3351 = vand.u32 %v2392, 4294901760
        %3352 = vmatpush1.msra.mxu0 %v3351
        %v3353 = vand.u32 %v2389, 4294901760
        %3354 = vmatprep.subr.mxu0 %v3353
        %v3355 = vand.u32 %v2388, 4294901760
        %3356 = vmatpush1.msra.mxu0 %v3355
        %v3357 = vand.u32 %v2385, 4294901760
        %3358 = vmatprep.subr.mxu0 %v3357
        %v3359 = vand.u32 %v2384, 4294901760
        %3360 = vmatpush1.msra.mxu0 %v3359
        %v3361 = vand.u32 %v2381, 4294901760
        %3362 = vmatprep.subr.mxu0 %v3361
        %v3363 = vand.u32 %v2380, 4294901760
        %3364 = vmatpush1.msra.mxu0 %v3363
        %v3365 = vand.u32 %v2377, 4294901760
        %3366 = vmatprep.subr.mxu0 %v3365
        %v3367 = vand.u32 %v2376, 4294901760
        %3368 = vmatpush1.msra.mxu0 %v3367
        %v3369 = vand.u32 %v2373, 4294901760
        %3370 = vmatprep.subr.mxu0 %v3369
        %v3371 = vand.u32 %v2372, 4294901760
        %3372 = vmatpush1.msra.mxu0 %v3371
        %v3373 = vand.u32 %v2369, 4294901760
        %3374 = vmatprep.subr.mxu0 %v3373
        %v3375 = vand.u32 %v2368, 4294901760
        %3376 = vmatpush1.msra.mxu0 %v3375
        %3377 = vmatprep.subr.mxu0 0.0
        %3378 = vmatpush2.msra.mxu0 0.0
        %3379 = vmatprep.subr.mxu0 0.0
        %3380 = vmatpush2.msra.mxu0 0.0
        %3381 = vmatprep.subr.mxu0 0.0
        %3382 = vmatpush2.msra.mxu0 0.0
        %3383 = vmatprep.subr.mxu0 0.0
        %3384 = vmatpush2.msra.mxu0 0.0
        %3385 = vmatprep.subr.mxu0 0.0
        %3386 = vmatpush2.msra.mxu0 0.0
        %3387 = vmatprep.subr.mxu0 0.0
        %3388 = vmatpush2.msra.mxu0 0.0
        %3389 = vmatprep.subr.mxu0 0.0
        %3390 = vmatpush2.msra.mxu0 0.0
        %3391 = vmatprep.subr.mxu0 0.0
        %3392 = vmatpush2.msra.mxu0 0.0
        %3393 = vmatprep.subr.mxu0 0.0
        %3394 = vmatpush2.msra.mxu0 0.0
        %3395 = vmatprep.subr.mxu0 0.0
        %3396 = vmatpush2.msra.mxu0 0.0
        %3397 = vmatprep.subr.mxu0 0.0
        %3398 = vmatpush2.msra.mxu0 0.0
        %3399 = vmatprep.subr.mxu0 0.0
        %3400 = vmatpush2.msra.mxu0 0.0
        %3401 = vmatprep.subr.mxu0 0.0
        %3402 = vmatpush2.msra.mxu0 0.0
        %3403 = vmatprep.subr.mxu0 0.0
        %3404 = vmatpush2.msra.mxu0 0.0
        %3405 = vmatprep.subr.mxu0 0.0
        %3406 = vmatpush2.msra.mxu0 0.0
        %3407 = vmatprep.subr.mxu0 0.0
        %3408 = vmatpush2.msra.mxu0 0.0
        %3409 = vmatprep.mubr.f32.mxu0 0.0
        %v3410 = vand.u32 %v2432, 4294901760
        %3411 = vmatmul.mubr.f32.gmra.mxu0 %v3410
        %v3412 = vpop.f32.mrf.mxu0
        %v3413 = vadd.f32 %v3288, %v3412
        %v3414 = vpop.f32.mrf.mxu0
        %v3415 = vadd.f32 %v3290, %v3414
        %3416 = vmatprep.mubr.f32.mxu0 0.0
        %v3417 = vand.u32 %v2433, 4294901760
        %3418 = vmatmul.mubr.f32.gmra.mxu0 %v3417
        %v3419 = vpop.f32.mrf.mxu0
        %v3420 = vadd.f32 %v3295, %v3419
        %v3421 = vpop.f32.mrf.mxu0
        %v3422 = vadd.f32 %v3297, %v3421
        %3423 = vmatprep.mubr.f32.mxu0 0.0
        %v3424 = vand.u32 %v2434, 4294901760
        %3425 = vmatmul.mubr.f32.gmra.mxu0 %v3424
        %v3426 = vpop.f32.mrf.mxu0
        %v3427 = vadd.f32 %v3302, %v3426
        %v3428 = vpop.f32.mrf.mxu0
        %v3429 = vadd.f32 %v3304, %v3428
        %3430 = vmatprep.mubr.f32.mxu0 0.0
        %v3431 = vand.u32 %v2435, 4294901760
        %3432 = vmatmul.mubr.f32.gmra.mxu0 %v3431
        %v3433 = vpop.f32.mrf.mxu0
        %v3434 = vadd.f32 %v3309, %v3433
        %v3435 = vpop.f32.mrf.mxu0
        %v3436 = vadd.f32 %v3311, %v3435
        %3437 = vdwg.mxu0
        %v3438 = vand.u32 %v2431, 4294901760
        %3439 = vmatprep.subr.mxu0 %v3438
        %v3440 = vand.u32 %v2430, 4294901760
        %3441 = vmatpush1.msra.mxu0 %v3440
        %v3442 = vand.u32 %v2427, 4294901760
        %3443 = vmatprep.subr.mxu0 %v3442
        %v3444 = vand.u32 %v2426, 4294901760
        %3445 = vmatpush1.msra.mxu0 %v3444
        %v3446 = vand.u32 %v2423, 4294901760
        %3447 = vmatprep.subr.mxu0 %v3446
        %v3448 = vand.u32 %v2422, 4294901760
        %3449 = vmatpush1.msra.mxu0 %v3448
        %v3450 = vand.u32 %v2419, 4294901760
        %3451 = vmatprep.subr.mxu0 %v3450
        %v3452 = vand.u32 %v2418, 4294901760
        %3453 = vmatpush1.msra.mxu0 %v3452
        %v3454 = vand.u32 %v2415, 4294901760
        %3455 = vmatprep.subr.mxu0 %v3454
        %v3456 = vand.u32 %v2414, 4294901760
        %3457 = vmatpush1.msra.mxu0 %v3456
        %v3458 = vand.u32 %v2411, 4294901760
        %3459 = vmatprep.subr.mxu0 %v3458
        %v3460 = vand.u32 %v2410, 4294901760
        %3461 = vmatpush1.msra.mxu0 %v3460
        %v3462 = vand.u32 %v2407, 4294901760
        %3463 = vmatprep.subr.mxu0 %v3462
        %v3464 = vand.u32 %v2406, 4294901760
        %3465 = vmatpush1.msra.mxu0 %v3464
        %v3466 = vand.u32 %v2403, 4294901760
        %3467 = vmatprep.subr.mxu0 %v3466
        %v3468 = vand.u32 %v2402, 4294901760
        %3469 = vmatpush1.msra.mxu0 %v3468
        %v3470 = vand.u32 %v2399, 4294901760
        %3471 = vmatprep.subr.mxu0 %v3470
        %v3472 = vand.u32 %v2398, 4294901760
        %3473 = vmatpush1.msra.mxu0 %v3472
        %v3474 = vand.u32 %v2395, 4294901760
        %3475 = vmatprep.subr.mxu0 %v3474
        %v3476 = vand.u32 %v2394, 4294901760
        %3477 = vmatpush1.msra.mxu0 %v3476
        %v3478 = vand.u32 %v2391, 4294901760
        %3479 = vmatprep.subr.mxu0 %v3478
        %v3480 = vand.u32 %v2390, 4294901760
        %3481 = vmatpush1.msra.mxu0 %v3480
        %v3482 = vand.u32 %v2387, 4294901760
        %3483 = vmatprep.subr.mxu0 %v3482
        %v3484 = vand.u32 %v2386, 4294901760
        %3485 = vmatpush1.msra.mxu0 %v3484
        %v3486 = vand.u32 %v2383, 4294901760
        %3487 = vmatprep.subr.mxu0 %v3486
        %v3488 = vand.u32 %v2382, 4294901760
        %3489 = vmatpush1.msra.mxu0 %v3488
        %v3490 = vand.u32 %v2379, 4294901760
        %3491 = vmatprep.subr.mxu0 %v3490
        %v3492 = vand.u32 %v2378, 4294901760
        %3493 = vmatpush1.msra.mxu0 %v3492
        %v3494 = vand.u32 %v2375, 4294901760
        %3495 = vmatprep.subr.mxu0 %v3494
        %v3496 = vand.u32 %v2374, 4294901760
        %3497 = vmatpush1.msra.mxu0 %v3496
        %v3498 = vand.u32 %v2371, 4294901760
        %3499 = vmatprep.subr.mxu0 %v3498
        %v3500 = vand.u32 %v2370, 4294901760
        %3501 = vmatpush1.msra.mxu0 %v3500
        %3502 = vmatprep.subr.mxu0 0.0
        %3503 = vmatpush2.msra.mxu0 0.0
        %3504 = vmatprep.subr.mxu0 0.0
        %3505 = vmatpush2.msra.mxu0 0.0
        %3506 = vmatprep.subr.mxu0 0.0
        %3507 = vmatpush2.msra.mxu0 0.0
        %3508 = vmatprep.subr.mxu0 0.0
        %3509 = vmatpush2.msra.mxu0 0.0
        %3510 = vmatprep.subr.mxu0 0.0
        %3511 = vmatpush2.msra.mxu0 0.0
        %3512 = vmatprep.subr.mxu0 0.0
        %3513 = vmatpush2.msra.mxu0 0.0
        %3514 = vmatprep.subr.mxu0 0.0
        %3515 = vmatpush2.msra.mxu0 0.0
        %3516 = vmatprep.subr.mxu0 0.0
        %3517 = vmatpush2.msra.mxu0 0.0
        %3518 = vmatprep.subr.mxu0 0.0
        %3519 = vmatpush2.msra.mxu0 0.0
        %3520 = vmatprep.subr.mxu0 0.0
        %3521 = vmatpush2.msra.mxu0 0.0
        %3522 = vmatprep.subr.mxu0 0.0
        %3523 = vmatpush2.msra.mxu0 0.0
        %3524 = vmatprep.subr.mxu0 0.0
        %3525 = vmatpush2.msra.mxu0 0.0
        %3526 = vmatprep.subr.mxu0 0.0
        %3527 = vmatpush2.msra.mxu0 0.0
        %3528 = vmatprep.subr.mxu0 0.0
        %3529 = vmatpush2.msra.mxu0 0.0
        %3530 = vmatprep.subr.mxu0 0.0
        %3531 = vmatpush2.msra.mxu0 0.0
        %3532 = vmatprep.subr.mxu0 0.0
        %3533 = vmatpush2.msra.mxu0 0.0
        %3534 = vmatprep.mubr.f32.mxu0 0.0
        %v3535 = vand.u32 %v2432, 4294901760
        %v3536 = vsub.f32 %v2432, %v3535
        %v3537 = vand.u32 %v3536, 4294901760
        %v3538 = vsub.f32 %v3536, %v3537
        %v3539 = vand.u32 %v3538, 4294901760
        %3540 = vmatmul.mubr.f32.gmra.mxu0 %v3539
        %v3541 = vpop.f32.mrf.mxu0
        %v3542 = vadd.f32 0.0, %v3541
        %v3543 = vpop.f32.mrf.mxu0
        %v3544 = vadd.f32 0.0, %v3543
        %3545 = vmatprep.mubr.f32.mxu0 0.0
        %v3546 = vand.u32 %v2433, 4294901760
        %v3547 = vsub.f32 %v2433, %v3546
        %v3548 = vand.u32 %v3547, 4294901760
        %v3549 = vsub.f32 %v3547, %v3548
        %v3550 = vand.u32 %v3549, 4294901760
        %3551 = vmatmul.mubr.f32.gmra.mxu0 %v3550
        %v3552 = vpop.f32.mrf.mxu0
        %v3553 = vadd.f32 0.0, %v3552
        %v3554 = vpop.f32.mrf.mxu0
        %v3555 = vadd.f32 0.0, %v3554
        %3556 = vmatprep.mubr.f32.mxu0 0.0
        %v3557 = vand.u32 %v2434, 4294901760
        %v3558 = vsub.f32 %v2434, %v3557
        %v3559 = vand.u32 %v3558, 4294901760
        %v3560 = vsub.f32 %v3558, %v3559
        %v3561 = vand.u32 %v3560, 4294901760
        %3562 = vmatmul.mubr.f32.gmra.mxu0 %v3561
        %v3563 = vpop.f32.mrf.mxu0
        %v3564 = vadd.f32 0.0, %v3563
        %v3565 = vpop.f32.mrf.mxu0
        %v3566 = vadd.f32 0.0, %v3565
        %3567 = vmatprep.mubr.f32.mxu0 0.0
        %v3568 = vand.u32 %v2435, 4294901760
        %v3569 = vsub.f32 %v2435, %v3568
        %v3570 = vand.u32 %v3569, 4294901760
        %v3571 = vsub.f32 %v3569, %v3570
        %v3572 = vand.u32 %v3571, 4294901760
        %3573 = vmatmul.mubr.f32.gmra.mxu0 %v3572
        %v3574 = vpop.f32.mrf.mxu0
        %v3575 = vadd.f32 0.0, %v3574
        %v3576 = vpop.f32.mrf.mxu0
        %v3577 = vadd.f32 0.0, %v3576
        %3578 = vdwg.mxu0
        %v3579 = vand.u32 %v2431, 4294901760
        %v3580 = vsub.f32 %v2431, %v3579
        %v3581 = vand.u32 %v3580, 4294901760
        %v3582 = vsub.f32 %v3580, %v3581
        %v3583 = vand.u32 %v3582, 4294901760
        %3584 = vmatprep.subr.mxu0 %v3583
        %v3585 = vand.u32 %v2430, 4294901760
        %v3586 = vsub.f32 %v2430, %v3585
        %v3587 = vand.u32 %v3586, 4294901760
        %v3588 = vsub.f32 %v3586, %v3587
        %v3589 = vand.u32 %v3588, 4294901760
        %3590 = vmatpush1.msra.mxu0 %v3589
        %v3591 = vand.u32 %v2427, 4294901760
        %v3592 = vsub.f32 %v2427, %v3591
        %v3593 = vand.u32 %v3592, 4294901760
        %v3594 = vsub.f32 %v3592, %v3593
        %v3595 = vand.u32 %v3594, 4294901760
        %3596 = vmatprep.subr.mxu0 %v3595
        %v3597 = vand.u32 %v2426, 4294901760
        %v3598 = vsub.f32 %v2426, %v3597
        %v3599 = vand.u32 %v3598, 4294901760
        %v3600 = vsub.f32 %v3598, %v3599
        %v3601 = vand.u32 %v3600, 4294901760
        %3602 = vmatpush1.msra.mxu0 %v3601
        %v3603 = vand.u32 %v2423, 4294901760
        %v3604 = vsub.f32 %v2423, %v3603
        %v3605 = vand.u32 %v3604, 4294901760
        %v3606 = vsub.f32 %v3604, %v3605
        %v3607 = vand.u32 %v3606, 4294901760
        %3608 = vmatprep.subr.mxu0 %v3607
        %v3609 = vand.u32 %v2422, 4294901760
        %v3610 = vsub.f32 %v2422, %v3609
        %v3611 = vand.u32 %v3610, 4294901760
        %v3612 = vsub.f32 %v3610, %v3611
        %v3613 = vand.u32 %v3612, 4294901760
        %3614 = vmatpush1.msra.mxu0 %v3613
        %v3615 = vand.u32 %v2419, 4294901760
        %v3616 = vsub.f32 %v2419, %v3615
        %v3617 = vand.u32 %v3616, 4294901760
        %v3618 = vsub.f32 %v3616, %v3617
        %v3619 = vand.u32 %v3618, 4294901760
        %3620 = vmatprep.subr.mxu0 %v3619
        %v3621 = vand.u32 %v2418, 4294901760
        %v3622 = vsub.f32 %v2418, %v3621
        %v3623 = vand.u32 %v3622, 4294901760
        %v3624 = vsub.f32 %v3622, %v3623
        %v3625 = vand.u32 %v3624, 4294901760
        %3626 = vmatpush1.msra.mxu0 %v3625
        %v3627 = vand.u32 %v2415, 4294901760
        %v3628 = vsub.f32 %v2415, %v3627
        %v3629 = vand.u32 %v3628, 4294901760
        %v3630 = vsub.f32 %v3628, %v3629
        %v3631 = vand.u32 %v3630, 4294901760
        %3632 = vmatprep.subr.mxu0 %v3631
        %v3633 = vand.u32 %v2414, 4294901760
        %v3634 = vsub.f32 %v2414, %v3633
        %v3635 = vand.u32 %v3634, 4294901760
        %v3636 = vsub.f32 %v3634, %v3635
        %v3637 = vand.u32 %v3636, 4294901760
        %3638 = vmatpush1.msra.mxu0 %v3637
        %v3639 = vand.u32 %v2411, 4294901760
        %v3640 = vsub.f32 %v2411, %v3639
        %v3641 = vand.u32 %v3640, 4294901760
        %v3642 = vsub.f32 %v3640, %v3641
        %v3643 = vand.u32 %v3642, 4294901760
        %3644 = vmatprep.subr.mxu0 %v3643
        %v3645 = vand.u32 %v2410, 4294901760
        %v3646 = vsub.f32 %v2410, %v3645
        %v3647 = vand.u32 %v3646, 4294901760
        %v3648 = vsub.f32 %v3646, %v3647
        %v3649 = vand.u32 %v3648, 4294901760
        %3650 = vmatpush1.msra.mxu0 %v3649
        %v3651 = vand.u32 %v2407, 4294901760
        %v3652 = vsub.f32 %v2407, %v3651
        %v3653 = vand.u32 %v3652, 4294901760
        %v3654 = vsub.f32 %v3652, %v3653
        %v3655 = vand.u32 %v3654, 4294901760
        %3656 = vmatprep.subr.mxu0 %v3655
        %v3657 = vand.u32 %v2406, 4294901760
        %v3658 = vsub.f32 %v2406, %v3657
        %v3659 = vand.u32 %v3658, 4294901760
        %v3660 = vsub.f32 %v3658, %v3659
        %v3661 = vand.u32 %v3660, 4294901760
        %3662 = vmatpush1.msra.mxu0 %v3661
        %v3663 = vand.u32 %v2403, 4294901760
        %v3664 = vsub.f32 %v2403, %v3663
        %v3665 = vand.u32 %v3664, 4294901760
        %v3666 = vsub.f32 %v3664, %v3665
        %v3667 = vand.u32 %v3666, 4294901760
        %3668 = vmatprep.subr.mxu0 %v3667
        %v3669 = vand.u32 %v2402, 4294901760
        %v3670 = vsub.f32 %v2402, %v3669
        %v3671 = vand.u32 %v3670, 4294901760
        %v3672 = vsub.f32 %v3670, %v3671
        %v3673 = vand.u32 %v3672, 4294901760
        %3674 = vmatpush1.msra.mxu0 %v3673
        %v3675 = vand.u32 %v2399, 4294901760
        %v3676 = vsub.f32 %v2399, %v3675
        %v3677 = vand.u32 %v3676, 4294901760
        %v3678 = vsub.f32 %v3676, %v3677
        %v3679 = vand.u32 %v3678, 4294901760
        %3680 = vmatprep.subr.mxu0 %v3679
        %v3681 = vand.u32 %v2398, 4294901760
        %v3682 = vsub.f32 %v2398, %v3681
        %v3683 = vand.u32 %v3682, 4294901760
        %v3684 = vsub.f32 %v3682, %v3683
        %v3685 = vand.u32 %v3684, 4294901760
        %3686 = vmatpush1.msra.mxu0 %v3685
        %v3687 = vand.u32 %v2395, 4294901760
        %v3688 = vsub.f32 %v2395, %v3687
        %v3689 = vand.u32 %v3688, 4294901760
        %v3690 = vsub.f32 %v3688, %v3689
        %v3691 = vand.u32 %v3690, 4294901760
        %3692 = vmatprep.subr.mxu0 %v3691
        %v3693 = vand.u32 %v2394, 4294901760
        %v3694 = vsub.f32 %v2394, %v3693
        %v3695 = vand.u32 %v3694, 4294901760
        %v3696 = vsub.f32 %v3694, %v3695
        %v3697 = vand.u32 %v3696, 4294901760
        %3698 = vmatpush1.msra.mxu0 %v3697
        %v3699 = vand.u32 %v2391, 4294901760
        %v3700 = vsub.f32 %v2391, %v3699
        %v3701 = vand.u32 %v3700, 4294901760
        %v3702 = vsub.f32 %v3700, %v3701
        %v3703 = vand.u32 %v3702, 4294901760
        %3704 = vmatprep.subr.mxu0 %v3703
        %v3705 = vand.u32 %v2390, 4294901760
        %v3706 = vsub.f32 %v2390, %v3705
        %v3707 = vand.u32 %v3706, 4294901760
        %v3708 = vsub.f32 %v3706, %v3707
        %v3709 = vand.u32 %v3708, 4294901760
        %3710 = vmatpush1.msra.mxu0 %v3709
        %v3711 = vand.u32 %v2387, 4294901760
        %v3712 = vsub.f32 %v2387, %v3711
        %v3713 = vand.u32 %v3712, 4294901760
        %v3714 = vsub.f32 %v3712, %v3713
        %v3715 = vand.u32 %v3714, 4294901760
        %3716 = vmatprep.subr.mxu0 %v3715
        %v3717 = vand.u32 %v2386, 4294901760
        %v3718 = vsub.f32 %v2386, %v3717
        %v3719 = vand.u32 %v3718, 4294901760
        %v3720 = vsub.f32 %v3718, %v3719
        %v3721 = vand.u32 %v3720, 4294901760
        %3722 = vmatpush1.msra.mxu0 %v3721
        %v3723 = vand.u32 %v2383, 4294901760
        %v3724 = vsub.f32 %v2383, %v3723
        %v3725 = vand.u32 %v3724, 4294901760
        %v3726 = vsub.f32 %v3724, %v3725
        %v3727 = vand.u32 %v3726, 4294901760
        %3728 = vmatprep.subr.mxu0 %v3727
        %v3729 = vand.u32 %v2382, 4294901760
        %v3730 = vsub.f32 %v2382, %v3729
        %v3731 = vand.u32 %v3730, 4294901760
        %v3732 = vsub.f32 %v3730, %v3731
        %v3733 = vand.u32 %v3732, 4294901760
        %3734 = vmatpush1.msra.mxu0 %v3733
        %v3735 = vand.u32 %v2379, 4294901760
        %v3736 = vsub.f32 %v2379, %v3735
        %v3737 = vand.u32 %v3736, 4294901760
        %v3738 = vsub.f32 %v3736, %v3737
        %v3739 = vand.u32 %v3738, 4294901760
        %3740 = vmatprep.subr.mxu0 %v3739
        %v3741 = vand.u32 %v2378, 4294901760
        %v3742 = vsub.f32 %v2378, %v3741
        %v3743 = vand.u32 %v3742, 4294901760
        %v3744 = vsub.f32 %v3742, %v3743
        %v3745 = vand.u32 %v3744, 4294901760
        %3746 = vmatpush1.msra.mxu0 %v3745
        %v3747 = vand.u32 %v2375, 4294901760
        %v3748 = vsub.f32 %v2375, %v3747
        %v3749 = vand.u32 %v3748, 4294901760
        %v3750 = vsub.f32 %v3748, %v3749
        %v3751 = vand.u32 %v3750, 4294901760
        %3752 = vmatprep.subr.mxu0 %v3751
        %v3753 = vand.u32 %v2374, 4294901760
        %v3754 = vsub.f32 %v2374, %v3753
        %v3755 = vand.u32 %v3754, 4294901760
        %v3756 = vsub.f32 %v3754, %v3755
        %v3757 = vand.u32 %v3756, 4294901760
        %3758 = vmatpush1.msra.mxu0 %v3757
        %v3759 = vand.u32 %v2371, 4294901760
        %v3760 = vsub.f32 %v2371, %v3759
        %v3761 = vand.u32 %v3760, 4294901760
        %v3762 = vsub.f32 %v3760, %v3761
        %v3763 = vand.u32 %v3762, 4294901760
        %3764 = vmatprep.subr.mxu0 %v3763
        %v3765 = vand.u32 %v2370, 4294901760
        %v3766 = vsub.f32 %v2370, %v3765
        %v3767 = vand.u32 %v3766, 4294901760
        %v3768 = vsub.f32 %v3766, %v3767
        %v3769 = vand.u32 %v3768, 4294901760
        %3770 = vmatpush1.msra.mxu0 %v3769
        %3771 = vmatprep.subr.mxu0 0.0
        %3772 = vmatpush2.msra.mxu0 0.0
        %3773 = vmatprep.subr.mxu0 0.0
        %3774 = vmatpush2.msra.mxu0 0.0
        %3775 = vmatprep.subr.mxu0 0.0
        %3776 = vmatpush2.msra.mxu0 0.0
        %3777 = vmatprep.subr.mxu0 0.0
        %3778 = vmatpush2.msra.mxu0 0.0
        %3779 = vmatprep.subr.mxu0 0.0
        %3780 = vmatpush2.msra.mxu0 0.0
        %3781 = vmatprep.subr.mxu0 0.0
        %3782 = vmatpush2.msra.mxu0 0.0
        %3783 = vmatprep.subr.mxu0 0.0
        %3784 = vmatpush2.msra.mxu0 0.0
        %3785 = vmatprep.subr.mxu0 0.0
        %3786 = vmatpush2.msra.mxu0 0.0
        %3787 = vmatprep.subr.mxu0 0.0
        %3788 = vmatpush2.msra.mxu0 0.0
        %3789 = vmatprep.subr.mxu0 0.0
        %3790 = vmatpush2.msra.mxu0 0.0
        %3791 = vmatprep.subr.mxu0 0.0
        %3792 = vmatpush2.msra.mxu0 0.0
        %3793 = vmatprep.subr.mxu0 0.0
        %3794 = vmatpush2.msra.mxu0 0.0
        %3795 = vmatprep.subr.mxu0 0.0
        %3796 = vmatpush2.msra.mxu0 0.0
        %3797 = vmatprep.subr.mxu0 0.0
        %3798 = vmatpush2.msra.mxu0 0.0
        %3799 = vmatprep.subr.mxu0 0.0
        %3800 = vmatpush2.msra.mxu0 0.0
        %3801 = vmatprep.subr.mxu0 0.0
        %3802 = vmatpush2.msra.mxu0 0.0
        %3803 = vmatprep.mubr.f32.mxu0 0.0
        %v3804 = vand.u32 %v2432, 4294901760
        %3805 = vmatmul.mubr.f32.gmra.mxu0 %v3804
        %v3806 = vpop.f32.mrf.mxu0
        %v3807 = vadd.f32 %v3542, %v3806
        %v3808 = vpop.f32.mrf.mxu0
        %v3809 = vadd.f32 %v3544, %v3808
        %3810 = vmatprep.mubr.f32.mxu0 0.0
        %v3811 = vand.u32 %v2433, 4294901760
        %3812 = vmatmul.mubr.f32.gmra.mxu0 %v3811
        %v3813 = vpop.f32.mrf.mxu0
        %v3814 = vadd.f32 %v3553, %v3813
        %v3815 = vpop.f32.mrf.mxu0
        %v3816 = vadd.f32 %v3555, %v3815
        %3817 = vmatprep.mubr.f32.mxu0 0.0
        %v3818 = vand.u32 %v2434, 4294901760
        %3819 = vmatmul.mubr.f32.gmra.mxu0 %v3818
        %v3820 = vpop.f32.mrf.mxu0
        %v3821 = vadd.f32 %v3564, %v3820
        %v3822 = vpop.f32.mrf.mxu0
        %v3823 = vadd.f32 %v3566, %v3822
        %3824 = vmatprep.mubr.f32.mxu0 0.0
        %v3825 = vand.u32 %v2435, 4294901760
        %3826 = vmatmul.mubr.f32.gmra.mxu0 %v3825
        %v3827 = vpop.f32.mrf.mxu0
        %v3828 = vadd.f32 %v3575, %v3827
        %v3829 = vpop.f32.mrf.mxu0
        %v3830 = vadd.f32 %v3577, %v3829
        %3831 = vdwg.mxu0
        %v3832 = vand.u32 %v2431, 4294901760
        %v3833 = vsub.f32 %v2431, %v3832
        %3834 = vmatprep.subr.mxu0 %v3833
        %v3835 = vand.u32 %v2430, 4294901760
        %v3836 = vsub.f32 %v2430, %v3835
        %3837 = vmatpush1.msra.mxu0 %v3836
        %v3838 = vand.u32 %v2427, 4294901760
        %v3839 = vsub.f32 %v2427, %v3838
        %3840 = vmatprep.subr.mxu0 %v3839
        %v3841 = vand.u32 %v2426, 4294901760
        %v3842 = vsub.f32 %v2426, %v3841
        %3843 = vmatpush1.msra.mxu0 %v3842
        %v3844 = vand.u32 %v2423, 4294901760
        %v3845 = vsub.f32 %v2423, %v3844
        %3846 = vmatprep.subr.mxu0 %v3845
        %v3847 = vand.u32 %v2422, 4294901760
        %v3848 = vsub.f32 %v2422, %v3847
        %3849 = vmatpush1.msra.mxu0 %v3848
        %v3850 = vand.u32 %v2419, 4294901760
        %v3851 = vsub.f32 %v2419, %v3850
        %3852 = vmatprep.subr.mxu0 %v3851
        %v3853 = vand.u32 %v2418, 4294901760
        %v3854 = vsub.f32 %v2418, %v3853
        %3855 = vmatpush1.msra.mxu0 %v3854
        %v3856 = vand.u32 %v2415, 4294901760
        %v3857 = vsub.f32 %v2415, %v3856
        %3858 = vmatprep.subr.mxu0 %v3857
        %v3859 = vand.u32 %v2414, 4294901760
        %v3860 = vsub.f32 %v2414, %v3859
        %3861 = vmatpush1.msra.mxu0 %v3860
        %v3862 = vand.u32 %v2411, 4294901760
        %v3863 = vsub.f32 %v2411, %v3862
        %3864 = vmatprep.subr.mxu0 %v3863
        %v3865 = vand.u32 %v2410, 4294901760
        %v3866 = vsub.f32 %v2410, %v3865
        %3867 = vmatpush1.msra.mxu0 %v3866
        %v3868 = vand.u32 %v2407, 4294901760
        %v3869 = vsub.f32 %v2407, %v3868
        %3870 = vmatprep.subr.mxu0 %v3869
        %v3871 = vand.u32 %v2406, 4294901760
        %v3872 = vsub.f32 %v2406, %v3871
        %3873 = vmatpush1.msra.mxu0 %v3872
        %v3874 = vand.u32 %v2403, 4294901760
        %v3875 = vsub.f32 %v2403, %v3874
        %3876 = vmatprep.subr.mxu0 %v3875
        %v3877 = vand.u32 %v2402, 4294901760
        %v3878 = vsub.f32 %v2402, %v3877
        %3879 = vmatpush1.msra.mxu0 %v3878
        %v3880 = vand.u32 %v2399, 4294901760
        %v3881 = vsub.f32 %v2399, %v3880
        %3882 = vmatprep.subr.mxu0 %v3881
        %v3883 = vand.u32 %v2398, 4294901760
        %v3884 = vsub.f32 %v2398, %v3883
        %3885 = vmatpush1.msra.mxu0 %v3884
        %v3886 = vand.u32 %v2395, 4294901760
        %v3887 = vsub.f32 %v2395, %v3886
        %3888 = vmatprep.subr.mxu0 %v3887
        %v3889 = vand.u32 %v2394, 4294901760
        %v3890 = vsub.f32 %v2394, %v3889
        %3891 = vmatpush1.msra.mxu0 %v3890
        %v3892 = vand.u32 %v2391, 4294901760
        %v3893 = vsub.f32 %v2391, %v3892
        %3894 = vmatprep.subr.mxu0 %v3893
        %v3895 = vand.u32 %v2390, 4294901760
        %v3896 = vsub.f32 %v2390, %v3895
        %3897 = vmatpush1.msra.mxu0 %v3896
        %v3898 = vand.u32 %v2387, 4294901760
        %v3899 = vsub.f32 %v2387, %v3898
        %3900 = vmatprep.subr.mxu0 %v3899
        %v3901 = vand.u32 %v2386, 4294901760
        %v3902 = vsub.f32 %v2386, %v3901
        %3903 = vmatpush1.msra.mxu0 %v3902
        %v3904 = vand.u32 %v2383, 4294901760
        %v3905 = vsub.f32 %v2383, %v3904
        %3906 = vmatprep.subr.mxu0 %v3905
        %v3907 = vand.u32 %v2382, 4294901760
        %v3908 = vsub.f32 %v2382, %v3907
        %3909 = vmatpush1.msra.mxu0 %v3908
        %v3910 = vand.u32 %v2379, 4294901760
        %v3911 = vsub.f32 %v2379, %v3910
        %3912 = vmatprep.subr.mxu0 %v3911
        %v3913 = vand.u32 %v2378, 4294901760
        %v3914 = vsub.f32 %v2378, %v3913
        %3915 = vmatpush1.msra.mxu0 %v3914
        %v3916 = vand.u32 %v2375, 4294901760
        %v3917 = vsub.f32 %v2375, %v3916
        %3918 = vmatprep.subr.mxu0 %v3917
        %v3919 = vand.u32 %v2374, 4294901760
        %v3920 = vsub.f32 %v2374, %v3919
        %3921 = vmatpush1.msra.mxu0 %v3920
        %v3922 = vand.u32 %v2371, 4294901760
        %v3923 = vsub.f32 %v2371, %v3922
        %3924 = vmatprep.subr.mxu0 %v3923
        %v3925 = vand.u32 %v2370, 4294901760
        %v3926 = vsub.f32 %v2370, %v3925
        %3927 = vmatpush1.msra.mxu0 %v3926
        %3928 = vmatprep.subr.mxu0 0.0
        %3929 = vmatpush2.msra.mxu0 0.0
        %3930 = vmatprep.subr.mxu0 0.0
        %3931 = vmatpush2.msra.mxu0 0.0
        %3932 = vmatprep.subr.mxu0 0.0
        %3933 = vmatpush2.msra.mxu0 0.0
        %3934 = vmatprep.subr.mxu0 0.0
        %3935 = vmatpush2.msra.mxu0 0.0
        %3936 = vmatprep.subr.mxu0 0.0
        %3937 = vmatpush2.msra.mxu0 0.0
        %3938 = vmatprep.subr.mxu0 0.0
        %3939 = vmatpush2.msra.mxu0 0.0
        %3940 = vmatprep.subr.mxu0 0.0
        %3941 = vmatpush2.msra.mxu0 0.0
        %3942 = vmatprep.subr.mxu0 0.0
        %3943 = vmatpush2.msra.mxu0 0.0
        %3944 = vmatprep.subr.mxu0 0.0
        %3945 = vmatpush2.msra.mxu0 0.0
        %3946 = vmatprep.subr.mxu0 0.0
        %3947 = vmatpush2.msra.mxu0 0.0
        %3948 = vmatprep.subr.mxu0 0.0
        %3949 = vmatpush2.msra.mxu0 0.0
        %3950 = vmatprep.subr.mxu0 0.0
        %3951 = vmatpush2.msra.mxu0 0.0
        %3952 = vmatprep.subr.mxu0 0.0
        %3953 = vmatpush2.msra.mxu0 0.0
        %3954 = vmatprep.subr.mxu0 0.0
        %3955 = vmatpush2.msra.mxu0 0.0
        %3956 = vmatprep.subr.mxu0 0.0
        %3957 = vmatpush2.msra.mxu0 0.0
        %3958 = vmatprep.subr.mxu0 0.0
        %3959 = vmatpush2.msra.mxu0 0.0
        %3960 = vmatprep.mubr.f32.mxu0 0.0
        %v3961 = vand.u32 %v2432, 4294901760
        %v3962 = vsub.f32 %v2432, %v3961
        %3963 = vmatmul.mubr.f32.gmra.mxu0 %v3962
        %v3964 = vpop.f32.mrf.mxu0
        %v3965 = vadd.f32 %v3807, %v3964
        %v3966 = vpop.f32.mrf.mxu0
        %v3967 = vadd.f32 %v3809, %v3966
        %3968 = vmatprep.mubr.f32.mxu0 0.0
        %v3969 = vand.u32 %v2433, 4294901760
        %v3970 = vsub.f32 %v2433, %v3969
        %3971 = vmatmul.mubr.f32.gmra.mxu0 %v3970
        %v3972 = vpop.f32.mrf.mxu0
        %v3973 = vadd.f32 %v3814, %v3972
        %v3974 = vpop.f32.mrf.mxu0
        %v3975 = vadd.f32 %v3816, %v3974
        %3976 = vmatprep.mubr.f32.mxu0 0.0
        %v3977 = vand.u32 %v2434, 4294901760
        %v3978 = vsub.f32 %v2434, %v3977
        %3979 = vmatmul.mubr.f32.gmra.mxu0 %v3978
        %v3980 = vpop.f32.mrf.mxu0
        %v3981 = vadd.f32 %v3821, %v3980
        %v3982 = vpop.f32.mrf.mxu0
        %v3983 = vadd.f32 %v3823, %v3982
        %3984 = vmatprep.mubr.f32.mxu0 0.0
        %v3985 = vand.u32 %v2435, 4294901760
        %v3986 = vsub.f32 %v2435, %v3985
        %3987 = vmatmul.mubr.f32.gmra.mxu0 %v3986
        %v3988 = vpop.f32.mrf.mxu0
        %v3989 = vadd.f32 %v3828, %v3988
        %v3990 = vpop.f32.mrf.mxu0
        %v3991 = vadd.f32 %v3830, %v3990
        %3992 = vdwg.mxu0
        %v3993 = vand.u32 %v2431, 4294901760
        %3994 = vmatprep.subr.mxu0 %v3993
        %v3995 = vand.u32 %v2430, 4294901760
        %3996 = vmatpush1.msra.mxu0 %v3995
        %v3997 = vand.u32 %v2427, 4294901760
        %3998 = vmatprep.subr.mxu0 %v3997
        %v3999 = vand.u32 %v2426, 4294901760
        %4000 = vmatpush1.msra.mxu0 %v3999
        %v4001 = vand.u32 %v2423, 4294901760
        %4002 = vmatprep.subr.mxu0 %v4001
        %v4003 = vand.u32 %v2422, 4294901760
        %4004 = vmatpush1.msra.mxu0 %v4003
        %v4005 = vand.u32 %v2419, 4294901760
        %4006 = vmatprep.subr.mxu0 %v4005
        %v4007 = vand.u32 %v2418, 4294901760
        %4008 = vmatpush1.msra.mxu0 %v4007
        %v4009 = vand.u32 %v2415, 4294901760
        %4010 = vmatprep.subr.mxu0 %v4009
        %v4011 = vand.u32 %v2414, 4294901760
        %4012 = vmatpush1.msra.mxu0 %v4011
        %v4013 = vand.u32 %v2411, 4294901760
        %4014 = vmatprep.subr.mxu0 %v4013
        %v4015 = vand.u32 %v2410, 4294901760
        %4016 = vmatpush1.msra.mxu0 %v4015
        %v4017 = vand.u32 %v2407, 4294901760
        %4018 = vmatprep.subr.mxu0 %v4017
        %v4019 = vand.u32 %v2406, 4294901760
        %4020 = vmatpush1.msra.mxu0 %v4019
        %v4021 = vand.u32 %v2403, 4294901760
        %4022 = vmatprep.subr.mxu0 %v4021
        %v4023 = vand.u32 %v2402, 4294901760
        %4024 = vmatpush1.msra.mxu0 %v4023
        %v4025 = vand.u32 %v2399, 4294901760
        %4026 = vmatprep.subr.mxu0 %v4025
        %v4027 = vand.u32 %v2398, 4294901760
        %4028 = vmatpush1.msra.mxu0 %v4027
        %v4029 = vand.u32 %v2395, 4294901760
        %4030 = vmatprep.subr.mxu0 %v4029
        %v4031 = vand.u32 %v2394, 4294901760
        %4032 = vmatpush1.msra.mxu0 %v4031
        %v4033 = vand.u32 %v2391, 4294901760
        %4034 = vmatprep.subr.mxu0 %v4033
        %v4035 = vand.u32 %v2390, 4294901760
        %4036 = vmatpush1.msra.mxu0 %v4035
        %v4037 = vand.u32 %v2387, 4294901760
        %4038 = vmatprep.subr.mxu0 %v4037
        %v4039 = vand.u32 %v2386, 4294901760
        %4040 = vmatpush1.msra.mxu0 %v4039
        %v4041 = vand.u32 %v2383, 4294901760
        %4042 = vmatprep.subr.mxu0 %v4041
        %v4043 = vand.u32 %v2382, 4294901760
        %4044 = vmatpush1.msra.mxu0 %v4043
        %v4045 = vand.u32 %v2379, 4294901760
        %4046 = vmatprep.subr.mxu0 %v4045
        %v4047 = vand.u32 %v2378, 4294901760
        %4048 = vmatpush1.msra.mxu0 %v4047
        %v4049 = vand.u32 %v2375, 4294901760
        %4050 = vmatprep.subr.mxu0 %v4049
        %v4051 = vand.u32 %v2374, 4294901760
        %4052 = vmatpush1.msra.mxu0 %v4051
        %v4053 = vand.u32 %v2371, 4294901760
        %4054 = vmatprep.subr.mxu0 %v4053
        %v4055 = vand.u32 %v2370, 4294901760
        %4056 = vmatpush1.msra.mxu0 %v4055
        %4057 = vmatprep.subr.mxu0 0.0
        %4058 = vmatpush2.msra.mxu0 0.0
        %4059 = vmatprep.subr.mxu0 0.0
        %4060 = vmatpush2.msra.mxu0 0.0
        %4061 = vmatprep.subr.mxu0 0.0
        %4062 = vmatpush2.msra.mxu0 0.0
        %4063 = vmatprep.subr.mxu0 0.0
        %4064 = vmatpush2.msra.mxu0 0.0
        %4065 = vmatprep.subr.mxu0 0.0
        %4066 = vmatpush2.msra.mxu0 0.0
        %4067 = vmatprep.subr.mxu0 0.0
        %4068 = vmatpush2.msra.mxu0 0.0
        %4069 = vmatprep.subr.mxu0 0.0
        %4070 = vmatpush2.msra.mxu0 0.0
        %4071 = vmatprep.subr.mxu0 0.0
        %4072 = vmatpush2.msra.mxu0 0.0
        %4073 = vmatprep.subr.mxu0 0.0
        %4074 = vmatpush2.msra.mxu0 0.0
        %4075 = vmatprep.subr.mxu0 0.0
        %4076 = vmatpush2.msra.mxu0 0.0
        %4077 = vmatprep.subr.mxu0 0.0
        %4078 = vmatpush2.msra.mxu0 0.0
        %4079 = vmatprep.subr.mxu0 0.0
        %4080 = vmatpush2.msra.mxu0 0.0
        %4081 = vmatprep.subr.mxu0 0.0
        %4082 = vmatpush2.msra.mxu0 0.0
        %4083 = vmatprep.subr.mxu0 0.0
        %4084 = vmatpush2.msra.mxu0 0.0
        %4085 = vmatprep.subr.mxu0 0.0
        %4086 = vmatpush2.msra.mxu0 0.0
        %4087 = vmatprep.subr.mxu0 0.0
        %4088 = vmatpush2.msra.mxu0 0.0
        %4089 = vmatprep.mubr.f32.mxu0 0.0
        %v4090 = vand.u32 %v2432, 4294901760
        %v4091 = vsub.f32 %v2432, %v4090
        %v4092 = vand.u32 %v4091, 4294901760
        %4093 = vmatmul.mubr.f32.gmra.mxu0 %v4092
        %v4094 = vpop.f32.mrf.mxu0
        %v4095 = vadd.f32 %v3965, %v4094
        %v4096 = vpop.f32.mrf.mxu0
        %v4097 = vadd.f32 %v3967, %v4096
        %4098 = vmatprep.mubr.f32.mxu0 0.0
        %v4099 = vand.u32 %v2433, 4294901760
        %v4100 = vsub.f32 %v2433, %v4099
        %v4101 = vand.u32 %v4100, 4294901760
        %4102 = vmatmul.mubr.f32.gmra.mxu0 %v4101
        %v4103 = vpop.f32.mrf.mxu0
        %v4104 = vadd.f32 %v3973, %v4103
        %v4105 = vpop.f32.mrf.mxu0
        %v4106 = vadd.f32 %v3975, %v4105
        %4107 = vmatprep.mubr.f32.mxu0 0.0
        %v4108 = vand.u32 %v2434, 4294901760
        %v4109 = vsub.f32 %v2434, %v4108
        %v4110 = vand.u32 %v4109, 4294901760
        %4111 = vmatmul.mubr.f32.gmra.mxu0 %v4110
        %v4112 = vpop.f32.mrf.mxu0
        %v4113 = vadd.f32 %v3981, %v4112
        %v4114 = vpop.f32.mrf.mxu0
        %v4115 = vadd.f32 %v3983, %v4114
        %4116 = vmatprep.mubr.f32.mxu0 0.0
        %v4117 = vand.u32 %v2435, 4294901760
        %v4118 = vsub.f32 %v2435, %v4117
        %v4119 = vand.u32 %v4118, 4294901760
        %4120 = vmatmul.mubr.f32.gmra.mxu0 %v4119
        %v4121 = vpop.f32.mrf.mxu0
        %v4122 = vadd.f32 %v3989, %v4121
        %v4123 = vpop.f32.mrf.mxu0
        %v4124 = vadd.f32 %v3991, %v4123
        %4125 = vdwg.mxu0
        %v4126 = vand.u32 %v2431, 4294901760
        %v4127 = vsub.f32 %v2431, %v4126
        %v4128 = vand.u32 %v4127, 4294901760
        %4129 = vmatprep.subr.mxu0 %v4128
        %v4130 = vand.u32 %v2430, 4294901760
        %v4131 = vsub.f32 %v2430, %v4130
        %v4132 = vand.u32 %v4131, 4294901760
        %4133 = vmatpush1.msra.mxu0 %v4132
        %v4134 = vand.u32 %v2427, 4294901760
        %v4135 = vsub.f32 %v2427, %v4134
        %v4136 = vand.u32 %v4135, 4294901760
        %4137 = vmatprep.subr.mxu0 %v4136
        %v4138 = vand.u32 %v2426, 4294901760
        %v4139 = vsub.f32 %v2426, %v4138
        %v4140 = vand.u32 %v4139, 4294901760
        %4141 = vmatpush1.msra.mxu0 %v4140
        %v4142 = vand.u32 %v2423, 4294901760
        %v4143 = vsub.f32 %v2423, %v4142
        %v4144 = vand.u32 %v4143, 4294901760
        %4145 = vmatprep.subr.mxu0 %v4144
        %v4146 = vand.u32 %v2422, 4294901760
        %v4147 = vsub.f32 %v2422, %v4146
        %v4148 = vand.u32 %v4147, 4294901760
        %4149 = vmatpush1.msra.mxu0 %v4148
        %v4150 = vand.u32 %v2419, 4294901760
        %v4151 = vsub.f32 %v2419, %v4150
        %v4152 = vand.u32 %v4151, 4294901760
        %4153 = vmatprep.subr.mxu0 %v4152
        %v4154 = vand.u32 %v2418, 4294901760
        %v4155 = vsub.f32 %v2418, %v4154
        %v4156 = vand.u32 %v4155, 4294901760
        %4157 = vmatpush1.msra.mxu0 %v4156
        %v4158 = vand.u32 %v2415, 4294901760
        %v4159 = vsub.f32 %v2415, %v4158
        %v4160 = vand.u32 %v4159, 4294901760
        %4161 = vmatprep.subr.mxu0 %v4160
        %v4162 = vand.u32 %v2414, 4294901760
        %v4163 = vsub.f32 %v2414, %v4162
        %v4164 = vand.u32 %v4163, 4294901760
        %4165 = vmatpush1.msra.mxu0 %v4164
        %v4166 = vand.u32 %v2411, 4294901760
        %v4167 = vsub.f32 %v2411, %v4166
        %v4168 = vand.u32 %v4167, 4294901760
        %4169 = vmatprep.subr.mxu0 %v4168
        %v4170 = vand.u32 %v2410, 4294901760
        %v4171 = vsub.f32 %v2410, %v4170
        %v4172 = vand.u32 %v4171, 4294901760
        %4173 = vmatpush1.msra.mxu0 %v4172
        %v4174 = vand.u32 %v2407, 4294901760
        %v4175 = vsub.f32 %v2407, %v4174
        %v4176 = vand.u32 %v4175, 4294901760
        %4177 = vmatprep.subr.mxu0 %v4176
        %v4178 = vand.u32 %v2406, 4294901760
        %v4179 = vsub.f32 %v2406, %v4178
        %v4180 = vand.u32 %v4179, 4294901760
        %4181 = vmatpush1.msra.mxu0 %v4180
        %v4182 = vand.u32 %v2403, 4294901760
        %v4183 = vsub.f32 %v2403, %v4182
        %v4184 = vand.u32 %v4183, 4294901760
        %4185 = vmatprep.subr.mxu0 %v4184
        %v4186 = vand.u32 %v2402, 4294901760
        %v4187 = vsub.f32 %v2402, %v4186
        %v4188 = vand.u32 %v4187, 4294901760
        %4189 = vmatpush1.msra.mxu0 %v4188
        %v4190 = vand.u32 %v2399, 4294901760
        %v4191 = vsub.f32 %v2399, %v4190
        %v4192 = vand.u32 %v4191, 4294901760
        %4193 = vmatprep.subr.mxu0 %v4192
        %v4194 = vand.u32 %v2398, 4294901760
        %v4195 = vsub.f32 %v2398, %v4194
        %v4196 = vand.u32 %v4195, 4294901760
        %4197 = vmatpush1.msra.mxu0 %v4196
        %v4198 = vand.u32 %v2395, 4294901760
        %v4199 = vsub.f32 %v2395, %v4198
        %v4200 = vand.u32 %v4199, 4294901760
        %4201 = vmatprep.subr.mxu0 %v4200
        %v4202 = vand.u32 %v2394, 4294901760
        %v4203 = vsub.f32 %v2394, %v4202
        %v4204 = vand.u32 %v4203, 4294901760
        %4205 = vmatpush1.msra.mxu0 %v4204
        %v4206 = vand.u32 %v2391, 4294901760
        %v4207 = vsub.f32 %v2391, %v4206
        %v4208 = vand.u32 %v4207, 4294901760
        %4209 = vmatprep.subr.mxu0 %v4208
        %v4210 = vand.u32 %v2390, 4294901760
        %v4211 = vsub.f32 %v2390, %v4210
        %v4212 = vand.u32 %v4211, 4294901760
        %4213 = vmatpush1.msra.mxu0 %v4212
        %v4214 = vand.u32 %v2387, 4294901760
        %v4215 = vsub.f32 %v2387, %v4214
        %v4216 = vand.u32 %v4215, 4294901760
        %4217 = vmatprep.subr.mxu0 %v4216
        %v4218 = vand.u32 %v2386, 4294901760
        %v4219 = vsub.f32 %v2386, %v4218
        %v4220 = vand.u32 %v4219, 4294901760
        %4221 = vmatpush1.msra.mxu0 %v4220
        %v4222 = vand.u32 %v2383, 4294901760
        %v4223 = vsub.f32 %v2383, %v4222
        %v4224 = vand.u32 %v4223, 4294901760
        %4225 = vmatprep.subr.mxu0 %v4224
        %v4226 = vand.u32 %v2382, 4294901760
        %v4227 = vsub.f32 %v2382, %v4226
        %v4228 = vand.u32 %v4227, 4294901760
        %4229 = vmatpush1.msra.mxu0 %v4228
        %v4230 = vand.u32 %v2379, 4294901760
        %v4231 = vsub.f32 %v2379, %v4230
        %v4232 = vand.u32 %v4231, 4294901760
        %4233 = vmatprep.subr.mxu0 %v4232
        %v4234 = vand.u32 %v2378, 4294901760
        %v4235 = vsub.f32 %v2378, %v4234
        %v4236 = vand.u32 %v4235, 4294901760
        %4237 = vmatpush1.msra.mxu0 %v4236
        %v4238 = vand.u32 %v2375, 4294901760
        %v4239 = vsub.f32 %v2375, %v4238
        %v4240 = vand.u32 %v4239, 4294901760
        %4241 = vmatprep.subr.mxu0 %v4240
        %v4242 = vand.u32 %v2374, 4294901760
        %v4243 = vsub.f32 %v2374, %v4242
        %v4244 = vand.u32 %v4243, 4294901760
        %4245 = vmatpush1.msra.mxu0 %v4244
        %v4246 = vand.u32 %v2371, 4294901760
        %v4247 = vsub.f32 %v2371, %v4246
        %v4248 = vand.u32 %v4247, 4294901760
        %4249 = vmatprep.subr.mxu0 %v4248
        %v4250 = vand.u32 %v2370, 4294901760
        %v4251 = vsub.f32 %v2370, %v4250
        %v4252 = vand.u32 %v4251, 4294901760
        %4253 = vmatpush1.msra.mxu0 %v4252
        %4254 = vmatprep.subr.mxu0 0.0
        %4255 = vmatpush2.msra.mxu0 0.0
        %4256 = vmatprep.subr.mxu0 0.0
        %4257 = vmatpush2.msra.mxu0 0.0
        %4258 = vmatprep.subr.mxu0 0.0
        %4259 = vmatpush2.msra.mxu0 0.0
        %4260 = vmatprep.subr.mxu0 0.0
        %4261 = vmatpush2.msra.mxu0 0.0
        %4262 = vmatprep.subr.mxu0 0.0
        %4263 = vmatpush2.msra.mxu0 0.0
        %4264 = vmatprep.subr.mxu0 0.0
        %4265 = vmatpush2.msra.mxu0 0.0
        %4266 = vmatprep.subr.mxu0 0.0
        %4267 = vmatpush2.msra.mxu0 0.0
        %4268 = vmatprep.subr.mxu0 0.0
        %4269 = vmatpush2.msra.mxu0 0.0
        %4270 = vmatprep.subr.mxu0 0.0
        %4271 = vmatpush2.msra.mxu0 0.0
        %4272 = vmatprep.subr.mxu0 0.0
        %4273 = vmatpush2.msra.mxu0 0.0
        %4274 = vmatprep.subr.mxu0 0.0
        %4275 = vmatpush2.msra.mxu0 0.0
        %4276 = vmatprep.subr.mxu0 0.0
        %4277 = vmatpush2.msra.mxu0 0.0
        %4278 = vmatprep.subr.mxu0 0.0
        %4279 = vmatpush2.msra.mxu0 0.0
        %4280 = vmatprep.subr.mxu0 0.0
        %4281 = vmatpush2.msra.mxu0 0.0
        %4282 = vmatprep.subr.mxu0 0.0
        %4283 = vmatpush2.msra.mxu0 0.0
        %4284 = vmatprep.subr.mxu0 0.0
        %4285 = vmatpush2.msra.mxu0 0.0
        %4286 = vmatprep.mubr.f32.mxu0 0.0
        %v4287 = vand.u32 %v2432, 4294901760
        %4288 = vmatmul.mubr.f32.gmra.mxu0 %v4287
        %v4289 = vpop.f32.mrf.mxu0
        %v4290 = vadd.f32 %v4095, %v4289
        %v4291 = vpop.f32.mrf.mxu0
        %v4292 = vadd.f32 %v4097, %v4291
        %4293 = vmatprep.mubr.f32.mxu0 0.0
        %v4294 = vand.u32 %v2433, 4294901760
        %4295 = vmatmul.mubr.f32.gmra.mxu0 %v4294
        %v4296 = vpop.f32.mrf.mxu0
        %v4297 = vadd.f32 %v4104, %v4296
        %v4298 = vpop.f32.mrf.mxu0
        %v4299 = vadd.f32 %v4106, %v4298
        %4300 = vmatprep.mubr.f32.mxu0 0.0
        %v4301 = vand.u32 %v2434, 4294901760
        %4302 = vmatmul.mubr.f32.gmra.mxu0 %v4301
        %v4303 = vpop.f32.mrf.mxu0
        %v4304 = vadd.f32 %v4113, %v4303
        %v4305 = vpop.f32.mrf.mxu0
        %v4306 = vadd.f32 %v4115, %v4305
        %4307 = vmatprep.mubr.f32.mxu0 0.0
        %v4308 = vand.u32 %v2435, 4294901760
        %4309 = vmatmul.mubr.f32.gmra.mxu0 %v4308
        %v4310 = vpop.f32.mrf.mxu0
        %v4311 = vadd.f32 %v4122, %v4310
        %v4312 = vpop.f32.mrf.mxu0
        %v4313 = vadd.f32 %v4124, %v4312
        %4314 = vdwg.mxu0
        %v4315 = vand.u32 %v2431, 4294901760
        %4316 = vmatprep.subr.mxu0 %v4315
        %v4317 = vand.u32 %v2430, 4294901760
        %4318 = vmatpush1.msra.mxu0 %v4317
        %v4319 = vand.u32 %v2427, 4294901760
        %4320 = vmatprep.subr.mxu0 %v4319
        %v4321 = vand.u32 %v2426, 4294901760
        %4322 = vmatpush1.msra.mxu0 %v4321
        %v4323 = vand.u32 %v2423, 4294901760
        %4324 = vmatprep.subr.mxu0 %v4323
        %v4325 = vand.u32 %v2422, 4294901760
        %4326 = vmatpush1.msra.mxu0 %v4325
        %v4327 = vand.u32 %v2419, 4294901760
        %4328 = vmatprep.subr.mxu0 %v4327
        %v4329 = vand.u32 %v2418, 4294901760
        %4330 = vmatpush1.msra.mxu0 %v4329
        %v4331 = vand.u32 %v2415, 4294901760
        %4332 = vmatprep.subr.mxu0 %v4331
        %v4333 = vand.u32 %v2414, 4294901760
        %4334 = vmatpush1.msra.mxu0 %v4333
        %v4335 = vand.u32 %v2411, 4294901760
        %4336 = vmatprep.subr.mxu0 %v4335
        %v4337 = vand.u32 %v2410, 4294901760
        %4338 = vmatpush1.msra.mxu0 %v4337
        %v4339 = vand.u32 %v2407, 4294901760
        %4340 = vmatprep.subr.mxu0 %v4339
        %v4341 = vand.u32 %v2406, 4294901760
        %4342 = vmatpush1.msra.mxu0 %v4341
        %v4343 = vand.u32 %v2403, 4294901760
        %4344 = vmatprep.subr.mxu0 %v4343
        %v4345 = vand.u32 %v2402, 4294901760
        %4346 = vmatpush1.msra.mxu0 %v4345
        %v4347 = vand.u32 %v2399, 4294901760
        %4348 = vmatprep.subr.mxu0 %v4347
        %v4349 = vand.u32 %v2398, 4294901760
        %4350 = vmatpush1.msra.mxu0 %v4349
        %v4351 = vand.u32 %v2395, 4294901760
        %4352 = vmatprep.subr.mxu0 %v4351
        %v4353 = vand.u32 %v2394, 4294901760
        %4354 = vmatpush1.msra.mxu0 %v4353
        %v4355 = vand.u32 %v2391, 4294901760
        %4356 = vmatprep.subr.mxu0 %v4355
        %v4357 = vand.u32 %v2390, 4294901760
        %4358 = vmatpush1.msra.mxu0 %v4357
        %v4359 = vand.u32 %v2387, 4294901760
        %4360 = vmatprep.subr.mxu0 %v4359
        %v4361 = vand.u32 %v2386, 4294901760
        %4362 = vmatpush1.msra.mxu0 %v4361
        %v4363 = vand.u32 %v2383, 4294901760
        %4364 = vmatprep.subr.mxu0 %v4363
        %v4365 = vand.u32 %v2382, 4294901760
        %4366 = vmatpush1.msra.mxu0 %v4365
        %v4367 = vand.u32 %v2379, 4294901760
        %4368 = vmatprep.subr.mxu0 %v4367
        %v4369 = vand.u32 %v2378, 4294901760
        %4370 = vmatpush1.msra.mxu0 %v4369
        %v4371 = vand.u32 %v2375, 4294901760
        %4372 = vmatprep.subr.mxu0 %v4371
        %v4373 = vand.u32 %v2374, 4294901760
        %4374 = vmatpush1.msra.mxu0 %v4373
        %v4375 = vand.u32 %v2371, 4294901760
        %4376 = vmatprep.subr.mxu0 %v4375
        %v4377 = vand.u32 %v2370, 4294901760
        %4378 = vmatpush1.msra.mxu0 %v4377
        %4379 = vmatprep.subr.mxu0 0.0
        %4380 = vmatpush2.msra.mxu0 0.0
        %4381 = vmatprep.subr.mxu0 0.0
        %4382 = vmatpush2.msra.mxu0 0.0
        %4383 = vmatprep.subr.mxu0 0.0
        %4384 = vmatpush2.msra.mxu0 0.0
        %4385 = vmatprep.subr.mxu0 0.0
        %4386 = vmatpush2.msra.mxu0 0.0
        %4387 = vmatprep.subr.mxu0 0.0
        %4388 = vmatpush2.msra.mxu0 0.0
        %4389 = vmatprep.subr.mxu0 0.0
        %4390 = vmatpush2.msra.mxu0 0.0
        %4391 = vmatprep.subr.mxu0 0.0
        %4392 = vmatpush2.msra.mxu0 0.0
        %4393 = vmatprep.subr.mxu0 0.0
        %4394 = vmatpush2.msra.mxu0 0.0
        %4395 = vmatprep.subr.mxu0 0.0
        %4396 = vmatpush2.msra.mxu0 0.0
        %4397 = vmatprep.subr.mxu0 0.0
        %4398 = vmatpush2.msra.mxu0 0.0
        %4399 = vmatprep.subr.mxu0 0.0
        %4400 = vmatpush2.msra.mxu0 0.0
        %4401 = vmatprep.subr.mxu0 0.0
        %4402 = vmatpush2.msra.mxu0 0.0
        %4403 = vmatprep.subr.mxu0 0.0
        %4404 = vmatpush2.msra.mxu0 0.0
        %4405 = vmatprep.subr.mxu0 0.0
        %4406 = vmatpush2.msra.mxu0 0.0
        %4407 = vmatprep.subr.mxu0 0.0
        %4408 = vmatpush2.msra.mxu0 0.0
        %4409 = vmatprep.subr.mxu0 0.0
        %4410 = vmatpush2.msra.mxu0 0.0
        %4411 = vmatprep.mubr.f32.mxu0 0.0
        %v4412 = vand.u32 %v2432, 4294901760
        %4413 = vmatmul.mubr.f32.gmra.mxu0 %v4412
        %v4414 = vpop.f32.mrf.mxu0
        %v4415 = vadd.f32 %v4290, %v4414
        %v4416 = vpop.f32.mrf.mxu0
        %v4417 = vadd.f32 %v4292, %v4416
        %4418 = vmatprep.mubr.f32.mxu0 0.0
        %v4419 = vand.u32 %v2433, 4294901760
        %4420 = vmatmul.mubr.f32.gmra.mxu0 %v4419
        %v4421 = vpop.f32.mrf.mxu0
        %v4422 = vadd.f32 %v4297, %v4421
        %v4423 = vpop.f32.mrf.mxu0
        %v4424 = vadd.f32 %v4299, %v4423
        %4425 = vmatprep.mubr.f32.mxu0 0.0
        %v4426 = vand.u32 %v2434, 4294901760
        %4427 = vmatmul.mubr.f32.gmra.mxu0 %v4426
        %v4428 = vpop.f32.mrf.mxu0
        %v4429 = vadd.f32 %v4304, %v4428
        %v4430 = vpop.f32.mrf.mxu0
        %v4431 = vadd.f32 %v4306, %v4430
        %4432 = vmatprep.mubr.f32.mxu0 0.0
        %v4433 = vand.u32 %v2435, 4294901760
        %4434 = vmatmul.mubr.f32.gmra.mxu0 %v4433
        %v4435 = vpop.f32.mrf.mxu0
        %v4436 = vadd.f32 %v4311, %v4435
        %v4437 = vpop.f32.mrf.mxu0
        %v4438 = vadd.f32 %v4313, %v4437
        %4439 = vdwg.mxu0
        %v4440 = vld [vmem:[%s5] sm:$0xff]
        %v4441 = vld [vmem:[%s5 + $0x8] sm:$0xff]
        %v4442 = vld [vmem:[%s5 + $0x10] sm:$0xff]
        %v4443 = vld [vmem:[%s5 + $0x18] sm:$0xff]
        %v4444 = vpack.c.bf16 %v4441, %v4440
        %v4445 = vpack.c.bf16 %v4443, %v4442
        %v4446 = vld [vmem:[%s434] sm:$0xff]
        %v4447 = vld [vmem:[%s434 + $0x8] sm:$0xff]
        %v4448 = vld [vmem:[%s434 + $0x10] sm:$0xff]
        %v4449 = vld [vmem:[%s434 + $0x18] sm:$0xff]
        %v4450 = vld [vmem:[%s434 + $0x20] sm:$0xff]
        %v4451 = vld [vmem:[%s434 + $0x28] sm:$0xff]
        %v4452 = vld [vmem:[%s434 + $0x30] sm:$0xff]
        %v4453 = vld [vmem:[%s434 + $0x38] sm:$0xff]
        %v4454 = vpack.c.bf16 %v4450, %v4446
        %v4455 = vpack.c.bf16 %v4451, %v4447
        %v4456 = vpack.c.bf16 %v4452, %v4448
        %v4457 = vpack.c.bf16 %v4453, %v4449
        %v4458 = vld [vmem:[%s6] sm:$0xff]
        %v4459 = vld [vmem:[%s6 + $0x8] sm:$0xff]
        %v4460 = vld [vmem:[%s6 + $0x10] sm:$0xff]
        %v4461 = vld [vmem:[%s6 + $0x18] sm:$0xff]
        %4463 = vset.pattern.permute.xlu0 0
        %4464 = vperm.xlu0 %4463, %v4458
        %v4465 = vpop.permute.xlu0 %4464
        %4468 = vset.pattern.permute.xlu0 0
        %4469 = vperm.xlu0 %4468, %v4459
        %v4470 = vpop.permute.xlu0 %4469
        %4473 = vset.pattern.permute.xlu0 0
        %4474 = vperm.xlu0 %4473, %v4460
        %v4475 = vpop.permute.xlu0 %4474
        %4478 = vset.pattern.permute.xlu0 0
        %4479 = vperm.xlu0 %4478, %v4461
        %v4480 = vpop.permute.xlu0 %4479
        %vm4482 = vcmask 130048
        %v4484 = vsel %vm4482, %v4444, 0
        %v4487 = vsel %vm4482, %v4445, 0
        %4489 = vmatprep.subr.bf16.mxu0 0
        %4490 = vmatpush1.bf16.msra.mxu0 0
        %4491 = vmatprep.subr.bf16.mxu0 0
        %4492 = vmatpush1.bf16.msra.mxu0 0
        %4493 = vmatprep.subr.bf16.mxu0 0
        %4494 = vmatpush1.bf16.msra.mxu0 0
        %4495 = vmatprep.subr.bf16.mxu0 0
        %4496 = vmatpush1.bf16.msra.mxu0 0
        %4497 = vmatprep.subr.bf16.mxu0 0
        %4498 = vmatpush1.bf16.msra.mxu0 0
        %4499 = vmatprep.subr.bf16.mxu0 0
        %4500 = vmatpush1.bf16.msra.mxu0 0
        %4501 = vmatprep.subr.bf16.mxu0 0
        %4502 = vmatpush1.bf16.msra.mxu0 0
        %4503 = vmatprep.subr.bf16.mxu0 %v4455
        %4504 = vmatpush1.bf16.msra.mxu0 %v4454
        %4505 = vmatprep.subr.bf16.mxu0 0
        %4506 = vmatpush2.bf16.msra.mxu0 0
        %4507 = vmatprep.subr.bf16.mxu0 0
        %4508 = vmatpush2.bf16.msra.mxu0 0
        %4509 = vmatprep.subr.bf16.mxu0 0
        %4510 = vmatpush2.bf16.msra.mxu0 0
        %4511 = vmatprep.subr.bf16.mxu0 0
        %4512 = vmatpush2.bf16.msra.mxu0 0
        %4513 = vmatprep.subr.bf16.mxu0 0
        %4514 = vmatpush2.bf16.msra.mxu0 0
        %4515 = vmatprep.subr.bf16.mxu0 0
        %4516 = vmatpush2.bf16.msra.mxu0 0
        %4517 = vmatprep.subr.bf16.mxu0 0
        %4518 = vmatpush2.bf16.msra.mxu0 0
        %4519 = vmatprep.subr.bf16.mxu0 0
        %4520 = vmatpush2.bf16.msra.mxu0 0
        %4521 = vmatprep.mubr.bf16.mxu0 0
        %4522 = vmatmul.mubr.bf16.gmra.mxu0 %v4484
        %v4523 = vpop.f32.mrf.mxu0
        %v4524 = vadd.f32 %v4465, %v4523
        %v4525 = vpop.f32.mrf.mxu0
        %v4526 = vadd.f32 %v4465, %v4525
        %v4527 = vpop.f32.mrf.mxu0
        %v4528 = vadd.f32 %v4470, %v4527
        %v4529 = vpop.f32.mrf.mxu0
        %v4530 = vadd.f32 %v4470, %v4529
        %4531 = vmatprep.mubr.bf16.mxu0 0
        %4532 = vmatmul.mubr.bf16.gmra.mxu0 %v4487
        %v4533 = vpop.f32.mrf.mxu0
        %v4534 = vadd.f32 %v4475, %v4533
        %v4535 = vpop.f32.mrf.mxu0
        %v4536 = vadd.f32 %v4475, %v4535
        %v4537 = vpop.f32.mrf.mxu0
        %v4538 = vadd.f32 %v4480, %v4537
        %v4539 = vpop.f32.mrf.mxu0
        %v4540 = vadd.f32 %v4480, %v4539
        %4541 = vdwg.mxu0
        %4542 = vmatprep.subr.bf16.mxu0 0
        %4543 = vmatpush1.bf16.msra.mxu0 0
        %4544 = vmatprep.subr.bf16.mxu0 0
        %4545 = vmatpush1.bf16.msra.mxu0 0
        %4546 = vmatprep.subr.bf16.mxu0 0
        %4547 = vmatpush1.bf16.msra.mxu0 0
        %4548 = vmatprep.subr.bf16.mxu0 0
        %4549 = vmatpush1.bf16.msra.mxu0 0
        %4550 = vmatprep.subr.bf16.mxu0 0
        %4551 = vmatpush1.bf16.msra.mxu0 0
        %4552 = vmatprep.subr.bf16.mxu0 0
        %4553 = vmatpush1.bf16.msra.mxu0 0
        %4554 = vmatprep.subr.bf16.mxu0 0
        %4555 = vmatpush1.bf16.msra.mxu0 0
        %4556 = vmatprep.subr.bf16.mxu0 %v4457
        %4557 = vmatpush1.bf16.msra.mxu0 %v4456
        %4558 = vmatprep.subr.bf16.mxu0 0
        %4559 = vmatpush2.bf16.msra.mxu0 0
        %4560 = vmatprep.subr.bf16.mxu0 0
        %4561 = vmatpush2.bf16.msra.mxu0 0
        %4562 = vmatprep.subr.bf16.mxu0 0
        %4563 = vmatpush2.bf16.msra.mxu0 0
        %4564 = vmatprep.subr.bf16.mxu0 0
        %4565 = vmatpush2.bf16.msra.mxu0 0
        %4566 = vmatprep.subr.bf16.mxu0 0
        %4567 = vmatpush2.bf16.msra.mxu0 0
        %4568 = vmatprep.subr.bf16.mxu0 0
        %4569 = vmatpush2.bf16.msra.mxu0 0
        %4570 = vmatprep.subr.bf16.mxu0 0
        %4571 = vmatpush2.bf16.msra.mxu0 0
        %4572 = vmatprep.subr.bf16.mxu0 0
        %4573 = vmatpush2.bf16.msra.mxu0 0
        %4574 = vmatprep.mubr.bf16.mxu0 0
        %4575 = vmatmul.mubr.bf16.gmra.mxu0 %v4484
        %v4576 = vpop.f32.mrf.mxu0
        %v4577 = vadd.f32 %v4465, %v4576
        %v4578 = vpop.f32.mrf.mxu0
        %v4579 = vadd.f32 %v4465, %v4578
        %v4580 = vpop.f32.mrf.mxu0
        %v4581 = vadd.f32 %v4470, %v4580
        %v4582 = vpop.f32.mrf.mxu0
        %v4583 = vadd.f32 %v4470, %v4582
        %4584 = vmatprep.mubr.bf16.mxu0 0
        %4585 = vmatmul.mubr.bf16.gmra.mxu0 %v4487
        %v4586 = vpop.f32.mrf.mxu0
        %v4587 = vadd.f32 %v4475, %v4586
        %v4588 = vpop.f32.mrf.mxu0
        %v4589 = vadd.f32 %v4475, %v4588
        %v4590 = vpop.f32.mrf.mxu0
        %v4591 = vadd.f32 %v4480, %v4590
        %v4592 = vpop.f32.mrf.mxu0
        %v4593 = vadd.f32 %v4480, %v4592
        %4594 = vdwg.mxu0
        %v4595 = vmax.f32 %v4524, 0.0
        %v4596 = vmax.f32 %v4526, 0.0
        %v4597 = vmax.f32 %v4577, 0.0
        %v4598 = vmax.f32 %v4579, 0.0
        %v4599 = vmax.f32 %v4528, 0.0
        %v4600 = vmax.f32 %v4530, 0.0
        %v4601 = vmax.f32 %v4581, 0.0
        %v4602 = vmax.f32 %v4583, 0.0
        %v4603 = vmax.f32 %v4534, 0.0
        %v4604 = vmax.f32 %v4536, 0.0
        %v4605 = vmax.f32 %v4587, 0.0
        %v4606 = vmax.f32 %v4589, 0.0
        %v4607 = vmax.f32 %v4538, 0.0
        %v4608 = vmax.f32 %v4540, 0.0
        %v4609 = vmax.f32 %v4591, 0.0
        %v4610 = vmax.f32 %v4593, 0.0
        %v4611 = vld [vmem:[%s7] sm:$0xff]
        %v4612 = vld [vmem:[%s7 + $0x8] sm:$0xff]
        %v4613 = vld [vmem:[%s7 + $0x10] sm:$0xff]
        %v4614 = vld [vmem:[%s7 + $0x18] sm:$0xff]
        %v4615 = vld [vmem:[%s8] sm:$0xff]
        %v4616 = vld [vmem:[%s8 + $0x8] sm:$0xff]
        %v4617 = vld [vmem:[%s8 + $0x10] sm:$0xff]
        %v4618 = vld [vmem:[%s8 + $0x18] sm:$0xff]
        %s4619 = sld [smem:[#allocation2]]
        %4621 = vset.pattern.permute.xlu0 0
        %4622 = vperm.xlu0 %4621, %v4611
        %v4623 = vpop.permute.xlu0 %4622
        %4626 = vset.pattern.permute.xlu0 0
        %4627 = vperm.xlu0 %4626, %v4612
        %v4628 = vpop.permute.xlu0 %4627
        %4631 = vset.pattern.permute.xlu0 0
        %4632 = vperm.xlu0 %4631, %v4613
        %v4633 = vpop.permute.xlu0 %4632
        %4636 = vset.pattern.permute.xlu0 0
        %4637 = vperm.xlu0 %4636, %v4614
        %v4638 = vpop.permute.xlu0 %4637
        %v4640 = vmul.f32 %v1396, %v4623
        %v4641 = vmul.f32 %v1398, %v4623
        %v4642 = vmul.f32 %v2190, %v4623
        %v4643 = vmul.f32 %v2192, %v4623
        %v4644 = vmul.f32 %v1403, %v4628
        %v4645 = vmul.f32 %v1405, %v4628
        %v4646 = vmul.f32 %v2197, %v4628
        %v4647 = vmul.f32 %v2199, %v4628
        %v4648 = vmul.f32 %v1410, %v4633
        %v4649 = vmul.f32 %v1412, %v4633
        %v4650 = vmul.f32 %v2204, %v4633
        %v4651 = vmul.f32 %v2206, %v4633
        %v4652 = vmul.f32 %v1417, %v4638
        %v4653 = vmul.f32 %v1419, %v4638
        %v4654 = vmul.f32 %v2211, %v4638
        %v4655 = vmul.f32 %v2213, %v4638
        %4656 = vset.pattern.permute.xlu0 1
        %4657 = vperm.xlu0 %4656, %v4611
        %v4658 = vpop.permute.xlu0 %4657
        %4660 = vset.pattern.permute.xlu0 1
        %4661 = vperm.xlu0 %4660, %v4612
        %v4662 = vpop.permute.xlu0 %4661
        %4664 = vset.pattern.permute.xlu0 1
        %4665 = vperm.xlu0 %4664, %v4613
        %v4666 = vpop.permute.xlu0 %4665
        %4668 = vset.pattern.permute.xlu0 1
        %4669 = vperm.xlu0 %4668, %v4614
        %v4670 = vpop.permute.xlu0 %4669
        %v4672 = vmul.f32 %v3413, %v4658
        %v4673 = vmul.f32 %v3415, %v4658
        %v4674 = vmul.f32 %v4415, %v4658
        %v4675 = vmul.f32 %v4417, %v4658
        %v4676 = vmul.f32 %v3420, %v4662
        %v4677 = vmul.f32 %v3422, %v4662
        %v4678 = vmul.f32 %v4422, %v4662
        %v4679 = vmul.f32 %v4424, %v4662
        %v4680 = vmul.f32 %v3427, %v4666
        %v4681 = vmul.f32 %v3429, %v4666
        %v4682 = vmul.f32 %v4429, %v4666
        %v4683 = vmul.f32 %v4431, %v4666
        %v4684 = vmul.f32 %v3434, %v4670
        %v4685 = vmul.f32 %v3436, %v4670
        %v4686 = vmul.f32 %v4436, %v4670
        %v4687 = vmul.f32 %v4438, %v4670
        %v4688 = vadd.f32 %v4640, %v4672
        %v4689 = vadd.f32 %v4641, %v4673
        %v4690 = vadd.f32 %v4642, %v4674
        %v4691 = vadd.f32 %v4643, %v4675
        %v4692 = vadd.f32 %v4644, %v4676
        %v4693 = vadd.f32 %v4645, %v4677
        %v4694 = vadd.f32 %v4646, %v4678
        %v4695 = vadd.f32 %v4647, %v4679
        %v4696 = vadd.f32 %v4648, %v4680
        %v4697 = vadd.f32 %v4649, %v4681
        %v4698 = vadd.f32 %v4650, %v4682
        %v4699 = vadd.f32 %v4651, %v4683
        %v4700 = vadd.f32 %v4652, %v4684
        %v4701 = vadd.f32 %v4653, %v4685
        %v4702 = vadd.f32 %v4654, %v4686
        %v4703 = vadd.f32 %v4655, %v4687
        %4704 = vset.pattern.permute.xlu0 2
        %4705 = vperm.xlu0 %4704, %v4611
        %v4706 = vpop.permute.xlu0 %4705
        %4708 = vset.pattern.permute.xlu0 2
        %4709 = vperm.xlu0 %4708, %v4612
        %v4710 = vpop.permute.xlu0 %4709
        %4712 = vset.pattern.permute.xlu0 2
        %4713 = vperm.xlu0 %4712, %v4613
        %v4714 = vpop.permute.xlu0 %4713
        %4716 = vset.pattern.permute.xlu0 2
        %4717 = vperm.xlu0 %4716, %v4614
        %v4718 = vpop.permute.xlu0 %4717
        %v4720 = vmul.f32 %v4595, %v4706
        %v4721 = vmul.f32 %v4596, %v4706
        %v4722 = vmul.f32 %v4597, %v4706
        %v4723 = vmul.f32 %v4598, %v4706
        %v4724 = vmul.f32 %v4599, %v4710
        %v4725 = vmul.f32 %v4600, %v4710
        %v4726 = vmul.f32 %v4601, %v4710
        %v4727 = vmul.f32 %v4602, %v4710
        %v4728 = vmul.f32 %v4603, %v4714
        %v4729 = vmul.f32 %v4604, %v4714
        %v4730 = vmul.f32 %v4605, %v4714
        %v4731 = vmul.f32 %v4606, %v4714
        %v4732 = vmul.f32 %v4607, %v4718
        %v4733 = vmul.f32 %v4608, %v4718
        %v4734 = vmul.f32 %v4609, %v4718
        %v4735 = vmul.f32 %v4610, %v4718
        %v4736 = vadd.f32 %v4688, %v4720
        %v4737 = vadd.f32 %v4689, %v4721
        %v4738 = vadd.f32 %v4690, %v4722
        %v4739 = vadd.f32 %v4691, %v4723
        %v4740 = vadd.f32 %v4692, %v4724
        %v4741 = vadd.f32 %v4693, %v4725
        %v4742 = vadd.f32 %v4694, %v4726
        %v4743 = vadd.f32 %v4695, %v4727
        %v4744 = vadd.f32 %v4696, %v4728
        %v4745 = vadd.f32 %v4697, %v4729
        %v4746 = vadd.f32 %v4698, %v4730
        %v4747 = vadd.f32 %v4699, %v4731
        %v4748 = vadd.f32 %v4700, %v4732
        %v4749 = vadd.f32 %v4701, %v4733
        %v4750 = vadd.f32 %v4702, %v4734
        %v4751 = vadd.f32 %v4703, %v4735
        %v4752 = vadd.f32 %v4736, %v4740
        %v4753 = vadd.f32 %v4752, %v4744
        %v4754 = vadd.f32 %v4753, %v4748
        %v4755 = vrot.slane %v4754, 4
        %v4756 = vadd.f32 %v4754, %v4755
        %v4757 = vrot.slane %v4756, 2
        %v4758 = vadd.f32 %v4756, %v4757
        %v4759 = vrot.slane %v4758, 1
        %v4760 = vadd.f32 %v4758, %v4759
        %v4761 = vadd.f32 %v4737, %v4741
        %v4762 = vadd.f32 %v4761, %v4745
        %v4763 = vadd.f32 %v4762, %v4749
        %v4764 = vrot.slane %v4763, 4
        %v4765 = vadd.f32 %v4763, %v4764
        %v4766 = vrot.slane %v4765, 2
        %v4767 = vadd.f32 %v4765, %v4766
        %v4768 = vrot.slane %v4767, 1
        %v4769 = vadd.f32 %v4767, %v4768
        %v4770 = vadd.f32 %v4738, %v4742
        %v4771 = vadd.f32 %v4770, %v4746
        %v4772 = vadd.f32 %v4771, %v4750
        %v4773 = vrot.slane %v4772, 4
        %v4774 = vadd.f32 %v4772, %v4773
        %v4775 = vrot.slane %v4774, 2
        %v4776 = vadd.f32 %v4774, %v4775
        %v4777 = vrot.slane %v4776, 1
        %v4778 = vadd.f32 %v4776, %v4777
        %v4779 = vadd.f32 %v4739, %v4743
        %v4780 = vadd.f32 %v4779, %v4747
        %v4781 = vadd.f32 %v4780, %v4751
        %v4782 = vrot.slane %v4781, 4
        %v4783 = vadd.f32 %v4781, %v4782
        %v4784 = vrot.slane %v4783, 2
        %v4785 = vadd.f32 %v4783, %v4784
        %v4786 = vrot.slane %v4785, 1
        %v4787 = vadd.f32 %v4785, %v4786
        %v4788 = vstv %s4619
        %v4789 = vadd.f32 %v4760, %v4788
        %v4790 = vadd.f32 %v4769, %v4788
        %v4791 = vadd.f32 %v4778, %v4788
        %v4792 = vadd.f32 %v4787, %v4788
        %4794 = vset.pattern.permute.xlu0 0
        %4795 = vperm.xlu0 %4794, %v4615
        %v4796 = vpop.permute.xlu0 %4795
        %4799 = vset.pattern.permute.xlu0 0
        %4800 = vperm.xlu0 %4799, %v4616
        %v4801 = vpop.permute.xlu0 %4800
        %4804 = vset.pattern.permute.xlu0 0
        %4805 = vperm.xlu0 %4804, %v4617
        %v4806 = vpop.permute.xlu0 %4805
        %4809 = vset.pattern.permute.xlu0 0
        %4810 = vperm.xlu0 %4809, %v4618
        %v4811 = vpop.permute.xlu0 %4810
        %v4813 = vmul.f32 %v1396, %v4796
        %v4814 = vmul.f32 %v1398, %v4796
        %v4815 = vmul.f32 %v2190, %v4796
        %v4816 = vmul.f32 %v2192, %v4796
        %v4817 = vmul.f32 %v1403, %v4801
        %v4818 = vmul.f32 %v1405, %v4801
        %v4819 = vmul.f32 %v2197, %v4801
        %v4820 = vmul.f32 %v2199, %v4801
        %v4821 = vmul.f32 %v1410, %v4806
        %v4822 = vmul.f32 %v1412, %v4806
        %v4823 = vmul.f32 %v2204, %v4806
        %v4824 = vmul.f32 %v2206, %v4806
        %v4825 = vmul.f32 %v1417, %v4811
        %v4826 = vmul.f32 %v1419, %v4811
        %v4827 = vmul.f32 %v2211, %v4811
        %v4828 = vmul.f32 %v2213, %v4811
        %4829 = vset.pattern.permute.xlu0 1
        %4830 = vperm.xlu0 %4829, %v4615
        %v4831 = vpop.permute.xlu0 %4830
        %4833 = vset.pattern.permute.xlu0 1
        %4834 = vperm.xlu0 %4833, %v4616
        %v4835 = vpop.permute.xlu0 %4834
        %4837 = vset.pattern.permute.xlu0 1
        %4838 = vperm.xlu0 %4837, %v4617
        %v4839 = vpop.permute.xlu0 %4838
        %4841 = vset.pattern.permute.xlu0 1
        %4842 = vperm.xlu0 %4841, %v4618
        %v4843 = vpop.permute.xlu0 %4842
        %v4845 = vmul.f32 %v3413, %v4831
        %v4846 = vmul.f32 %v3415, %v4831
        %v4847 = vmul.f32 %v4415, %v4831
        %v4848 = vmul.f32 %v4417, %v4831
        %v4849 = vmul.f32 %v3420, %v4835
        %v4850 = vmul.f32 %v3422, %v4835
        %v4851 = vmul.f32 %v4422, %v4835
        %v4852 = vmul.f32 %v4424, %v4835
        %v4853 = vmul.f32 %v3427, %v4839
        %v4854 = vmul.f32 %v3429, %v4839
        %v4855 = vmul.f32 %v4429, %v4839
        %v4856 = vmul.f32 %v4431, %v4839
        %v4857 = vmul.f32 %v3434, %v4843
        %v4858 = vmul.f32 %v3436, %v4843
        %v4859 = vmul.f32 %v4436, %v4843
        %v4860 = vmul.f32 %v4438, %v4843
        %v4861 = vadd.f32 %v4813, %v4845
        %v4862 = vadd.f32 %v4814, %v4846
        %v4863 = vadd.f32 %v4815, %v4847
        %v4864 = vadd.f32 %v4816, %v4848
        %v4865 = vadd.f32 %v4817, %v4849
        %v4866 = vadd.f32 %v4818, %v4850
        %v4867 = vadd.f32 %v4819, %v4851
        %v4868 = vadd.f32 %v4820, %v4852
        %v4869 = vadd.f32 %v4821, %v4853
        %v4870 = vadd.f32 %v4822, %v4854
        %v4871 = vadd.f32 %v4823, %v4855
        %v4872 = vadd.f32 %v4824, %v4856
        %v4873 = vadd.f32 %v4825, %v4857
        %v4874 = vadd.f32 %v4826, %v4858
        %v4875 = vadd.f32 %v4827, %v4859
        %v4876 = vadd.f32 %v4828, %v4860
        %4877 = vset.pattern.permute.xlu0 2
        %4878 = vperm.xlu0 %4877, %v4615
        %v4879 = vpop.permute.xlu0 %4878
        %4881 = vset.pattern.permute.xlu0 2
        %4882 = vperm.xlu0 %4881, %v4616
        %v4883 = vpop.permute.xlu0 %4882
        %4885 = vset.pattern.permute.xlu0 2
        %4886 = vperm.xlu0 %4885, %v4617
        %v4887 = vpop.permute.xlu0 %4886
        %4889 = vset.pattern.permute.xlu0 2
        %4890 = vperm.xlu0 %4889, %v4618
        %v4891 = vpop.permute.xlu0 %4890
        %v4893 = vmul.f32 %v4595, %v4879
        %v4894 = vmul.f32 %v4596, %v4879
        %v4895 = vmul.f32 %v4597, %v4879
        %v4896 = vmul.f32 %v4598, %v4879
        %v4897 = vmul.f32 %v4599, %v4883
        %v4898 = vmul.f32 %v4600, %v4883
        %v4899 = vmul.f32 %v4601, %v4883
        %v4900 = vmul.f32 %v4602, %v4883
        %v4901 = vmul.f32 %v4603, %v4887
        %v4902 = vmul.f32 %v4604, %v4887
        %v4903 = vmul.f32 %v4605, %v4887
        %v4904 = vmul.f32 %v4606, %v4887
        %v4905 = vmul.f32 %v4607, %v4891
        %v4906 = vmul.f32 %v4608, %v4891
        %v4907 = vmul.f32 %v4609, %v4891
        %v4908 = vmul.f32 %v4610, %v4891
        %v4909 = vadd.f32 %v4861, %v4893
        %v4910 = vadd.f32 %v4862, %v4894
        %v4911 = vadd.f32 %v4863, %v4895
        %v4912 = vadd.f32 %v4864, %v4896
        %v4913 = vadd.f32 %v4865, %v4897
        %v4914 = vadd.f32 %v4866, %v4898
        %v4915 = vadd.f32 %v4867, %v4899
        %v4916 = vadd.f32 %v4868, %v4900
        %v4917 = vadd.f32 %v4869, %v4901
        %v4918 = vadd.f32 %v4870, %v4902
        %v4919 = vadd.f32 %v4871, %v4903
        %v4920 = vadd.f32 %v4872, %v4904
        %v4921 = vadd.f32 %v4873, %v4905
        %v4922 = vadd.f32 %v4874, %v4906
        %v4923 = vadd.f32 %v4875, %v4907
        %v4924 = vadd.f32 %v4876, %v4908
        %v4925 = vadd.f32 %v4909, %v4913
        %v4926 = vadd.f32 %v4925, %v4917
        %v4927 = vadd.f32 %v4926, %v4921
        %v4928 = vrot.slane %v4927, 4
        %v4929 = vadd.f32 %v4927, %v4928
        %v4930 = vrot.slane %v4929, 2
        %v4931 = vadd.f32 %v4929, %v4930
        %v4932 = vrot.slane %v4931, 1
        %v4933 = vadd.f32 %v4931, %v4932
        %v4934 = vadd.f32 %v4910, %v4914
        %v4935 = vadd.f32 %v4934, %v4918
        %v4936 = vadd.f32 %v4935, %v4922
        %v4937 = vrot.slane %v4936, 4
        %v4938 = vadd.f32 %v4936, %v4937
        %v4939 = vrot.slane %v4938, 2
        %v4940 = vadd.f32 %v4938, %v4939
        %v4941 = vrot.slane %v4940, 1
        %v4942 = vadd.f32 %v4940, %v4941
        %v4943 = vadd.f32 %v4911, %v4915
        %v4944 = vadd.f32 %v4943, %v4919
        %v4945 = vadd.f32 %v4944, %v4923
        %v4946 = vrot.slane %v4945, 4
        %v4947 = vadd.f32 %v4945, %v4946
        %v4948 = vrot.slane %v4947, 2
        %v4949 = vadd.f32 %v4947, %v4948
        %v4950 = vrot.slane %v4949, 1
        %v4951 = vadd.f32 %v4949, %v4950
        %v4952 = vadd.f32 %v4912, %v4916
        %v4953 = vadd.f32 %v4952, %v4920
        %v4954 = vadd.f32 %v4953, %v4924
        %v4955 = vrot.slane %v4954, 4
        %v4956 = vadd.f32 %v4954, %v4955
        %v4957 = vrot.slane %v4956, 2
        %v4958 = vadd.f32 %v4956, %v4957
        %v4959 = vrot.slane %v4958, 1
        %v4960 = vadd.f32 %v4958, %v4959
        %v4961 = vmul.f32 %v1396, %v1396
        %v4962 = vmul.f32 %v1398, %v1398
        %v4963 = vmul.f32 %v2190, %v2190
        %v4964 = vmul.f32 %v2192, %v2192
        %v4965 = vmul.f32 %v1403, %v1403
        %v4966 = vmul.f32 %v1405, %v1405
        %v4967 = vmul.f32 %v2197, %v2197
        %v4968 = vmul.f32 %v2199, %v2199
        %v4969 = vmul.f32 %v1410, %v1410
        %v4970 = vmul.f32 %v1412, %v1412
        %v4971 = vmul.f32 %v2204, %v2204
        %v4972 = vmul.f32 %v2206, %v2206
        %v4973 = vmul.f32 %v1417, %v1417
        %v4974 = vmul.f32 %v1419, %v1419
        %v4975 = vmul.f32 %v2211, %v2211
        %v4976 = vmul.f32 %v2213, %v2213
        %v4977 = vmul.f32 %v4961, %v4796
        %v4978 = vmul.f32 %v4962, %v4796
        %v4979 = vmul.f32 %v4963, %v4796
        %v4980 = vmul.f32 %v4964, %v4796
        %v4981 = vmul.f32 %v4965, %v4801
        %v4982 = vmul.f32 %v4966, %v4801
        %v4983 = vmul.f32 %v4967, %v4801
        %v4984 = vmul.f32 %v4968, %v4801
        %v4985 = vmul.f32 %v4969, %v4806
        %v4986 = vmul.f32 %v4970, %v4806
        %v4987 = vmul.f32 %v4971, %v4806
        %v4988 = vmul.f32 %v4972, %v4806
        %v4989 = vmul.f32 %v4973, %v4811
        %v4990 = vmul.f32 %v4974, %v4811
        %v4991 = vmul.f32 %v4975, %v4811
        %v4992 = vmul.f32 %v4976, %v4811
        %v4993 = vmul.f32 %v3413, %v3413
        %v4994 = vmul.f32 %v3415, %v3415
        %v4995 = vmul.f32 %v4415, %v4415
        %v4996 = vmul.f32 %v4417, %v4417
        %v4997 = vmul.f32 %v3420, %v3420
        %v4998 = vmul.f32 %v3422, %v3422
        %v4999 = vmul.f32 %v4422, %v4422
        %v5000 = vmul.f32 %v4424, %v4424
        %v5001 = vmul.f32 %v3427, %v3427
        %v5002 = vmul.f32 %v3429, %v3429
        %v5003 = vmul.f32 %v4429, %v4429
        %v5004 = vmul.f32 %v4431, %v4431
        %v5005 = vmul.f32 %v3434, %v3434
        %v5006 = vmul.f32 %v3436, %v3436
        %v5007 = vmul.f32 %v4436, %v4436
        %v5008 = vmul.f32 %v4438, %v4438
        %v5009 = vmul.f32 %v4993, %v4831
        %v5010 = vmul.f32 %v4994, %v4831
        %v5011 = vmul.f32 %v4995, %v4831
        %v5012 = vmul.f32 %v4996, %v4831
        %v5013 = vmul.f32 %v4997, %v4835
        %v5014 = vmul.f32 %v4998, %v4835
        %v5015 = vmul.f32 %v4999, %v4835
        %v5016 = vmul.f32 %v5000, %v4835
        %v5017 = vmul.f32 %v5001, %v4839
        %v5018 = vmul.f32 %v5002, %v4839
        %v5019 = vmul.f32 %v5003, %v4839
        %v5020 = vmul.f32 %v5004, %v4839
        %v5021 = vmul.f32 %v5005, %v4843
        %v5022 = vmul.f32 %v5006, %v4843
        %v5023 = vmul.f32 %v5007, %v4843
        %v5024 = vmul.f32 %v5008, %v4843
        %v5025 = vadd.f32 %v4977, %v5009
        %v5026 = vadd.f32 %v4978, %v5010
        %v5027 = vadd.f32 %v4979, %v5011
        %v5028 = vadd.f32 %v4980, %v5012
        %v5029 = vadd.f32 %v4981, %v5013
        %v5030 = vadd.f32 %v4982, %v5014
        %v5031 = vadd.f32 %v4983, %v5015
        %v5032 = vadd.f32 %v4984, %v5016
        %v5033 = vadd.f32 %v4985, %v5017
        %v5034 = vadd.f32 %v4986, %v5018
        %v5035 = vadd.f32 %v4987, %v5019
        %v5036 = vadd.f32 %v4988, %v5020
        %v5037 = vadd.f32 %v4989, %v5021
        %v5038 = vadd.f32 %v4990, %v5022
        %v5039 = vadd.f32 %v4991, %v5023
        %v5040 = vadd.f32 %v4992, %v5024
        %v5041 = vmul.f32 %v4595, %v4595
        %v5042 = vmul.f32 %v4596, %v4596
        %v5043 = vmul.f32 %v4597, %v4597
        %v5044 = vmul.f32 %v4598, %v4598
        %v5045 = vmul.f32 %v4599, %v4599
        %v5046 = vmul.f32 %v4600, %v4600
        %v5047 = vmul.f32 %v4601, %v4601
        %v5048 = vmul.f32 %v4602, %v4602
        %v5049 = vmul.f32 %v4603, %v4603
        %v5050 = vmul.f32 %v4604, %v4604
        %v5051 = vmul.f32 %v4605, %v4605
        %v5052 = vmul.f32 %v4606, %v4606
        %v5053 = vmul.f32 %v4607, %v4607
        %v5054 = vmul.f32 %v4608, %v4608
        %v5055 = vmul.f32 %v4609, %v4609
        %v5056 = vmul.f32 %v4610, %v4610
        %v5057 = vmul.f32 %v5041, %v4879
        %v5058 = vmul.f32 %v5042, %v4879
        %v5059 = vmul.f32 %v5043, %v4879
        %v5060 = vmul.f32 %v5044, %v4879
        %v5061 = vmul.f32 %v5045, %v4883
        %v5062 = vmul.f32 %v5046, %v4883
        %v5063 = vmul.f32 %v5047, %v4883
        %v5064 = vmul.f32 %v5048, %v4883
        %v5065 = vmul.f32 %v5049, %v4887
        %v5066 = vmul.f32 %v5050, %v4887
        %v5067 = vmul.f32 %v5051, %v4887
        %v5068 = vmul.f32 %v5052, %v4887
        %v5069 = vmul.f32 %v5053, %v4891
        %v5070 = vmul.f32 %v5054, %v4891
        %v5071 = vmul.f32 %v5055, %v4891
        %v5072 = vmul.f32 %v5056, %v4891
        %v5073 = vadd.f32 %v5025, %v5057
        %v5074 = vadd.f32 %v5026, %v5058
        %v5075 = vadd.f32 %v5027, %v5059
        %v5076 = vadd.f32 %v5028, %v5060
        %v5077 = vadd.f32 %v5029, %v5061
        %v5078 = vadd.f32 %v5030, %v5062
        %v5079 = vadd.f32 %v5031, %v5063
        %v5080 = vadd.f32 %v5032, %v5064
        %v5081 = vadd.f32 %v5033, %v5065
        %v5082 = vadd.f32 %v5034, %v5066
        %v5083 = vadd.f32 %v5035, %v5067
        %v5084 = vadd.f32 %v5036, %v5068
        %v5085 = vadd.f32 %v5037, %v5069
        %v5086 = vadd.f32 %v5038, %v5070
        %v5087 = vadd.f32 %v5039, %v5071
        %v5088 = vadd.f32 %v5040, %v5072
        %v5089 = vadd.f32 %v5073, %v5077
        %v5090 = vadd.f32 %v5089, %v5081
        %v5091 = vadd.f32 %v5090, %v5085
        %v5092 = vrot.slane %v5091, 4
        %v5093 = vadd.f32 %v5091, %v5092
        %v5094 = vrot.slane %v5093, 2
        %v5095 = vadd.f32 %v5093, %v5094
        %v5096 = vrot.slane %v5095, 1
        %v5097 = vadd.f32 %v5095, %v5096
        %v5098 = vadd.f32 %v5074, %v5078
        %v5099 = vadd.f32 %v5098, %v5082
        %v5100 = vadd.f32 %v5099, %v5086
        %v5101 = vrot.slane %v5100, 4
        %v5102 = vadd.f32 %v5100, %v5101
        %v5103 = vrot.slane %v5102, 2
        %v5104 = vadd.f32 %v5102, %v5103
        %v5105 = vrot.slane %v5104, 1
        %v5106 = vadd.f32 %v5104, %v5105
        %v5107 = vadd.f32 %v5075, %v5079
        %v5108 = vadd.f32 %v5107, %v5083
        %v5109 = vadd.f32 %v5108, %v5087
        %v5110 = vrot.slane %v5109, 4
        %v5111 = vadd.f32 %v5109, %v5110
        %v5112 = vrot.slane %v5111, 2
        %v5113 = vadd.f32 %v5111, %v5112
        %v5114 = vrot.slane %v5113, 1
        %v5115 = vadd.f32 %v5113, %v5114
        %v5116 = vadd.f32 %v5076, %v5080
        %v5117 = vadd.f32 %v5116, %v5084
        %v5118 = vadd.f32 %v5117, %v5088
        %v5119 = vrot.slane %v5118, 4
        %v5120 = vadd.f32 %v5118, %v5119
        %v5121 = vrot.slane %v5120, 2
        %v5122 = vadd.f32 %v5120, %v5121
        %v5123 = vrot.slane %v5122, 1
        %v5124 = vadd.f32 %v5122, %v5123
        %v5125 = vmul.f32 %v4933, %v4933
        %v5126 = vmul.f32 %v4942, %v4942
        %v5127 = vmul.f32 %v4951, %v4951
        %v5128 = vmul.f32 %v4960, %v4960
        %v5129 = vsub.f32 %v5125, %v5097
        %v5130 = vsub.f32 %v5126, %v5106
        %v5131 = vsub.f32 %v5127, %v5115
        %v5132 = vsub.f32 %v5128, %v5124
        %v5133 = vmul.f32 %v5129, 0.5
        %v5134 = vmul.f32 %v5130, 0.5
        %v5135 = vmul.f32 %v5131, 0.5
        %v5136 = vmul.f32 %v5132, 0.5
        %v5137 = vadd.f32 %v4789, %v5133
        %v5138 = vadd.f32 %v4790, %v5134
        %v5139 = vadd.f32 %v4791, %v5135
        %v5140 = vadd.f32 %v4792, %v5136
        %v5145 = vcombine.low %v5137, %v5138
        %v5146 = vcombine.low %v5139, %v5140
        %v5148 = vunpack.c.l.s4 1966171168
        %v5149 = vunpack.c.0.s8 %v5148
        %v5150 = vlaneseq
        %v5151 = vshrl.u32 %v5150, 7
        %v5152 = vsub.s32 %v5149, %v5151
        %v5153 = vrot.slane %v5145, %v5152
        %v5155 = vunpack.c.l.s4 1966171168
        %v5156 = vunpack.c.0.s8 %v5155
        %v5157 = vlaneseq
        %v5158 = vshrl.u32 %v5157, 7
        %v5159 = vsub.s32 %v5156, %v5158
        %v5160 = vrot.slane %v5146, %v5159
        %v5161 = vcombine.low %v5153, %v5160
        %v5163 = vunpack.c.l.s4 1966171168
        %v5164 = vunpack.c.0.s8 %v5163
        %v5165 = vlaneseq
        %v5166 = vshrl.u32 %v5165, 7
        %v5167 = vsub.s32 %v5164, %v5166
        %v5168 = vrot.slane %v5161, %v5167
        %v5170 = vlaneseq
        %vm5171 = vcmp.ge.s32.totalorder %v5170, 0
        %vm5172 = vcmp.lt.s32.totalorder %v5170, 512
        %vm5173 = vmand %vm5171, %vm5172
        %5174 = vst.msk [vmem:[%s482] sm:$0xf] %vm5173, %v5168
        %s5175 = sand.u32 %s264, 1
        %s5176 = scalar_lea.sflag [#allocation5], %s5175
        %s5177 = sand.u32 %s264, 1
        %s5178 = smul.addr %s5177, 4
        %s5179 = scalar_lea.vmem [#allocation10], %s5178
        // Predicated region
        $region96: #{tpu_custom_call.1} parent=78 // pred_check
          %p5180 = pneg %p274
        $region97: #{tpu_custom_call.1} parent=78 // pred_check_branch
          %5182 = sbr.rel (%p5180) target = $region99
        $region98: #{tpu_custom_call.1} parent=78 // pred_region
          %s5183 = smul.u32 4, %s31
          %s5185 = ssub.s32 64, 64
          %5186 = vsyncadd %s5176, %s5185
          %s5187 = smul.addr %s5183, 16
          %s5188 = scalar_lea.hbm %s10, %s5187
          %s5190 = sshll.u32 %s5179, 4
          %s5191 = int_to_ptr.vmem [resolvable:$true] %s5190
          %5193 = dma.vmem_to_hbm [thread:$0]  %s5191, 64, %s5188, %s5176
        $region99: #{tpu_custom_call.1} parent=78 // pred_fallthru
          _
      $region79: #{tpu_custom_call.1} parent=5 // pred_fallthru
        _
      %p5194 = scmp.le.s32.totalorder 2, %s26
      // Predicated region
      $region100: #{tpu_custom_call.1} parent=5 // pred_check
        %p5195 = pneg %p5194
      $region101: #{tpu_custom_call.1} parent=5 // pred_check_branch
        %5197 = sbr.rel (%p5195) target = $region103
      $region102: #{tpu_custom_call.1} parent=5 // pred_region
        %s5198 = ssub.s32 %s26, 2
        // Predicated region
        $region104: #{tpu_custom_call.1} parent=102 // pred_check
          %p5199 = pneg %p280
        $region105: #{tpu_custom_call.1} parent=102 // pred_check_branch
          %5201 = sbr.rel (%p5199) target = $region107
        $region106: #{tpu_custom_call.1} parent=102 // pred_region
          %s5202 = sand.u32 %s265, 1
          %s5203 = scalar_lea.sflag [#allocation5], %s5202
          %s5204 = sand.u32 %s265, 1
          %s5205 = smul.addr %s5204, 4
          %s5206 = scalar_lea.vmem [#allocation10], %s5205
          %5207 = dma.done %s5203, 64
        $region107: #{tpu_custom_call.1} parent=102 // pred_fallthru
          _
      $region103: #{tpu_custom_call.1} parent=5 // pred_fallthru
        _
    $region6: #{tpu_custom_call.1} parent=1 // loop_footer
      %s30 = sadd.s32 1, %s26
    $region7: #{tpu_custom_call.1} parent=1 // loop_footer_branch
      %25 = sbr.rel target = $region3
    $region8: #{tpu_custom_call.1} parent=1 // loop_exit
      _
    %5208 = vsyncpa [#allocation4], 1
    %s5209 = scalar_lea.sflag [#allocation4], 1
    %5210 = vsyncpa %s5209, 1
    %5211 = vsyncpa [#allocation7], 1
    %s5212 = scalar_lea.sflag [#allocation7], 1
    %5213 = vsyncpa %s5212, 1
    %5214 = vsyncpa [#allocation5], 1
    %s5215 = scalar_lea.sflag [#allocation5], 1
    %5216 = vsyncpa %s5215, 1

</llo_original>
